<compile_context>
chip_gen: v7x
topology: tpu7x:2x2x1
jax: 0.10.0
libtpu: 0.0.40
codegen_flags: <defaults>
</compile_context>

<pallas_src>
import functools

import jax
import jax.numpy as jnp
from jax.experimental import pallas as pl
from jax.experimental.pallas import tpu as pltpu

EPS = 1e-5          # nn.LayerNorm default
NEG_INF = -1e30     # finite mask fill (safe: diagonal always unmasked)


def _layernorm(h, gamma, beta):
    mu = jnp.mean(h, axis=-1, keepdims=True)
    var = jnp.mean((h - mu) ** 2, axis=-1, keepdims=True)
    return (h - mu) * jax.lax.rsqrt(var + EPS) * gamma + beta


def _mish(x):
    return x * jnp.tanh(jax.nn.softplus(x))


def _attend(q, k, v, ctx_ref, heads, dim_head, compute_dtype, causal_mask=None):
    """Per-head softmax attention; writes context slices into VMEM scratch."""
    cd = compute_dtype
    for hh in range(heads):
        sl = slice(hh * dim_head, (hh + 1) * dim_head)
        qh = q[:, sl].astype(cd)
        kh = k[:, sl].astype(cd)
        vh = v[:, sl].astype(cd)
        s = jax.lax.dot_general(qh, kh, (((1,), (1,)), ((), ())),
                                preferred_element_type=jnp.float32)
        if causal_mask is not None:
            s = jnp.where(causal_mask, s, NEG_INF)
        s = s - jnp.max(s, axis=-1, keepdims=True)
        p = jnp.exp(s)
        p = p / jnp.sum(p, axis=-1, keepdims=True)
        ctx_ref[:, sl] = jnp.dot(p.astype(cd), vh,
                                 preferred_element_type=jnp.float32)


# ---------------------------------------------------------------------------
# One fused kernel per decoder layer (activation stays in VMEM throughout).
# ---------------------------------------------------------------------------
def decoder_layer_kernel(x_ref, kv_ref,
                         sa_wqkv_ref, sa_wo_ref, sa_bo_ref, sa_g_ref, sa_be_ref,
                         ca_wq_ref, ca_wo_ref, ca_bo_ref, ca_g_ref, ca_be_ref,
                         ff_w1_ref, ff_b1_ref, ff_w2_ref, ff_b2_ref,
                         ff_g_ref, ff_be_ref,
                         o_ref, ctx_ref,
                         *, heads, dim_head, compute_dtype):
    cd = compute_dtype
    inner = heads * dim_head
    scale = dim_head ** -0.5

    x = x_ref[0].astype(jnp.float32)                      # (N, D) residual, f32
    n = x.shape[0]

    # ---- block 1: PreNorm(causal self-attention) + residual ---------------
    h = _layernorm(x, sa_g_ref[...], sa_be_ref[...])
    qkv = jnp.dot(h.astype(cd), sa_wqkv_ref[...],
                  preferred_element_type=jnp.float32)     # (N, 3*inner)
    q = qkv[:, :inner] * scale
    k = qkv[:, inner:2 * inner]
    v = qkv[:, 2 * inner:]

    row = jax.lax.broadcasted_iota(jnp.int32, (n, n), 0)
    col = jax.lax.broadcasted_iota(jnp.int32, (n, n), 1)
    causal = row >= col

    _attend(q, k, v, ctx_ref, heads, dim_head, cd, causal_mask=causal)
    x = x + (jnp.dot(ctx_ref[...].astype(cd), sa_wo_ref[...],
                     preferred_element_type=jnp.float32) + sa_bo_ref[...])

    # ---- block 2: PreNorm(cross-attention, raw kv as key=value) + residual
    kv = kv_ref[0]                                        # (M, inner)
    h = _layernorm(x, ca_g_ref[...], ca_be_ref[...])
    q = jnp.dot(h.astype(cd), ca_wq_ref[...],
                preferred_element_type=jnp.float32) * scale
    _attend(q, kv, kv, ctx_ref, heads, dim_head, cd)
    x = x + (jnp.dot(ctx_ref[...].astype(cd), ca_wo_ref[...],
                     preferred_element_type=jnp.float32) + ca_bo_ref[...])

    # ---- block 3: PreNorm(FeedForward with Mish) + residual ---------------
    h = _layernorm(x, ff_g_ref[...], ff_be_ref[...])
    y = jnp.dot(h.astype(cd), ff_w1_ref[...],
                preferred_element_type=jnp.float32) + ff_b1_ref[...]
    y = _mish(y)
    x = x + (jnp.dot(y.astype(cd), ff_w2_ref[...],
                     preferred_element_type=jnp.float32) + ff_b2_ref[...])

    o_ref[0] = x.astype(o_ref.dtype)


# ---------------------------------------------------------------------------
# Wrappers
# ---------------------------------------------------------------------------
def _full(shape):
    nd = len(shape)
    return pl.BlockSpec(shape, lambda b, _nd=nd: (0,) * _nd)


def decoder_layer(x, kv, layer, heads, dim_head, compute_dtype):
    B, N, D = x.shape
    _, M, kv_dim = kv.shape
    inner = heads * dim_head
    sa, ca, ff = layer["sa"], layer["ca"], layer["ff"]
    mlp_dim = ff["w1"].shape[1]
    cd = compute_dtype

    # Fused QKV weight; weights / kv pre-cast to the MXU compute dtype so the
    # weight DMA shrinks too when cd == bf16 (v6e/v7x). Biases / LN params f32.
    sa_wqkv = jnp.concatenate([sa["wq"], sa["wk"], sa["wv"]], axis=1).astype(cd)
    args = (
        x, kv.astype(cd),
        sa_wqkv, sa["wo"].astype(cd), sa["bo"], sa["g"], sa["be"],
        ca["wq"].astype(cd), ca["wo"].astype(cd), ca["bo"], ca["g"], ca["be"],
        ff["w1"].astype(cd), ff["b1"], ff["w2"].astype(cd), ff["b2"],
        ff["g"], ff["be"],
    )
    in_specs = [
        pl.BlockSpec((1, N, D), lambda b: (b, 0, 0)),
        pl.BlockSpec((1, M, kv_dim), lambda b: (b, 0, 0)),
        _full((D, 3 * inner)), _full((inner, D)), _full((1, D)),
        _full((1, D)), _full((1, D)),
        _full((D, inner)), _full((inner, D)), _full((1, D)),
        _full((1, D)), _full((1, D)),
        _full((D, mlp_dim)), _full((1, mlp_dim)),
        _full((mlp_dim, D)), _full((1, D)),
        _full((1, D)), _full((1, D)),
    ]
    kern = functools.partial(decoder_layer_kernel, heads=heads,
                             dim_head=dim_head, compute_dtype=cd)
    return pl.pallas_call(
        kern,
        out_shape=jax.ShapeDtypeStruct((B, N, D), x.dtype),
        grid=(B,),
        in_specs=in_specs,
        out_specs=pl.BlockSpec((1, N, D), lambda b: (b, 0, 0)),
        scratch_shapes=[pltpu.VMEM((N, inner), jnp.float32)],
        input_output_aliases={0: 0},
        compiler_params=pltpu.CompilerParams(
            dimension_semantics=("parallel",)),
    )(*args)


@functools.partial(jax.jit, static_argnames=("heads", "dim_head", "compute_dtype"))
def decoder_forward(x, kv, params, heads, dim_head, compute_dtype=jnp.float32):
    for layer in params:
        x = decoder_layer(x, kv, layer, heads, dim_head, compute_dtype)
    return x


# ---------------------------------------------------------------------------
# Pure-JAX reference (mirrors the PyTorch forward exactly, dropout = 0)
# ---------------------------------------------------------------------------
def ref_decoder(x, kv, params, heads, dim_head):
    def ln(h, g, b):
        mu = h.mean(-1, keepdims=True)
        var = ((h - mu) ** 2).mean(-1, keepdims=True)
        return (h - mu) / jnp.sqrt(var + EPS) * g + b

    def attn(h, wq, wo, bo, wk=None, wv=None, kv_in=None, mask=None):
        q = h @ wq
        k = kv_in if wk is None else h @ wk
        v = kv_in if wv is None else h @ wv
        B, N, _ = q.shape
        M = k.shape[1]
        qh = q.reshape(B, N, heads, dim_head).transpose(0, 2, 1, 3)
        kh = k.reshape(B, M, heads, dim_head).transpose(0, 2, 1, 3)
        vh = v.reshape(B, M, heads, dim_head).transpose(0, 2, 1, 3)
        s = jnp.einsum("bhnd,bhmd->bhnm", qh, kh) * dim_head ** -0.5
        if mask is not None:
            s = jnp.where(mask, s, -jnp.inf)
        p = jax.nn.softmax(s, axis=-1)
        c = jnp.einsum("bhnm,bhmd->bhnd", p, vh)
        c = c.transpose(0, 2, 1, 3).reshape(B, N, heads * dim_head)
        return c @ wo + bo

    n = x.shape[1]
    causal = jnp.tril(jnp.ones((n, n), bool))[None, None]
    for layer in params:
        sa, ca, ff = layer["sa"], layer["ca"], layer["ff"]
        x = attn(ln(x, sa["g"], sa["be"]), sa["wq"], sa["wo"], sa["bo"],
                 wk=sa["wk"], wv=sa["wv"], mask=causal) + x
        x = attn(ln(x, ca["g"], ca["be"]), ca["wq"], ca["wo"], ca["bo"],
                 kv_in=kv) + x
        h = ln(x, ff["g"], ff["be"])
        y = h @ ff["w1"] + ff["b1"]
        y = y * jnp.tanh(jax.nn.softplus(y))
        x = y @ ff["w2"] + ff["b2"] + x
    return x


# ---------------------------------------------------------------------------
# Deterministic parameter construction
# ---------------------------------------------------------------------------
def make_params(key, depth, dim, inner, mlp_dim):
    params = []
    for _ in range(depth):
        keys = jax.random.split(key, 16)
        key = keys[-1]
        nrm = lambda k, shape: 0.05 * jax.random.normal(k, shape, jnp.float32)
        sa = dict(
            wq=nrm(keys[0], (dim, inner)), wk=nrm(keys[1], (dim, inner)),
            wv=nrm(keys[2], (dim, inner)), wo=nrm(keys[3], (inner, dim)),
            bo=nrm(keys[4], (1, dim)),
            g=1.0 + 0.1 * jax.random.normal(keys[5], (1, dim), jnp.float32),
            be=0.1 * jax.random.normal(keys[6], (1, dim), jnp.float32),
        )
        ca = dict(
            wq=nrm(keys[7], (dim, inner)), wo=nrm(keys[8], (inner, dim)),
            bo=nrm(keys[9], (1, dim)),
            g=1.0 + 0.1 * jax.random.normal(keys[10], (1, dim), jnp.float32),
            be=0.1 * jax.random.normal(keys[11], (1, dim), jnp.float32),
        )
        ff = dict(
            w1=nrm(keys[12], (dim, mlp_dim)), b1=nrm(keys[13], (1, mlp_dim)),
            w2=nrm(keys[14], (mlp_dim, dim)), b2=nrm(keys[15], (1, dim)),
            g=1.0 + 0.1 * jax.random.normal(keys[5], (1, dim), jnp.float32),
            be=0.1 * jax.random.normal(keys[6], (1, dim), jnp.float32),
        )
        params.append(dict(sa=sa, ca=ca, ff=ff))
    return params


if __name__ == "__main__":
    # Small shapes consistent with the module: dim == heads*dim_head so that
    # kv (passed raw as key/value in cross-attention) has the right width.
    B, N, M = 2, 8, 8
    heads, dim_head = 2, 16
    dim = heads * dim_head        # 32
    mlp_dim = 64
    depth = 2

    key = jax.random.PRNGKey(0)
    kx, kkv, kp = jax.random.split(key, 3)
    x = jax.random.normal(kx, (B, N, dim), jnp.float32)
    kv = jax.random.normal(kkv, (B, M, dim), jnp.float32)
    params = make_params(kp, depth, dim, heads * dim_head, mlp_dim)

    ref = ref_decoder(x, kv, params, heads, dim_head)

    # Exact-precision path (f32 MXU compute) — strict validation.
    out = decoder_forward(x, kv, params, heads=heads, dim_head=dim_head,
                          compute_dtype=jnp.float32)
    out = jax.block_until_ready(out)
    assert out.shape == (B, N, dim)
    assert jnp.allclose(out, ref, rtol=5e-4, atol=5e-4), float(
        jnp.max(jnp.abs(out - ref)))

    # bf16 MXU compute path (recommended on v6e/v7x) — smoke test, loose check.
    out_bf16 = decoder_forward(x, kv, params, heads=heads, dim_head=dim_head,
                               compute_dtype=jnp.bfloat16)
    out_bf16 = jax.block_until_ready(out_bf16)
    assert out_bf16.shape == (B, N, dim)
    assert bool(jnp.all(jnp.isfinite(out_bf16)))
    assert jnp.allclose(out_bf16, ref, rtol=1e-1, atol=1e-1)

    print("KERNEL_OK")
</pallas_src>

<mosaic_0001>
module attributes {stable_mosaic.version = 11 : i64} {
  func.func @decoder_layer_kernel(%arg0: i32, %arg1: memref<1x8x32xf32, #tpu.memory_space<vmem>>, %arg2: memref<1x8x32xf32, #tpu.memory_space<vmem>>, %arg3: memref<32x96xf32, #tpu.memory_space<vmem>>, %arg4: memref<32x32xf32, #tpu.memory_space<vmem>>, %arg5: memref<1x32xf32, #tpu.memory_space<vmem>>, %arg6: memref<1x32xf32, #tpu.memory_space<vmem>>, %arg7: memref<1x32xf32, #tpu.memory_space<vmem>>, %arg8: memref<32x32xf32, #tpu.memory_space<vmem>>, %arg9: memref<32x32xf32, #tpu.memory_space<vmem>>, %arg10: memref<1x32xf32, #tpu.memory_space<vmem>>, %arg11: memref<1x32xf32, #tpu.memory_space<vmem>>, %arg12: memref<1x32xf32, #tpu.memory_space<vmem>>, %arg13: memref<32x64xf32, #tpu.memory_space<vmem>>, %arg14: memref<1x64xf32, #tpu.memory_space<vmem>>, %arg15: memref<64x32xf32, #tpu.memory_space<vmem>>, %arg16: memref<1x32xf32, #tpu.memory_space<vmem>>, %arg17: memref<1x32xf32, #tpu.memory_space<vmem>>, %arg18: memref<1x32xf32, #tpu.memory_space<vmem>>, %arg19: memref<1x8x32xf32, #tpu.memory_space<vmem>>, %arg20: memref<8x32xf32, #tpu.memory_space<vmem>>) attributes {dimension_semantics = [#tpu.dimension_semantics<parallel>], iteration_bounds = array<i64: 2>, scalar_prefetch = 0 : i64, scratch_operands = 1 : i64, tpu.core_type = #tpu.core_type<tc>, window_params = [{transform_indices = @transform_0, window_bounds = array<i64: 1, 8, 32>}, {transform_indices = @transform_1, window_bounds = array<i64: 1, 8, 32>}, {pipeline_mode = #tpu.pipeline_mode<synchronous>, transform_indices = @transform_2, window_bounds = array<i64: 32, 96>}, {pipeline_mode = #tpu.pipeline_mode<synchronous>, transform_indices = @transform_3, window_bounds = array<i64: 32, 32>}, {pipeline_mode = #tpu.pipeline_mode<synchronous>, transform_indices = @transform_4, window_bounds = array<i64: 1, 32>}, {pipeline_mode = #tpu.pipeline_mode<synchronous>, transform_indices = @transform_5, window_bounds = array<i64: 1, 32>}, {pipeline_mode = #tpu.pipeline_mode<synchronous>, transform_indices = @transform_6, window_bounds = array<i64: 1, 32>}, {pipeline_mode = #tpu.pipeline_mode<synchronous>, transform_indices = @transform_7, window_bounds = array<i64: 32, 32>}, {pipeline_mode = #tpu.pipeline_mode<synchronous>, transform_indices = @transform_8, window_bounds = array<i64: 32, 32>}, {pipeline_mode = #tpu.pipeline_mode<synchronous>, transform_indices = @transform_9, window_bounds = array<i64: 1, 32>}, {pipeline_mode = #tpu.pipeline_mode<synchronous>, transform_indices = @transform_10, window_bounds = array<i64: 1, 32>}, {pipeline_mode = #tpu.pipeline_mode<synchronous>, transform_indices = @transform_11, window_bounds = array<i64: 1, 32>}, {pipeline_mode = #tpu.pipeline_mode<synchronous>, transform_indices = @transform_12, window_bounds = array<i64: 32, 64>}, {pipeline_mode = #tpu.pipeline_mode<synchronous>, transform_indices = @transform_13, window_bounds = array<i64: 1, 64>}, {pipeline_mode = #tpu.pipeline_mode<synchronous>, transform_indices = @transform_14, window_bounds = array<i64: 64, 32>}, {pipeline_mode = #tpu.pipeline_mode<synchronous>, transform_indices = @transform_15, window_bounds = array<i64: 1, 32>}, {pipeline_mode = #tpu.pipeline_mode<synchronous>, transform_indices = @transform_16, window_bounds = array<i64: 1, 32>}, {pipeline_mode = #tpu.pipeline_mode<synchronous>, transform_indices = @transform_17, window_bounds = array<i64: 1, 32>}, {transform_indices = @transform_18, window_bounds = array<i64: 1, 8, 32>}]} {
    %c0 = arith.constant 0 : index
    %c0_0 = arith.constant 0 : index
    %c0_1 = arith.constant 0 : index
    %0 = vector.load %arg1[%c0, %c0_0, %c0_1] : memref<1x8x32xf32, #tpu.memory_space<vmem>>, vector<1x8x32xf32>
    %1 = vector.shape_cast %0 : vector<1x8x32xf32> to vector<8x32xf32>
    %c0_2 = arith.constant 0 : index
    %c0_3 = arith.constant 0 : index
    %2 = vector.load %arg6[%c0_2, %c0_3] : memref<1x32xf32, #tpu.memory_space<vmem>>, vector<1x32xf32>
    %c0_4 = arith.constant 0 : index
    %c0_5 = arith.constant 0 : index
    %3 = vector.load %arg7[%c0_4, %c0_5] : memref<1x32xf32, #tpu.memory_space<vmem>>, vector<1x32xf32>
    %cst = arith.constant dense<0.000000e+00> : vector<8xf32>
    %4 = vector.multi_reduction <add>, %1, %cst [1] : vector<8x32xf32> to vector<8xf32>
    %5 = vector.shape_cast %4 : vector<8xf32> to vector<8x1xf32>
    %cst_6 = arith.constant 3.200000e+01 : f32
    %6 = vector.broadcast %cst_6 : f32 to vector<8x1xf32>
    %7 = arith.divf %5, %6 : vector<8x1xf32>
    %8 = vector.broadcast %7 : vector<8x1xf32> to vector<8x32xf32>
    %9 = arith.subf %1, %8 : vector<8x32xf32>
    %10 = arith.mulf %9, %9 : vector<8x32xf32>
    %cst_7 = arith.constant dense<0.000000e+00> : vector<8xf32>
    %11 = vector.multi_reduction <add>, %10, %cst_7 [1] : vector<8x32xf32> to vector<8xf32>
    %12 = vector.shape_cast %11 : vector<8xf32> to vector<8x1xf32>
    %cst_8 = arith.constant 3.200000e+01 : f32
    %13 = vector.broadcast %cst_8 : f32 to vector<8x1xf32>
    %14 = arith.divf %12, %13 : vector<8x1xf32>
    %15 = vector.broadcast %7 : vector<8x1xf32> to vector<8x32xf32>
    %16 = arith.subf %1, %15 : vector<8x32xf32>
    %cst_9 = arith.constant 9.99999974E-6 : f32
    %17 = vector.broadcast %cst_9 : f32 to vector<8x1xf32>
    %18 = arith.addf %14, %17 : vector<8x1xf32>
    %19 = math.rsqrt %18 : vector<8x1xf32>
    %20 = vector.broadcast %19 : vector<8x1xf32> to vector<8x32xf32>
    %21 = arith.mulf %16, %20 : vector<8x32xf32>
    %22 = vector.broadcast %2 : vector<1x32xf32> to vector<8x32xf32>
    %23 = arith.mulf %21, %22 : vector<8x32xf32>
    %24 = vector.broadcast %3 : vector<1x32xf32> to vector<8x32xf32>
    %25 = arith.addf %23, %24 : vector<8x32xf32>
    %c0_10 = arith.constant 0 : index
    %c0_11 = arith.constant 0 : index
    %26 = vector.load %arg3[%c0_10, %c0_11] : memref<32x96xf32, #tpu.memory_space<vmem>>, vector<32x96xf32>
    %cst_12 = arith.constant dense<0.000000e+00> : vector<8x96xf32>
    %27 = tpu.matmul %25, %26, %cst_12 {dimension_numbers = #tpu.dot_dimension_numbers<[1], [0], [0], [1], [0, 0, 1, 1], [], []>} : vector<8x32xf32>, vector<32x96xf32>, vector<8x96xf32> -> vector<8x96xf32>
    %28 = vector.extract_strided_slice %27 {offsets = [0, 0], sizes = [8, 32], strides = [1, 1]} : vector<8x96xf32> to vector<8x32xf32>
    %cst_13 = arith.constant 2.500000e-01 : f32
    %29 = vector.broadcast %cst_13 : f32 to vector<8x32xf32>
    %30 = arith.mulf %28, %29 : vector<8x32xf32>
    %31 = vector.extract_strided_slice %27 {offsets = [0, 32], sizes = [8, 32], strides = [1, 1]} : vector<8x96xf32> to vector<8x32xf32>
    %32 = vector.extract_strided_slice %27 {offsets = [0, 64], sizes = [8, 32], strides = [1, 1]} : vector<8x96xf32> to vector<8x32xf32>
    %33 = tpu.iota {dimensions = array<i32: 0>} : vector<8x8xi32>
    %34 = tpu.iota {dimensions = array<i32: 1>} : vector<8x8xi32>
    %35 = arith.cmpi sge, %33, %34 : vector<8x8xi32>
    %36 = vector.extract_strided_slice %30 {offsets = [0, 0], sizes = [8, 16], strides = [1, 1]} : vector<8x32xf32> to vector<8x16xf32>
    %37 = vector.extract_strided_slice %31 {offsets = [0, 0], sizes = [8, 16], strides = [1, 1]} : vector<8x32xf32> to vector<8x16xf32>
    %38 = vector.extract_strided_slice %32 {offsets = [0, 0], sizes = [8, 16], strides = [1, 1]} : vector<8x32xf32> to vector<8x16xf32>
    %cst_14 = arith.constant dense<0.000000e+00> : vector<8x8xf32>
    %39 = tpu.matmul %36, %37, %cst_14 {dimension_numbers = #tpu.dot_dimension_numbers<[1], [1], [0], [0], [0, 0, 1, 0], [], []>} : vector<8x16xf32>, vector<8x16xf32>, vector<8x8xf32> -> vector<8x8xf32>
    %cst_15 = arith.constant -1.000000e+30 : f32
    %40 = vector.broadcast %cst_15 : f32 to vector<8x8xf32>
    %41 = arith.select %35, %39, %40 : vector<8x8xi1>, vector<8x8xf32>
    %cst_16 = arith.constant dense<0xFF800000> : vector<8xf32>
    %42 = vector.multi_reduction <maximumf>, %41, %cst_16 [1] : vector<8x8xf32> to vector<8xf32>
    %43 = vector.shape_cast %42 : vector<8xf32> to vector<8x1xf32>
    %44 = vector.broadcast %43 : vector<8x1xf32> to vector<8x8xf32>
    %45 = arith.subf %41, %44 : vector<8x8xf32>
    %46 = math.exp %45 : vector<8x8xf32>
    %cst_17 = arith.constant dense<0.000000e+00> : vector<8xf32>
    %47 = vector.multi_reduction <add>, %46, %cst_17 [1] : vector<8x8xf32> to vector<8xf32>
    %48 = vector.shape_cast %47 : vector<8xf32> to vector<8x1xf32>
    %49 = vector.broadcast %48 : vector<8x1xf32> to vector<8x8xf32>
    %50 = arith.divf %46, %49 : vector<8x8xf32>
    %cst_18 = arith.constant dense<0.000000e+00> : vector<8x16xf32>
    %51 = tpu.matmul %50, %38, %cst_18 {dimension_numbers = #tpu.dot_dimension_numbers<[1], [0], [0], [1], [0, 0, 1, 1], [], []>} : vector<8x8xf32>, vector<8x16xf32>, vector<8x16xf32> -> vector<8x16xf32>
    %c0_19 = arith.constant 0 : index
    %c0_20 = arith.constant 0 : index
    %52 = vector.load %arg20[%c0_19, %c0_20] : memref<8x32xf32, #tpu.memory_space<vmem>>, vector<8x16xf32>
    tpu.vector_store %arg20[%c0_19, %c0_20], %51 {strides = array<i32>} : memref<8x32xf32, #tpu.memory_space<vmem>>, vector<8x16xf32>,
    %53 = vector.extract_strided_slice %30 {offsets = [0, 16], sizes = [8, 16], strides = [1, 1]} : vector<8x32xf32> to vector<8x16xf32>
    %54 = vector.extract_strided_slice %31 {offsets = [0, 16], sizes = [8, 16], strides = [1, 1]} : vector<8x32xf32> to vector<8x16xf32>
    %55 = vector.extract_strided_slice %32 {offsets = [0, 16], sizes = [8, 16], strides = [1, 1]} : vector<8x32xf32> to vector<8x16xf32>
    %cst_21 = arith.constant dense<0.000000e+00> : vector<8x8xf32>
    %56 = tpu.matmul %53, %54, %cst_21 {dimension_numbers = #tpu.dot_dimension_numbers<[1], [1], [0], [0], [0, 0, 1, 0], [], []>} : vector<8x16xf32>, vector<8x16xf32>, vector<8x8xf32> -> vector<8x8xf32>
    %cst_22 = arith.constant -1.000000e+30 : f32
    %57 = vector.broadcast %cst_22 : f32 to vector<8x8xf32>
    %58 = arith.select %35, %56, %57 : vector<8x8xi1>, vector<8x8xf32>
    %cst_23 = arith.constant dense<0xFF800000> : vector<8xf32>
    %59 = vector.multi_reduction <maximumf>, %58, %cst_23 [1] : vector<8x8xf32> to vector<8xf32>
    %60 = vector.shape_cast %59 : vector<8xf32> to vector<8x1xf32>
    %61 = vector.broadcast %60 : vector<8x1xf32> to vector<8x8xf32>
    %62 = arith.subf %58, %61 : vector<8x8xf32>
    %63 = math.exp %62 : vector<8x8xf32>
    %cst_24 = arith.constant dense<0.000000e+00> : vector<8xf32>
    %64 = vector.multi_reduction <add>, %63, %cst_24 [1] : vector<8x8xf32> to vector<8xf32>
    %65 = vector.shape_cast %64 : vector<8xf32> to vector<8x1xf32>
    %66 = vector.broadcast %65 : vector<8x1xf32> to vector<8x8xf32>
    %67 = arith.divf %63, %66 : vector<8x8xf32>
    %cst_25 = arith.constant dense<0.000000e+00> : vector<8x16xf32>
    %68 = tpu.matmul %67, %55, %cst_25 {dimension_numbers = #tpu.dot_dimension_numbers<[1], [0], [0], [1], [0, 0, 1, 1], [], []>} : vector<8x8xf32>, vector<8x16xf32>, vector<8x16xf32> -> vector<8x16xf32>
    %c0_26 = arith.constant 0 : index
    %c16 = arith.constant 16 : index
    %69 = vector.load %arg20[%c0_26, %c16] : memref<8x32xf32, #tpu.memory_space<vmem>>, vector<8x16xf32>
    tpu.vector_store %arg20[%c0_26, %c16], %68 {strides = array<i32>} : memref<8x32xf32, #tpu.memory_space<vmem>>, vector<8x16xf32>,
    %c0_27 = arith.constant 0 : index
    %c0_28 = arith.constant 0 : index
    %70 = vector.load %arg20[%c0_27, %c0_28] : memref<8x32xf32, #tpu.memory_space<vmem>>, vector<8x32xf32>
    %c0_29 = arith.constant 0 : index
    %c0_30 = arith.constant 0 : index
    %71 = vector.load %arg4[%c0_29, %c0_30] : memref<32x32xf32, #tpu.memory_space<vmem>>, vector<32x32xf32>
    %cst_31 = arith.constant dense<0.000000e+00> : vector<8x32xf32>
    %72 = tpu.matmul %70, %71, %cst_31 {dimension_numbers = #tpu.dot_dimension_numbers<[1], [0], [0], [1], [0, 0, 1, 1], [], []>} : vector<8x32xf32>, vector<32x32xf32>, vector<8x32xf32> -> vector<8x32xf32>
    %c0_32 = arith.constant 0 : index
    %c0_33 = arith.constant 0 : index
    %73 = vector.load %arg5[%c0_32, %c0_33] : memref<1x32xf32, #tpu.memory_space<vmem>>, vector<1x32xf32>
    %74 = vector.broadcast %73 : vector<1x32xf32> to vector<8x32xf32>
    %75 = arith.addf %72, %74 : vector<8x32xf32>
    %76 = arith.addf %1, %75 : vector<8x32xf32>
    %c0_34 = arith.constant 0 : index
    %c0_35 = arith.constant 0 : index
    %c0_36 = arith.constant 0 : index
    %77 = vector.load %arg2[%c0_34, %c0_35, %c0_36] : memref<1x8x32xf32, #tpu.memory_space<vmem>>, vector<1x8x32xf32>
    %78 = vector.shape_cast %77 : vector<1x8x32xf32> to vector<8x32xf32>
    %c0_37 = arith.constant 0 : index
    %c0_38 = arith.constant 0 : index
    %79 = vector.load %arg11[%c0_37, %c0_38] : memref<1x32xf32, #tpu.memory_space<vmem>>, vector<1x32xf32>
    %c0_39 = arith.constant 0 : index
    %c0_40 = arith.constant 0 : index
    %80 = vector.load %arg12[%c0_39, %c0_40] : memref<1x32xf32, #tpu.memory_space<vmem>>, vector<1x32xf32>
    %cst_41 = arith.constant dense<0.000000e+00> : vector<8xf32>
    %81 = vector.multi_reduction <add>, %76, %cst_41 [1] : vector<8x32xf32> to vector<8xf32>
    %82 = vector.shape_cast %81 : vector<8xf32> to vector<8x1xf32>
    %cst_42 = arith.constant 3.200000e+01 : f32
    %83 = vector.broadcast %cst_42 : f32 to vector<8x1xf32>
    %84 = arith.divf %82, %83 : vector<8x1xf32>
    %85 = vector.broadcast %84 : vector<8x1xf32> to vector<8x32xf32>
    %86 = arith.subf %76, %85 : vector<8x32xf32>
    %87 = arith.mulf %86, %86 : vector<8x32xf32>
    %cst_43 = arith.constant dense<0.000000e+00> : vector<8xf32>
    %88 = vector.multi_reduction <add>, %87, %cst_43 [1] : vector<8x32xf32> to vector<8xf32>
    %89 = vector.shape_cast %88 : vector<8xf32> to vector<8x1xf32>
    %cst_44 = arith.constant 3.200000e+01 : f32
    %90 = vector.broadcast %cst_44 : f32 to vector<8x1xf32>
    %91 = arith.divf %89, %90 : vector<8x1xf32>
    %92 = vector.broadcast %84 : vector<8x1xf32> to vector<8x32xf32>
    %93 = arith.subf %76, %92 : vector<8x32xf32>
    %cst_45 = arith.constant 9.99999974E-6 : f32
    %94 = vector.broadcast %cst_45 : f32 to vector<8x1xf32>
    %95 = arith.addf %91, %94 : vector<8x1xf32>
    %96 = math.rsqrt %95 : vector<8x1xf32>
    %97 = vector.broadcast %96 : vector<8x1xf32> to vector<8x32xf32>
    %98 = arith.mulf %93, %97 : vector<8x32xf32>
    %99 = vector.broadcast %79 : vector<1x32xf32> to vector<8x32xf32>
    %100 = arith.mulf %98, %99 : vector<8x32xf32>
    %101 = vector.broadcast %80 : vector<1x32xf32> to vector<8x32xf32>
    %102 = arith.addf %100, %101 : vector<8x32xf32>
    %c0_46 = arith.constant 0 : index
    %c0_47 = arith.constant 0 : index
    %103 = vector.load %arg8[%c0_46, %c0_47] : memref<32x32xf32, #tpu.memory_space<vmem>>, vector<32x32xf32>
    %cst_48 = arith.constant dense<0.000000e+00> : vector<8x32xf32>
    %104 = tpu.matmul %102, %103, %cst_48 {dimension_numbers = #tpu.dot_dimension_numbers<[1], [0], [0], [1], [0, 0, 1, 1], [], []>} : vector<8x32xf32>, vector<32x32xf32>, vector<8x32xf32> -> vector<8x32xf32>
    %cst_49 = arith.constant 2.500000e-01 : f32
    %105 = vector.broadcast %cst_49 : f32 to vector<8x32xf32>
    %106 = arith.mulf %104, %105 : vector<8x32xf32>
    %107 = vector.extract_strided_slice %106 {offsets = [0, 0], sizes = [8, 16], strides = [1, 1]} : vector<8x32xf32> to vector<8x16xf32>
    %108 = vector.extract_strided_slice %78 {offsets = [0, 0], sizes = [8, 16], strides = [1, 1]} : vector<8x32xf32> to vector<8x16xf32>
    %109 = vector.extract_strided_slice %78 {offsets = [0, 0], sizes = [8, 16], strides = [1, 1]} : vector<8x32xf32> to vector<8x16xf32>
    %cst_50 = arith.constant dense<0.000000e+00> : vector<8x8xf32>
    %110 = tpu.matmul %107, %108, %cst_50 {dimension_numbers = #tpu.dot_dimension_numbers<[1], [1], [0], [0], [0, 0, 1, 0], [], []>} : vector<8x16xf32>, vector<8x16xf32>, vector<8x8xf32> -> vector<8x8xf32>
    %cst_51 = arith.constant dense<0xFF800000> : vector<8xf32>
    %111 = vector.multi_reduction <maximumf>, %110, %cst_51 [1] : vector<8x8xf32> to vector<8xf32>
    %112 = vector.shape_cast %111 : vector<8xf32> to vector<8x1xf32>
    %113 = vector.broadcast %112 : vector<8x1xf32> to vector<8x8xf32>
    %114 = arith.subf %110, %113 : vector<8x8xf32>
    %115 = math.exp %114 : vector<8x8xf32>
    %cst_52 = arith.constant dense<0.000000e+00> : vector<8xf32>
    %116 = vector.multi_reduction <add>, %115, %cst_52 [1] : vector<8x8xf32> to vector<8xf32>
    %117 = vector.shape_cast %116 : vector<8xf32> to vector<8x1xf32>
    %118 = vector.broadcast %117 : vector<8x1xf32> to vector<8x8xf32>
    %119 = arith.divf %115, %118 : vector<8x8xf32>
    %cst_53 = arith.constant dense<0.000000e+00> : vector<8x16xf32>
    %120 = tpu.matmul %119, %109, %cst_53 {dimension_numbers = #tpu.dot_dimension_numbers<[1], [0], [0], [1], [0, 0, 1, 1], [], []>} : vector<8x8xf32>, vector<8x16xf32>, vector<8x16xf32> -> vector<8x16xf32>
    %c0_54 = arith.constant 0 : index
    %c0_55 = arith.constant 0 : index
    %121 = vector.load %arg20[%c0_54, %c0_55] : memref<8x32xf32, #tpu.memory_space<vmem>>, vector<8x16xf32>
    tpu.vector_store %arg20[%c0_54, %c0_55], %120 {strides = array<i32>} : memref<8x32xf32, #tpu.memory_space<vmem>>, vector<8x16xf32>,
    %122 = vector.extract_strided_slice %106 {offsets = [0, 16], sizes = [8, 16], strides = [1, 1]} : vector<8x32xf32> to vector<8x16xf32>
    %123 = vector.extract_strided_slice %78 {offsets = [0, 16], sizes = [8, 16], strides = [1, 1]} : vector<8x32xf32> to vector<8x16xf32>
    %124 = vector.extract_strided_slice %78 {offsets = [0, 16], sizes = [8, 16], strides = [1, 1]} : vector<8x32xf32> to vector<8x16xf32>
    %cst_56 = arith.constant dense<0.000000e+00> : vector<8x8xf32>
    %125 = tpu.matmul %122, %123, %cst_56 {dimension_numbers = #tpu.dot_dimension_numbers<[1], [1], [0], [0], [0, 0, 1, 0], [], []>} : vector<8x16xf32>, vector<8x16xf32>, vector<8x8xf32> -> vector<8x8xf32>
    %cst_57 = arith.constant dense<0xFF800000> : vector<8xf32>
    %126 = vector.multi_reduction <maximumf>, %125, %cst_57 [1] : vector<8x8xf32> to vector<8xf32>
    %127 = vector.shape_cast %126 : vector<8xf32> to vector<8x1xf32>
    %128 = vector.broadcast %127 : vector<8x1xf32> to vector<8x8xf32>
    %129 = arith.subf %125, %128 : vector<8x8xf32>
    %130 = math.exp %129 : vector<8x8xf32>
    %cst_58 = arith.constant dense<0.000000e+00> : vector<8xf32>
    %131 = vector.multi_reduction <add>, %130, %cst_58 [1] : vector<8x8xf32> to vector<8xf32>
    %132 = vector.shape_cast %131 : vector<8xf32> to vector<8x1xf32>
    %133 = vector.broadcast %132 : vector<8x1xf32> to vector<8x8xf32>
    %134 = arith.divf %130, %133 : vector<8x8xf32>
    %cst_59 = arith.constant dense<0.000000e+00> : vector<8x16xf32>
    %135 = tpu.matmul %134, %124, %cst_59 {dimension_numbers = #tpu.dot_dimension_numbers<[1], [0], [0], [1], [0, 0, 1, 1], [], []>} : vector<8x8xf32>, vector<8x16xf32>, vector<8x16xf32> -> vector<8x16xf32>
    %c0_60 = arith.constant 0 : index
    %c16_61 = arith.constant 16 : index
    %136 = vector.load %arg20[%c0_60, %c16_61] : memref<8x32xf32, #tpu.memory_space<vmem>>, vector<8x16xf32>
    tpu.vector_store %arg20[%c0_60, %c16_61], %135 {strides = array<i32>} : memref<8x32xf32, #tpu.memory_space<vmem>>, vector<8x16xf32>,
    %c0_62 = arith.constant 0 : index
    %c0_63 = arith.constant 0 : index
    %137 = vector.load %arg20[%c0_62, %c0_63] : memref<8x32xf32, #tpu.memory_space<vmem>>, vector<8x32xf32>
    %c0_64 = arith.constant 0 : index
    %c0_65 = arith.constant 0 : index
    %138 = vector.load %arg9[%c0_64, %c0_65] : memref<32x32xf32, #tpu.memory_space<vmem>>, vector<32x32xf32>
    %cst_66 = arith.constant dense<0.000000e+00> : vector<8x32xf32>
    %139 = tpu.matmul %137, %138, %cst_66 {dimension_numbers = #tpu.dot_dimension_numbers<[1], [0], [0], [1], [0, 0, 1, 1], [], []>} : vector<8x32xf32>, vector<32x32xf32>, vector<8x32xf32> -> vector<8x32xf32>
    %c0_67 = arith.constant 0 : index
    %c0_68 = arith.constant 0 : index
    %140 = vector.load %arg10[%c0_67, %c0_68] : memref<1x32xf32, #tpu.memory_space<vmem>>, vector<1x32xf32>
    %141 = vector.broadcast %140 : vector<1x32xf32> to vector<8x32xf32>
    %142 = arith.addf %139, %141 : vector<8x32xf32>
    %143 = arith.addf %76, %142 : vector<8x32xf32>
    %c0_69 = arith.constant 0 : index
    %c0_70 = arith.constant 0 : index
    %144 = vector.load %arg17[%c0_69, %c0_70] : memref<1x32xf32, #tpu.memory_space<vmem>>, vector<1x32xf32>
    %c0_71 = arith.constant 0 : index
    %c0_72 = arith.constant 0 : index
    %145 = vector.load %arg18[%c0_71, %c0_72] : memref<1x32xf32, #tpu.memory_space<vmem>>, vector<1x32xf32>
    %cst_73 = arith.constant dense<0.000000e+00> : vector<8xf32>
    %146 = vector.multi_reduction <add>, %143, %cst_73 [1] : vector<8x32xf32> to vector<8xf32>
    %147 = vector.shape_cast %146 : vector<8xf32> to vector<8x1xf32>
    %cst_74 = arith.constant 3.200000e+01 : f32
    %148 = vector.broadcast %cst_74 : f32 to vector<8x1xf32>
    %149 = arith.divf %147, %148 : vector<8x1xf32>
    %150 = vector.broadcast %149 : vector<8x1xf32> to vector<8x32xf32>
    %151 = arith.subf %143, %150 : vector<8x32xf32>
    %152 = arith.mulf %151, %151 : vector<8x32xf32>
    %cst_75 = arith.constant dense<0.000000e+00> : vector<8xf32>
    %153 = vector.multi_reduction <add>, %152, %cst_75 [1] : vector<8x32xf32> to vector<8xf32>
    %154 = vector.shape_cast %153 : vector<8xf32> to vector<8x1xf32>
    %cst_76 = arith.constant 3.200000e+01 : f32
    %155 = vector.broadcast %cst_76 : f32 to vector<8x1xf32>
    %156 = arith.divf %154, %155 : vector<8x1xf32>
    %157 = vector.broadcast %149 : vector<8x1xf32> to vector<8x32xf32>
    %158 = arith.subf %143, %157 : vector<8x32xf32>
    %cst_77 = arith.constant 9.99999974E-6 : f32
    %159 = vector.broadcast %cst_77 : f32 to vector<8x1xf32>
    %160 = arith.addf %156, %159 : vector<8x1xf32>
    %161 = math.rsqrt %160 : vector<8x1xf32>
    %162 = vector.broadcast %161 : vector<8x1xf32> to vector<8x32xf32>
    %163 = arith.mulf %158, %162 : vector<8x32xf32>
    %164 = vector.broadcast %144 : vector<1x32xf32> to vector<8x32xf32>
    %165 = arith.mulf %163, %164 : vector<8x32xf32>
    %166 = vector.broadcast %145 : vector<1x32xf32> to vector<8x32xf32>
    %167 = arith.addf %165, %166 : vector<8x32xf32>
    %c0_78 = arith.constant 0 : index
    %c0_79 = arith.constant 0 : index
    %168 = vector.load %arg13[%c0_78, %c0_79] : memref<32x64xf32, #tpu.memory_space<vmem>>, vector<32x64xf32>
    %cst_80 = arith.constant dense<0.000000e+00> : vector<8x64xf32>
    %169 = tpu.matmul %167, %168, %cst_80 {dimension_numbers = #tpu.dot_dimension_numbers<[1], [0], [0], [1], [0, 0, 1, 1], [], []>} : vector<8x32xf32>, vector<32x64xf32>, vector<8x64xf32> -> vector<8x64xf32>
    %c0_81 = arith.constant 0 : index
    %c0_82 = arith.constant 0 : index
    %170 = vector.load %arg14[%c0_81, %c0_82] : memref<1x64xf32, #tpu.memory_space<vmem>>, vector<1x64xf32>
    %171 = vector.broadcast %170 : vector<1x64xf32> to vector<8x64xf32>
    %172 = arith.addf %169, %171 : vector<8x64xf32>
    %cst_83 = arith.constant 0.000000e+00 : f32
    %173 = vector.broadcast %cst_83 : f32 to vector<8x64xf32>
    %174 = arith.maximumf %172, %173 : vector<8x64xf32>
    %175 = vector.broadcast %cst_83 : f32 to vector<8x64xf32>
    %176 = arith.subf %172, %175 : vector<8x64xf32>
    %177 = arith.cmpf one, %176, %176 : vector<8x64xf32>
    %178 = vector.broadcast %cst_83 : f32 to vector<8x64xf32>
    %179 = arith.addf %172, %178 : vector<8x64xf32>
    %180 = math.absf %176 : vector<8x64xf32>
    %cst_84 = arith.constant 0.000000e+00 : f32
    %181 = vector.broadcast %cst_84 : f32 to vector<8x64xf32>
    %182 = arith.subf %181, %180 : vector<8x64xf32>
    %183 = math.exp %182 : vector<8x64xf32>
    %184 = math.log1p %183 : vector<8x64xf32>
    %185 = arith.addf %174, %184 : vector<8x64xf32>
    %186 = arith.select %177, %179, %185 : vector<8x64xi1>, vector<8x64xf32>
    %187 = math.tanh %186 : vector<8x64xf32>
    %188 = arith.mulf %172, %187 : vector<8x64xf32>
    %c0_85 = arith.constant 0 : index
    %c0_86 = arith.constant 0 : index
    %189 = vector.load %arg15[%c0_85, %c0_86] : memref<64x32xf32, #tpu.memory_space<vmem>>, vector<64x32xf32>
    %cst_87 = arith.constant dense<0.000000e+00> : vector<8x32xf32>
    %190 = tpu.matmul %188, %189, %cst_87 {dimension_numbers = #tpu.dot_dimension_numbers<[1], [0], [0], [1], [0, 0, 1, 1], [], []>} : vector<8x64xf32>, vector<64x32xf32>, vector<8x32xf32> -> vector<8x32xf32>
    %c0_88 = arith.constant 0 : index
    %c0_89 = arith.constant 0 : index
    %191 = vector.load %arg16[%c0_88, %c0_89] : memref<1x32xf32, #tpu.memory_space<vmem>>, vector<1x32xf32>
    %192 = vector.broadcast %191 : vector<1x32xf32> to vector<8x32xf32>
    %193 = arith.addf %190, %192 : vector<8x32xf32>
    %194 = arith.addf %143, %193 : vector<8x32xf32>
    %c0_90 = arith.constant 0 : index
    %c0_91 = arith.constant 0 : index
    %c0_92 = arith.constant 0 : index
    %195 = vector.load %arg19[%c0_90, %c0_91, %c0_92] : memref<1x8x32xf32, #tpu.memory_space<vmem>>, vector<1x8x32xf32>
    %196 = vector.shape_cast %195 : vector<1x8x32xf32> to vector<8x32xf32>
    %197 = vector.shape_cast %194 : vector<8x32xf32> to vector<1x8x32xf32>
    tpu.vector_store %arg19[%c0_90, %c0_91, %c0_92], %197 {strides = array<i32>} : memref<1x8x32xf32, #tpu.memory_space<vmem>>, vector<1x8x32xf32>,
    return
  }
  func.func @transform_0(%arg0: i32) -> (i32, i32, i32) {
    %c0_i32 = arith.constant 0 : i32
    %c0_i32_0 = arith.constant 0 : i32
    %c0_i32_1 = arith.constant 0 : i32
    return %arg0, %c0_i32, %c0_i32_0 : i32, i32, i32
  }
  func.func @transform_1(%arg0: i32) -> (i32, i32, i32) {
    %c0_i32 = arith.constant 0 : i32
    %c0_i32_0 = arith.constant 0 : i32
    %c0_i32_1 = arith.constant 0 : i32
    return %arg0, %c0_i32, %c0_i32_0 : i32, i32, i32
  }
  func.func @transform_2(%arg0: i32) -> (i32, i32) {
    %c0_i32 = arith.constant 0 : i32
    %c0_i32_0 = arith.constant 0 : i32
    %c0_i32_1 = arith.constant 0 : i32
    return %c0_i32, %c0_i32_0 : i32, i32
  }
  func.func @transform_3(%arg0: i32) -> (i32, i32) {
    %c0_i32 = arith.constant 0 : i32
    %c0_i32_0 = arith.constant 0 : i32
    %c0_i32_1 = arith.constant 0 : i32
    return %c0_i32, %c0_i32_0 : i32, i32
  }
  func.func @transform_4(%arg0: i32) -> (i32, i32) {
    %c0_i32 = arith.constant 0 : i32
    %c0_i32_0 = arith.constant 0 : i32
    %c0_i32_1 = arith.constant 0 : i32
    return %c0_i32, %c0_i32_0 : i32, i32
  }
  func.func @transform_5(%arg0: i32) -> (i32, i32) {
    %c0_i32 = arith.constant 0 : i32
    %c0_i32_0 = arith.constant 0 : i32
    %c0_i32_1 = arith.constant 0 : i32
    return %c0_i32, %c0_i32_0 : i32, i32
  }
  func.func @transform_6(%arg0: i32) -> (i32, i32) {
    %c0_i32 = arith.constant 0 : i32
    %c0_i32_0 = arith.constant 0 : i32
    %c0_i32_1 = arith.constant 0 : i32
    return %c0_i32, %c0_i32_0 : i32, i32
  }
  func.func @transform_7(%arg0: i32) -> (i32, i32) {
    %c0_i32 = arith.constant 0 : i32
    %c0_i32_0 = arith.constant 0 : i32
    %c0_i32_1 = arith.constant 0 : i32
    return %c0_i32, %c0_i32_0 : i32, i32
  }
  func.func @transform_8(%arg0: i32) -> (i32, i32) {
    %c0_i32 = arith.constant 0 : i32
    %c0_i32_0 = arith.constant 0 : i32
    %c0_i32_1 = arith.constant 0 : i32
    return %c0_i32, %c0_i32_0 : i32, i32
  }
  func.func @transform_9(%arg0: i32) -> (i32, i32) {
    %c0_i32 = arith.constant 0 : i32
    %c0_i32_0 = arith.constant 0 : i32
    %c0_i32_1 = arith.constant 0 : i32
    return %c0_i32, %c0_i32_0 : i32, i32
  }
  func.func @transform_10(%arg0: i32) -> (i32, i32) {
    %c0_i32 = arith.constant 0 : i32
    %c0_i32_0 = arith.constant 0 : i32
    %c0_i32_1 = arith.constant 0 : i32
    return %c0_i32, %c0_i32_0 : i32, i32
  }
  func.func @transform_11(%arg0: i32) -> (i32, i32) {
    %c0_i32 = arith.constant 0 : i32
    %c0_i32_0 = arith.constant 0 : i32
    %c0_i32_1 = arith.constant 0 : i32
    return %c0_i32, %c0_i32_0 : i32, i32
  }
  func.func @transform_12(%arg0: i32) -> (i32, i32) {
    %c0_i32 = arith.constant 0 : i32
    %c0_i32_0 = arith.constant 0 : i32
    %c0_i32_1 = arith.constant 0 : i32
    return %c0_i32, %c0_i32_0 : i32, i32
  }
  func.func @transform_13(%arg0: i32) -> (i32, i32) {
    %c0_i32 = arith.constant 0 : i32
    %c0_i32_0 = arith.constant 0 : i32
    %c0_i32_1 = arith.constant 0 : i32
    return %c0_i32, %c0_i32_0 : i32, i32
  }
  func.func @transform_14(%arg0: i32) -> (i32, i32) {
    %c0_i32 = arith.constant 0 : i32
    %c0_i32_0 = arith.constant 0 : i32
    %c0_i32_1 = arith.constant 0 : i32
    return %c0_i32, %c0_i32_0 : i32, i32
  }
  func.func @transform_15(%arg0: i32) -> (i32, i32) {
    %c0_i32 = arith.constant 0 : i32
    %c0_i32_0 = arith.constant 0 : i32
    %c0_i32_1 = arith.constant 0 : i32
    return %c0_i32, %c0_i32_0 : i32, i32
  }
  func.func @transform_16(%arg0: i32) -> (i32, i32) {
    %c0_i32 = arith.constant 0 : i32
    %c0_i32_0 = arith.constant 0 : i32
    %c0_i32_1 = arith.constant 0 : i32
    return %c0_i32, %c0_i32_0 : i32, i32
  }
  func.func @transform_17(%arg0: i32) -> (i32, i32) {
    %c0_i32 = arith.constant 0 : i32
    %c0_i32_0 = arith.constant 0 : i32
    %c0_i32_1 = arith.constant 0 : i32
    return %c0_i32, %c0_i32_0 : i32, i32
  }
  func.func @transform_18(%arg0: i32) -> (i32, i32, i32) {
    %c0_i32 = arith.constant 0 : i32
    %c0_i32_0 = arith.constant 0 : i32
    %c0_i32_1 = arith.constant 0 : i32
    return %arg0, %c0_i32, %c0_i32_0 : i32, i32, i32
  }
}

module attributes {stable_mosaic.version = 11 : i64} {
  func.func @decoder_layer_kernel(%arg0: i32, %arg1: memref<1x8x32xf32, #tpu.memory_space<vmem>>, %arg2: memref<1x8x32xf32, #tpu.memory_space<vmem>>, %arg3: memref<32x96xf32, #tpu.memory_space<vmem>>, %arg4: memref<32x32xf32, #tpu.memory_space<vmem>>, %arg5: memref<1x32xf32, #tpu.memory_space<vmem>>, %arg6: memref<1x32xf32, #tpu.memory_space<vmem>>, %arg7: memref<1x32xf32, #tpu.memory_space<vmem>>, %arg8: memref<32x32xf32, #tpu.memory_space<vmem>>, %arg9: memref<32x32xf32, #tpu.memory_space<vmem>>, %arg10: memref<1x32xf32, #tpu.memory_space<vmem>>, %arg11: memref<1x32xf32, #tpu.memory_space<vmem>>, %arg12: memref<1x32xf32, #tpu.memory_space<vmem>>, %arg13: memref<32x64xf32, #tpu.memory_space<vmem>>, %arg14: memref<1x64xf32, #tpu.memory_space<vmem>>, %arg15: memref<64x32xf32, #tpu.memory_space<vmem>>, %arg16: memref<1x32xf32, #tpu.memory_space<vmem>>, %arg17: memref<1x32xf32, #tpu.memory_space<vmem>>, %arg18: memref<1x32xf32, #tpu.memory_space<vmem>>, %arg19: memref<1x8x32xf32, #tpu.memory_space<vmem>>, %arg20: memref<8x32xf32, #tpu.memory_space<vmem>>) attributes {dimension_semantics = [#tpu.dimension_semantics<parallel>], iteration_bounds = array<i64: 2>, scalar_prefetch = 0 : i64, scratch_operands = 1 : i64, tpu.core_type = #tpu.core_type<tc>, window_params = [{transform_indices = @transform_0, window_bounds = array<i64: 1, 8, 32>}, {transform_indices = @transform_1, window_bounds = array<i64: 1, 8, 32>}, {pipeline_mode = #tpu.pipeline_mode<synchronous>, transform_indices = @transform_2, window_bounds = array<i64: 32, 96>}, {pipeline_mode = #tpu.pipeline_mode<synchronous>, transform_indices = @transform_3, window_bounds = array<i64: 32, 32>}, {pipeline_mode = #tpu.pipeline_mode<synchronous>, transform_indices = @transform_4, window_bounds = array<i64: 1, 32>}, {pipeline_mode = #tpu.pipeline_mode<synchronous>, transform_indices = @transform_5, window_bounds = array<i64: 1, 32>}, {pipeline_mode = #tpu.pipeline_mode<synchronous>, transform_indices = @transform_6, window_bounds = array<i64: 1, 32>}, {pipeline_mode = #tpu.pipeline_mode<synchronous>, transform_indices = @transform_7, window_bounds = array<i64: 32, 32>}, {pipeline_mode = #tpu.pipeline_mode<synchronous>, transform_indices = @transform_8, window_bounds = array<i64: 32, 32>}, {pipeline_mode = #tpu.pipeline_mode<synchronous>, transform_indices = @transform_9, window_bounds = array<i64: 1, 32>}, {pipeline_mode = #tpu.pipeline_mode<synchronous>, transform_indices = @transform_10, window_bounds = array<i64: 1, 32>}, {pipeline_mode = #tpu.pipeline_mode<synchronous>, transform_indices = @transform_11, window_bounds = array<i64: 1, 32>}, {pipeline_mode = #tpu.pipeline_mode<synchronous>, transform_indices = @transform_12, window_bounds = array<i64: 32, 64>}, {pipeline_mode = #tpu.pipeline_mode<synchronous>, transform_indices = @transform_13, window_bounds = array<i64: 1, 64>}, {pipeline_mode = #tpu.pipeline_mode<synchronous>, transform_indices = @transform_14, window_bounds = array<i64: 64, 32>}, {pipeline_mode = #tpu.pipeline_mode<synchronous>, transform_indices = @transform_15, window_bounds = array<i64: 1, 32>}, {pipeline_mode = #tpu.pipeline_mode<synchronous>, transform_indices = @transform_16, window_bounds = array<i64: 1, 32>}, {pipeline_mode = #tpu.pipeline_mode<synchronous>, transform_indices = @transform_17, window_bounds = array<i64: 1, 32>}, {transform_indices = @transform_18, window_bounds = array<i64: 1, 8, 32>}]} {
    %c0 = arith.constant 0 : index
    %c0_0 = arith.constant 0 : index
    %c0_1 = arith.constant 0 : index
    %0 = vector.load %arg1[%c0, %c0_0, %c0_1] : memref<1x8x32xf32, #tpu.memory_space<vmem>>, vector<1x8x32xf32>
    %1 = vector.shape_cast %0 : vector<1x8x32xf32> to vector<8x32xf32>
    %c0_2 = arith.constant 0 : index
    %c0_3 = arith.constant 0 : index
    %2 = vector.load %arg6[%c0_2, %c0_3] : memref<1x32xf32, #tpu.memory_space<vmem>>, vector<1x32xf32>
    %c0_4 = arith.constant 0 : index
    %c0_5 = arith.constant 0 : index
    %3 = vector.load %arg7[%c0_4, %c0_5] : memref<1x32xf32, #tpu.memory_space<vmem>>, vector<1x32xf32>
    %cst = arith.constant dense<0.000000e+00> : vector<8xf32>
    %4 = vector.multi_reduction <add>, %1, %cst [1] : vector<8x32xf32> to vector<8xf32>
    %5 = vector.shape_cast %4 : vector<8xf32> to vector<8x1xf32>
    %cst_6 = arith.constant 3.200000e+01 : f32
    %6 = vector.broadcast %cst_6 : f32 to vector<8x1xf32>
    %7 = arith.divf %5, %6 : vector<8x1xf32>
    %8 = vector.broadcast %7 : vector<8x1xf32> to vector<8x32xf32>
    %9 = arith.subf %1, %8 : vector<8x32xf32>
    %10 = arith.mulf %9, %9 : vector<8x32xf32>
    %cst_7 = arith.constant dense<0.000000e+00> : vector<8xf32>
    %11 = vector.multi_reduction <add>, %10, %cst_7 [1] : vector<8x32xf32> to vector<8xf32>
    %12 = vector.shape_cast %11 : vector<8xf32> to vector<8x1xf32>
    %cst_8 = arith.constant 3.200000e+01 : f32
    %13 = vector.broadcast %cst_8 : f32 to vector<8x1xf32>
    %14 = arith.divf %12, %13 : vector<8x1xf32>
    %15 = vector.broadcast %7 : vector<8x1xf32> to vector<8x32xf32>
    %16 = arith.subf %1, %15 : vector<8x32xf32>
    %cst_9 = arith.constant 9.99999974E-6 : f32
    %17 = vector.broadcast %cst_9 : f32 to vector<8x1xf32>
    %18 = arith.addf %14, %17 : vector<8x1xf32>
    %19 = math.rsqrt %18 : vector<8x1xf32>
    %20 = vector.broadcast %19 : vector<8x1xf32> to vector<8x32xf32>
    %21 = arith.mulf %16, %20 : vector<8x32xf32>
    %22 = vector.broadcast %2 : vector<1x32xf32> to vector<8x32xf32>
    %23 = arith.mulf %21, %22 : vector<8x32xf32>
    %24 = vector.broadcast %3 : vector<1x32xf32> to vector<8x32xf32>
    %25 = arith.addf %23, %24 : vector<8x32xf32>
    %c0_10 = arith.constant 0 : index
    %c0_11 = arith.constant 0 : index
    %26 = vector.load %arg3[%c0_10, %c0_11] : memref<32x96xf32, #tpu.memory_space<vmem>>, vector<32x96xf32>
    %cst_12 = arith.constant dense<0.000000e+00> : vector<8x96xf32>
    %27 = tpu.matmul %25, %26, %cst_12 {dimension_numbers = #tpu.dot_dimension_numbers<[1], [0], [0], [1], [0, 0, 1, 1], [], []>} : vector<8x32xf32>, vector<32x96xf32>, vector<8x96xf32> -> vector<8x96xf32>
    %28 = vector.extract_strided_slice %27 {offsets = [0, 0], sizes = [8, 32], strides = [1, 1]} : vector<8x96xf32> to vector<8x32xf32>
    %cst_13 = arith.constant 2.500000e-01 : f32
    %29 = vector.broadcast %cst_13 : f32 to vector<8x32xf32>
    %30 = arith.mulf %28, %29 : vector<8x32xf32>
    %31 = vector.extract_strided_slice %27 {offsets = [0, 32], sizes = [8, 32], strides = [1, 1]} : vector<8x96xf32> to vector<8x32xf32>
    %32 = vector.extract_strided_slice %27 {offsets = [0, 64], sizes = [8, 32], strides = [1, 1]} : vector<8x96xf32> to vector<8x32xf32>
    %33 = tpu.iota {dimensions = array<i32: 0>} : vector<8x8xi32>
    %34 = tpu.iota {dimensions = array<i32: 1>} : vector<8x8xi32>
    %35 = arith.cmpi sge, %33, %34 : vector<8x8xi32>
    %36 = vector.extract_strided_slice %30 {offsets = [0, 0], sizes = [8, 16], strides = [1, 1]} : vector<8x32xf32> to vector<8x16xf32>
    %37 = vector.extract_strided_slice %31 {offsets = [0, 0], sizes = [8, 16], strides = [1, 1]} : vector<8x32xf32> to vector<8x16xf32>
    %38 = vector.extract_strided_slice %32 {offsets = [0, 0], sizes = [8, 16], strides = [1, 1]} : vector<8x32xf32> to vector<8x16xf32>
    %cst_14 = arith.constant dense<0.000000e+00> : vector<8x8xf32>
    %39 = tpu.matmul %36, %37, %cst_14 {dimension_numbers = #tpu.dot_dimension_numbers<[1], [1], [0], [0], [0, 0, 1, 0], [], []>} : vector<8x16xf32>, vector<8x16xf32>, vector<8x8xf32> -> vector<8x8xf32>
    %cst_15 = arith.constant -1.000000e+30 : f32
    %40 = vector.broadcast %cst_15 : f32 to vector<8x8xf32>
    %41 = arith.select %35, %39, %40 : vector<8x8xi1>, vector<8x8xf32>
    %cst_16 = arith.constant dense<0xFF800000> : vector<8xf32>
    %42 = vector.multi_reduction <maximumf>, %41, %cst_16 [1] : vector<8x8xf32> to vector<8xf32>
    %43 = vector.shape_cast %42 : vector<8xf32> to vector<8x1xf32>
    %44 = vector.broadcast %43 : vector<8x1xf32> to vector<8x8xf32>
    %45 = arith.subf %41, %44 : vector<8x8xf32>
    %46 = math.exp %45 : vector<8x8xf32>
    %cst_17 = arith.constant dense<0.000000e+00> : vector<8xf32>
    %47 = vector.multi_reduction <add>, %46, %cst_17 [1] : vector<8x8xf32> to vector<8xf32>
    %48 = vector.shape_cast %47 : vector<8xf32> to vector<8x1xf32>
    %49 = vector.broadcast %48 : vector<8x1xf32> to vector<8x8xf32>
    %50 = arith.divf %46, %49 : vector<8x8xf32>
    %cst_18 = arith.constant dense<0.000000e+00> : vector<8x16xf32>
    %51 = tpu.matmul %50, %38, %cst_18 {dimension_numbers = #tpu.dot_dimension_numbers<[1], [0], [0], [1], [0, 0, 1, 1], [], []>} : vector<8x8xf32>, vector<8x16xf32>, vector<8x16xf32> -> vector<8x16xf32>
    %c0_19 = arith.constant 0 : index
    %c0_20 = arith.constant 0 : index
    %52 = vector.load %arg20[%c0_19, %c0_20] : memref<8x32xf32, #tpu.memory_space<vmem>>, vector<8x16xf32>
    tpu.vector_store %arg20[%c0_19, %c0_20], %51 {strides = array<i32>} : memref<8x32xf32, #tpu.memory_space<vmem>>, vector<8x16xf32>,
    %53 = vector.extract_strided_slice %30 {offsets = [0, 16], sizes = [8, 16], strides = [1, 1]} : vector<8x32xf32> to vector<8x16xf32>
    %54 = vector.extract_strided_slice %31 {offsets = [0, 16], sizes = [8, 16], strides = [1, 1]} : vector<8x32xf32> to vector<8x16xf32>
    %55 = vector.extract_strided_slice %32 {offsets = [0, 16], sizes = [8, 16], strides = [1, 1]} : vector<8x32xf32> to vector<8x16xf32>
    %cst_21 = arith.constant dense<0.000000e+00> : vector<8x8xf32>
    %56 = tpu.matmul %53, %54, %cst_21 {dimension_numbers = #tpu.dot_dimension_numbers<[1], [1], [0], [0], [0, 0, 1, 0], [], []>} : vector<8x16xf32>, vector<8x16xf32>, vector<8x8xf32> -> vector<8x8xf32>
    %cst_22 = arith.constant -1.000000e+30 : f32
    %57 = vector.broadcast %cst_22 : f32 to vector<8x8xf32>
    %58 = arith.select %35, %56, %57 : vector<8x8xi1>, vector<8x8xf32>
    %cst_23 = arith.constant dense<0xFF800000> : vector<8xf32>
    %59 = vector.multi_reduction <maximumf>, %58, %cst_23 [1] : vector<8x8xf32> to vector<8xf32>
    %60 = vector.shape_cast %59 : vector<8xf32> to vector<8x1xf32>
    %61 = vector.broadcast %60 : vector<8x1xf32> to vector<8x8xf32>
    %62 = arith.subf %58, %61 : vector<8x8xf32>
    %63 = math.exp %62 : vector<8x8xf32>
    %cst_24 = arith.constant dense<0.000000e+00> : vector<8xf32>
    %64 = vector.multi_reduction <add>, %63, %cst_24 [1] : vector<8x8xf32> to vector<8xf32>
    %65 = vector.shape_cast %64 : vector<8xf32> to vector<8x1xf32>
    %66 = vector.broadcast %65 : vector<8x1xf32> to vector<8x8xf32>
    %67 = arith.divf %63, %66 : vector<8x8xf32>
    %cst_25 = arith.constant dense<0.000000e+00> : vector<8x16xf32>
    %68 = tpu.matmul %67, %55, %cst_25 {dimension_numbers = #tpu.dot_dimension_numbers<[1], [0], [0], [1], [0, 0, 1, 1], [], []>} : vector<8x8xf32>, vector<8x16xf32>, vector<8x16xf32> -> vector<8x16xf32>
    %c0_26 = arith.constant 0 : index
    %c16 = arith.constant 16 : index
    %69 = vector.load %arg20[%c0_26, %c16] : memref<8x32xf32, #tpu.memory_space<vmem>>, vector<8x16xf32>
    tpu.vector_store %arg20[%c0_26, %c16], %68 {strides = array<i32>} : memref<8x32xf32, #tpu.memory_space<vmem>>, vector<8x16xf32>,
    %c0_27 = arith.constant 0 : index
    %c0_28 = arith.constant 0 : index
    %70 = vector.load %arg20[%c0_27, %c0_28] : memref<8x32xf32, #tpu.memory_space<vmem>>, vector<8x32xf32>
    %c0_29 = arith.constant 0 : index
    %c0_30 = arith.constant 0 : index
    %71 = vector.load %arg4[%c0_29, %c0_30] : memref<32x32xf32, #tpu.memory_space<vmem>>, vector<32x32xf32>
    %cst_31 = arith.constant dense<0.000000e+00> : vector<8x32xf32>
    %72 = tpu.matmul %70, %71, %cst_31 {dimension_numbers = #tpu.dot_dimension_numbers<[1], [0], [0], [1], [0, 0, 1, 1], [], []>} : vector<8x32xf32>, vector<32x32xf32>, vector<8x32xf32> -> vector<8x32xf32>
    %c0_32 = arith.constant 0 : index
    %c0_33 = arith.constant 0 : index
    %73 = vector.load %arg5[%c0_32, %c0_33] : memref<1x32xf32, #tpu.memory_space<vmem>>, vector<1x32xf32>
    %74 = vector.broadcast %73 : vector<1x32xf32> to vector<8x32xf32>
    %75 = arith.addf %72, %74 : vector<8x32xf32>
    %76 = arith.addf %1, %75 : vector<8x32xf32>
    %c0_34 = arith.constant 0 : index
    %c0_35 = arith.constant 0 : index
    %c0_36 = arith.constant 0 : index
    %77 = vector.load %arg2[%c0_34, %c0_35, %c0_36] : memref<1x8x32xf32, #tpu.memory_space<vmem>>, vector<1x8x32xf32>
    %78 = vector.shape_cast %77 : vector<1x8x32xf32> to vector<8x32xf32>
    %c0_37 = arith.constant 0 : index
    %c0_38 = arith.constant 0 : index
    %79 = vector.load %arg11[%c0_37, %c0_38] : memref<1x32xf32, #tpu.memory_space<vmem>>, vector<1x32xf32>
    %c0_39 = arith.constant 0 : index
    %c0_40 = arith.constant 0 : index
    %80 = vector.load %arg12[%c0_39, %c0_40] : memref<1x32xf32, #tpu.memory_space<vmem>>, vector<1x32xf32>
    %cst_41 = arith.constant dense<0.000000e+00> : vector<8xf32>
    %81 = vector.multi_reduction <add>, %76, %cst_41 [1] : vector<8x32xf32> to vector<8xf32>
    %82 = vector.shape_cast %81 : vector<8xf32> to vector<8x1xf32>
    %cst_42 = arith.constant 3.200000e+01 : f32
    %83 = vector.broadcast %cst_42 : f32 to vector<8x1xf32>
    %84 = arith.divf %82, %83 : vector<8x1xf32>
    %85 = vector.broadcast %84 : vector<8x1xf32> to vector<8x32xf32>
    %86 = arith.subf %76, %85 : vector<8x32xf32>
    %87 = arith.mulf %86, %86 : vector<8x32xf32>
    %cst_43 = arith.constant dense<0.000000e+00> : vector<8xf32>
    %88 = vector.multi_reduction <add>, %87, %cst_43 [1] : vector<8x32xf32> to vector<8xf32>
    %89 = vector.shape_cast %88 : vector<8xf32> to vector<8x1xf32>
    %cst_44 = arith.constant 3.200000e+01 : f32
    %90 = vector.broadcast %cst_44 : f32 to vector<8x1xf32>
    %91 = arith.divf %89, %90 : vector<8x1xf32>
    %92 = vector.broadcast %84 : vector<8x1xf32> to vector<8x32xf32>
    %93 = arith.subf %76, %92 : vector<8x32xf32>
    %cst_45 = arith.constant 9.99999974E-6 : f32
    %94 = vector.broadcast %cst_45 : f32 to vector<8x1xf32>
    %95 = arith.addf %91, %94 : vector<8x1xf32>
    %96 = math.rsqrt %95 : vector<8x1xf32>
    %97 = vector.broadcast %96 : vector<8x1xf32> to vector<8x32xf32>
    %98 = arith.mulf %93, %97 : vector<8x32xf32>
    %99 = vector.broadcast %79 : vector<1x32xf32> to vector<8x32xf32>
    %100 = arith.mulf %98, %99 : vector<8x32xf32>
    %101 = vector.broadcast %80 : vector<1x32xf32> to vector<8x32xf32>
    %102 = arith.addf %100, %101 : vector<8x32xf32>
    %c0_46 = arith.constant 0 : index
    %c0_47 = arith.constant 0 : index
    %103 = vector.load %arg8[%c0_46, %c0_47] : memref<32x32xf32, #tpu.memory_space<vmem>>, vector<32x32xf32>
    %cst_48 = arith.constant dense<0.000000e+00> : vector<8x32xf32>
    %104 = tpu.matmul %102, %103, %cst_48 {dimension_numbers = #tpu.dot_dimension_numbers<[1], [0], [0], [1], [0, 0, 1, 1], [], []>} : vector<8x32xf32>, vector<32x32xf32>, vector<8x32xf32> -> vector<8x32xf32>
    %cst_49 = arith.constant 2.500000e-01 : f32
    %105 = vector.broadcast %cst_49 : f32 to vector<8x32xf32>
    %106 = arith.mulf %104, %105 : vector<8x32xf32>
    %107 = vector.extract_strided_slice %106 {offsets = [0, 0], sizes = [8, 16], strides = [1, 1]} : vector<8x32xf32> to vector<8x16xf32>
    %108 = vector.extract_strided_slice %78 {offsets = [0, 0], sizes = [8, 16], strides = [1, 1]} : vector<8x32xf32> to vector<8x16xf32>
    %109 = vector.extract_strided_slice %78 {offsets = [0, 0], sizes = [8, 16], strides = [1, 1]} : vector<8x32xf32> to vector<8x16xf32>
    %cst_50 = arith.constant dense<0.000000e+00> : vector<8x8xf32>
    %110 = tpu.matmul %107, %108, %cst_50 {dimension_numbers = #tpu.dot_dimension_numbers<[1], [1], [0], [0], [0, 0, 1, 0], [], []>} : vector<8x16xf32>, vector<8x16xf32>, vector<8x8xf32> -> vector<8x8xf32>
    %cst_51 = arith.constant dense<0xFF800000> : vector<8xf32>
    %111 = vector.multi_reduction <maximumf>, %110, %cst_51 [1] : vector<8x8xf32> to vector<8xf32>
    %112 = vector.shape_cast %111 : vector<8xf32> to vector<8x1xf32>
    %113 = vector.broadcast %112 : vector<8x1xf32> to vector<8x8xf32>
    %114 = arith.subf %110, %113 : vector<8x8xf32>
    %115 = math.exp %114 : vector<8x8xf32>
    %cst_52 = arith.constant dense<0.000000e+00> : vector<8xf32>
    %116 = vector.multi_reduction <add>, %115, %cst_52 [1] : vector<8x8xf32> to vector<8xf32>
    %117 = vector.shape_cast %116 : vector<8xf32> to vector<8x1xf32>
    %118 = vector.broadcast %117 : vector<8x1xf32> to vector<8x8xf32>
    %119 = arith.divf %115, %118 : vector<8x8xf32>
    %cst_53 = arith.constant dense<0.000000e+00> : vector<8x16xf32>
    %120 = tpu.matmul %119, %109, %cst_53 {dimension_numbers = #tpu.dot_dimension_numbers<[1], [0], [0], [1], [0, 0, 1, 1], [], []>} : vector<8x8xf32>, vector<8x16xf32>, vector<8x16xf32> -> vector<8x16xf32>
    %c0_54 = arith.constant 0 : index
    %c0_55 = arith.constant 0 : index
    %121 = vector.load %arg20[%c0_54, %c0_55] : memref<8x32xf32, #tpu.memory_space<vmem>>, vector<8x16xf32>
    tpu.vector_store %arg20[%c0_54, %c0_55], %120 {strides = array<i32>} : memref<8x32xf32, #tpu.memory_space<vmem>>, vector<8x16xf32>,
    %122 = vector.extract_strided_slice %106 {offsets = [0, 16], sizes = [8, 16], strides = [1, 1]} : vector<8x32xf32> to vector<8x16xf32>
    %123 = vector.extract_strided_slice %78 {offsets = [0, 16], sizes = [8, 16], strides = [1, 1]} : vector<8x32xf32> to vector<8x16xf32>
    %124 = vector.extract_strided_slice %78 {offsets = [0, 16], sizes = [8, 16], strides = [1, 1]} : vector<8x32xf32> to vector<8x16xf32>
    %cst_56 = arith.constant dense<0.000000e+00> : vector<8x8xf32>
    %125 = tpu.matmul %122, %123, %cst_56 {dimension_numbers = #tpu.dot_dimension_numbers<[1], [1], [0], [0], [0, 0, 1, 0], [], []>} : vector<8x16xf32>, vector<8x16xf32>, vector<8x8xf32> -> vector<8x8xf32>
    %cst_57 = arith.constant dense<0xFF800000> : vector<8xf32>
    %126 = vector.multi_reduction <maximumf>, %125, %cst_57 [1] : vector<8x8xf32> to vector<8xf32>
    %127 = vector.shape_cast %126 : vector<8xf32> to vector<8x1xf32>
    %128 = vector.broadcast %127 : vector<8x1xf32> to vector<8x8xf32>
    %129 = arith.subf %125, %128 : vector<8x8xf32>
    %130 = math.exp %129 : vector<8x8xf32>
    %cst_58 = arith.constant dense<0.000000e+00> : vector<8xf32>
    %131 = vector.multi_reduction <add>, %130, %cst_58 [1] : vector<8x8xf32> to vector<8xf32>
    %132 = vector.shape_cast %131 : vector<8xf32> to vector<8x1xf32>
    %133 = vector.broadcast %132 : vector<8x1xf32> to vector<8x8xf32>
    %134 = arith.divf %130, %133 : vector<8x8xf32>
    %cst_59 = arith.constant dense<0.000000e+00> : vector<8x16xf32>
    %135 = tpu.matmul %134, %124, %cst_59 {dimension_numbers = #tpu.dot_dimension_numbers<[1], [0], [0], [1], [0, 0, 1, 1], [], []>} : vector<8x8xf32>, vector<8x16xf32>, vector<8x16xf32> -> vector<8x16xf32>
    %c0_60 = arith.constant 0 : index
    %c16_61 = arith.constant 16 : index
    %136 = vector.load %arg20[%c0_60, %c16_61] : memref<8x32xf32, #tpu.memory_space<vmem>>, vector<8x16xf32>
    tpu.vector_store %arg20[%c0_60, %c16_61], %135 {strides = array<i32>} : memref<8x32xf32, #tpu.memory_space<vmem>>, vector<8x16xf32>,
    %c0_62 = arith.constant 0 : index
    %c0_63 = arith.constant 0 : index
    %137 = vector.load %arg20[%c0_62, %c0_63] : memref<8x32xf32, #tpu.memory_space<vmem>>, vector<8x32xf32>
    %c0_64 = arith.constant 0 : index
    %c0_65 = arith.constant 0 : index
    %138 = vector.load %arg9[%c0_64, %c0_65] : memref<32x32xf32, #tpu.memory_space<vmem>>, vector<32x32xf32>
    %cst_66 = arith.constant dense<0.000000e+00> : vector<8x32xf32>
    %139 = tpu.matmul %137, %138, %cst_66 {dimension_numbers = #tpu.dot_dimension_numbers<[1], [0], [0], [1], [0, 0, 1, 1], [], []>} : vector<8x32xf32>, vector<32x32xf32>, vector<8x32xf32> -> vector<8x32xf32>
    %c0_67 = arith.constant 0 : index
    %c0_68 = arith.constant 0 : index
    %140 = vector.load %arg10[%c0_67, %c0_68] : memref<1x32xf32, #tpu.memory_space<vmem>>, vector<1x32xf32>
    %141 = vector.broadcast %140 : vector<1x32xf32> to vector<8x32xf32>
    %142 = arith.addf %139, %141 : vector<8x32xf32>
    %143 = arith.addf %76, %142 : vector<8x32xf32>
    %c0_69 = arith.constant 0 : index
    %c0_70 = arith.constant 0 : index
    %144 = vector.load %arg17[%c0_69, %c0_70] : memref<1x32xf32, #tpu.memory_space<vmem>>, vector<1x32xf32>
    %c0_71 = arith.constant 0 : index
    %c0_72 = arith.constant 0 : index
    %145 = vector.load %arg18[%c0_71, %c0_72] : memref<1x32xf32, #tpu.memory_space<vmem>>, vector<1x32xf32>
    %cst_73 = arith.constant dense<0.000000e+00> : vector<8xf32>
    %146 = vector.multi_reduction <add>, %143, %cst_73 [1] : vector<8x32xf32> to vector<8xf32>
    %147 = vector.shape_cast %146 : vector<8xf32> to vector<8x1xf32>
    %cst_74 = arith.constant 3.200000e+01 : f32
    %148 = vector.broadcast %cst_74 : f32 to vector<8x1xf32>
    %149 = arith.divf %147, %148 : vector<8x1xf32>
    %150 = vector.broadcast %149 : vector<8x1xf32> to vector<8x32xf32>
    %151 = arith.subf %143, %150 : vector<8x32xf32>
    %152 = arith.mulf %151, %151 : vector<8x32xf32>
    %cst_75 = arith.constant dense<0.000000e+00> : vector<8xf32>
    %153 = vector.multi_reduction <add>, %152, %cst_75 [1] : vector<8x32xf32> to vector<8xf32>
    %154 = vector.shape_cast %153 : vector<8xf32> to vector<8x1xf32>
    %cst_76 = arith.constant 3.200000e+01 : f32
    %155 = vector.broadcast %cst_76 : f32 to vector<8x1xf32>
    %156 = arith.divf %154, %155 : vector<8x1xf32>
    %157 = vector.broadcast %149 : vector<8x1xf32> to vector<8x32xf32>
    %158 = arith.subf %143, %157 : vector<8x32xf32>
    %cst_77 = arith.constant 9.99999974E-6 : f32
    %159 = vector.broadcast %cst_77 : f32 to vector<8x1xf32>
    %160 = arith.addf %156, %159 : vector<8x1xf32>
    %161 = math.rsqrt %160 : vector<8x1xf32>
    %162 = vector.broadcast %161 : vector<8x1xf32> to vector<8x32xf32>
    %163 = arith.mulf %158, %162 : vector<8x32xf32>
    %164 = vector.broadcast %144 : vector<1x32xf32> to vector<8x32xf32>
    %165 = arith.mulf %163, %164 : vector<8x32xf32>
    %166 = vector.broadcast %145 : vector<1x32xf32> to vector<8x32xf32>
    %167 = arith.addf %165, %166 : vector<8x32xf32>
    %c0_78 = arith.constant 0 : index
    %c0_79 = arith.constant 0 : index
    %168 = vector.load %arg13[%c0_78, %c0_79] : memref<32x64xf32, #tpu.memory_space<vmem>>, vector<32x64xf32>
    %cst_80 = arith.constant dense<0.000000e+00> : vector<8x64xf32>
    %169 = tpu.matmul %167, %168, %cst_80 {dimension_numbers = #tpu.dot_dimension_numbers<[1], [0], [0], [1], [0, 0, 1, 1], [], []>} : vector<8x32xf32>, vector<32x64xf32>, vector<8x64xf32> -> vector<8x64xf32>
    %c0_81 = arith.constant 0 : index
    %c0_82 = arith.constant 0 : index
    %170 = vector.load %arg14[%c0_81, %c0_82] : memref<1x64xf32, #tpu.memory_space<vmem>>, vector<1x64xf32>
    %171 = vector.broadcast %170 : vector<1x64xf32> to vector<8x64xf32>
    %172 = arith.addf %169, %171 : vector<8x64xf32>
    %cst_83 = arith.constant 0.000000e+00 : f32
    %173 = vector.broadcast %cst_83 : f32 to vector<8x64xf32>
    %174 = arith.maximumf %172, %173 : vector<8x64xf32>
    %175 = vector.broadcast %cst_83 : f32 to vector<8x64xf32>
    %176 = arith.subf %172, %175 : vector<8x64xf32>
    %177 = arith.cmpf one, %176, %176 : vector<8x64xf32>
    %178 = vector.broadcast %cst_83 : f32 to vector<8x64xf32>
    %179 = arith.addf %172, %178 : vector<8x64xf32>
    %180 = math.absf %176 : vector<8x64xf32>
    %cst_84 = arith.constant 0.000000e+00 : f32
    %181 = vector.broadcast %cst_84 : f32 to vector<8x64xf32>
    %182 = arith.subf %181, %180 : vector<8x64xf32>
    %183 = math.exp %182 : vector<8x64xf32>
    %184 = math.log1p %183 : vector<8x64xf32>
    %185 = arith.addf %174, %184 : vector<8x64xf32>
    %186 = arith.select %177, %179, %185 : vector<8x64xi1>, vector<8x64xf32>
    %187 = math.tanh %186 : vector<8x64xf32>
    %188 = arith.mulf %172, %187 : vector<8x64xf32>
    %c0_85 = arith.constant 0 : index
    %c0_86 = arith.constant 0 : index
    %189 = vector.load %arg15[%c0_85, %c0_86] : memref<64x32xf32, #tpu.memory_space<vmem>>, vector<64x32xf32>
    %cst_87 = arith.constant dense<0.000000e+00> : vector<8x32xf32>
    %190 = tpu.matmul %188, %189, %cst_87 {dimension_numbers = #tpu.dot_dimension_numbers<[1], [0], [0], [1], [0, 0, 1, 1], [], []>} : vector<8x64xf32>, vector<64x32xf32>, vector<8x32xf32> -> vector<8x32xf32>
    %c0_88 = arith.constant 0 : index
    %c0_89 = arith.constant 0 : index
    %191 = vector.load %arg16[%c0_88, %c0_89] : memref<1x32xf32, #tpu.memory_space<vmem>>, vector<1x32xf32>
    %192 = vector.broadcast %191 : vector<1x32xf32> to vector<8x32xf32>
    %193 = arith.addf %190, %192 : vector<8x32xf32>
    %194 = arith.addf %143, %193 : vector<8x32xf32>
    %c0_90 = arith.constant 0 : index
    %c0_91 = arith.constant 0 : index
    %c0_92 = arith.constant 0 : index
    %195 = vector.load %arg19[%c0_90, %c0_91, %c0_92] : memref<1x8x32xf32, #tpu.memory_space<vmem>>, vector<1x8x32xf32>
    %196 = vector.shape_cast %195 : vector<1x8x32xf32> to vector<8x32xf32>
    %197 = vector.shape_cast %194 : vector<8x32xf32> to vector<1x8x32xf32>
    tpu.vector_store %arg19[%c0_90, %c0_91, %c0_92], %197 {strides = array<i32>} : memref<1x8x32xf32, #tpu.memory_space<vmem>>, vector<1x8x32xf32>,
    return
  }
  func.func @transform_0(%arg0: i32) -> (i32, i32, i32) {
    %c0_i32 = arith.constant 0 : i32
    %c0_i32_0 = arith.constant 0 : i32
    %c0_i32_1 = arith.constant 0 : i32
    return %arg0, %c0_i32, %c0_i32_0 : i32, i32, i32
  }
  func.func @transform_1(%arg0: i32) -> (i32, i32, i32) {
    %c0_i32 = arith.constant 0 : i32
    %c0_i32_0 = arith.constant 0 : i32
    %c0_i32_1 = arith.constant 0 : i32
    return %arg0, %c0_i32, %c0_i32_0 : i32, i32, i32
  }
  func.func @transform_2(%arg0: i32) -> (i32, i32) {
    %c0_i32 = arith.constant 0 : i32
    %c0_i32_0 = arith.constant 0 : i32
    %c0_i32_1 = arith.constant 0 : i32
    return %c0_i32, %c0_i32_0 : i32, i32
  }
  func.func @transform_3(%arg0: i32) -> (i32, i32) {
    %c0_i32 = arith.constant 0 : i32
    %c0_i32_0 = arith.constant 0 : i32
    %c0_i32_1 = arith.constant 0 : i32
    return %c0_i32, %c0_i32_0 : i32, i32
  }
  func.func @transform_4(%arg0: i32) -> (i32, i32) {
    %c0_i32 = arith.constant 0 : i32
    %c0_i32_0 = arith.constant 0 : i32
    %c0_i32_1 = arith.constant 0 : i32
    return %c0_i32, %c0_i32_0 : i32, i32
  }
  func.func @transform_5(%arg0: i32) -> (i32, i32) {
    %c0_i32 = arith.constant 0 : i32
    %c0_i32_0 = arith.constant 0 : i32
    %c0_i32_1 = arith.constant 0 : i32
    return %c0_i32, %c0_i32_0 : i32, i32
  }
  func.func @transform_6(%arg0: i32) -> (i32, i32) {
    %c0_i32 = arith.constant 0 : i32
    %c0_i32_0 = arith.constant 0 : i32
    %c0_i32_1 = arith.constant 0 : i32
    return %c0_i32, %c0_i32_0 : i32, i32
  }
  func.func @transform_7(%arg0: i32) -> (i32, i32) {
    %c0_i32 = arith.constant 0 : i32
    %c0_i32_0 = arith.constant 0 : i32
    %c0_i32_1 = arith.constant 0 : i32
    return %c0_i32, %c0_i32_0 : i32, i32
  }
  func.func @transform_8(%arg0: i32) -> (i32, i32) {
    %c0_i32 = arith.constant 0 : i32
    %c0_i32_0 = arith.constant 0 : i32
    %c0_i32_1 = arith.constant 0 : i32
    return %c0_i32, %c0_i32_0 : i32, i32
  }
  func.func @transform_9(%arg0: i32) -> (i32, i32) {
    %c0_i32 = arith.constant 0 : i32
    %c0_i32_0 = arith.constant 0 : i32
    %c0_i32_1 = arith.constant 0 : i32
    return %c0_i32, %c0_i32_0 : i32, i32
  }
  func.func @transform_10(%arg0: i32) -> (i32, i32) {
    %c0_i32 = arith.constant 0 : i32
    %c0_i32_0 = arith.constant 0 : i32
    %c0_i32_1 = arith.constant 0 : i32
    return %c0_i32, %c0_i32_0 : i32, i32
  }
  func.func @transform_11(%arg0: i32) -> (i32, i32) {
    %c0_i32 = arith.constant 0 : i32
    %c0_i32_0 = arith.constant 0 : i32
    %c0_i32_1 = arith.constant 0 : i32
    return %c0_i32, %c0_i32_0 : i32, i32
  }
  func.func @transform_12(%arg0: i32) -> (i32, i32) {
    %c0_i32 = arith.constant 0 : i32
    %c0_i32_0 = arith.constant 0 : i32
    %c0_i32_1 = arith.constant 0 : i32
    return %c0_i32, %c0_i32_0 : i32, i32
  }
  func.func @transform_13(%arg0: i32) -> (i32, i32) {
    %c0_i32 = arith.constant 0 : i32
    %c0_i32_0 = arith.constant 0 : i32
    %c0_i32_1 = arith.constant 0 : i32
    return %c0_i32, %c0_i32_0 : i32, i32
  }
  func.func @transform_14(%arg0: i32) -> (i32, i32) {
    %c0_i32 = arith.constant 0 : i32
    %c0_i32_0 = arith.constant 0 : i32
    %c0_i32_1 = arith.constant 0 : i32
    return %c0_i32, %c0_i32_0 : i32, i32
  }
  func.func @transform_15(%arg0: i32) -> (i32, i32) {
    %c0_i32 = arith.constant 0 : i32
    %c0_i32_0 = arith.constant 0 : i32
    %c0_i32_1 = arith.constant 0 : i32
    return %c0_i32, %c0_i32_0 : i32, i32
  }
  func.func @transform_16(%arg0: i32) -> (i32, i32) {
    %c0_i32 = arith.constant 0 : i32
    %c0_i32_0 = arith.constant 0 : i32
    %c0_i32_1 = arith.constant 0 : i32
    return %c0_i32, %c0_i32_0 : i32, i32
  }
  func.func @transform_17(%arg0: i32) -> (i32, i32) {
    %c0_i32 = arith.constant 0 : i32
    %c0_i32_0 = arith.constant 0 : i32
    %c0_i32_1 = arith.constant 0 : i32
    return %c0_i32, %c0_i32_0 : i32, i32
  }
  func.func @transform_18(%arg0: i32) -> (i32, i32, i32) {
    %c0_i32 = arith.constant 0 : i32
    %c0_i32_0 = arith.constant 0 : i32
    %c0_i32_1 = arith.constant 0 : i32
    return %arg0, %c0_i32, %c0_i32_0 : i32, i32, i32
  }
}

</mosaic_0001>

<llo_original>
// kernel: decoder_forward.2
$region0: #{decoder_forward.2}
  #allocation0 [shape = 'u32[]', space=smem, size = 0x4, offset = 0x4, fixed_abs, tag = 'smem constant byte address 0x4 - core index']
  #allocation1 [shape = 'u32[144,128]{1,0:T(1,128)}', space=vmem, size = 0x12000, scoped, tag = 'internal scratch']
  #allocation2 [shape = 'f32[8,32]{1,0:T(8,128)}', space=vmem, size = 0x1000, scoped, tag = 'scratch operand']
  %s0 = inlined_call_operand.vmem [shape: f32[2,8,32], index: 0, kind: input, shape index: {}, may-alias: {0,18}]
  %s1 = inlined_call_operand.vmem [shape: f32[2,8,32], index: 1, kind: input, shape index: {}]
  %s2 = inlined_call_operand.vmem [shape: f32[32,96], index: 2, kind: input, shape index: {}]
  %s3 = inlined_call_operand.vmem [shape: f32[32,32], index: 3, kind: input, shape index: {}]
  %s4 = inlined_call_operand.vmem [shape: f32[1,32], index: 4, kind: input, shape index: {}]
  %s5 = inlined_call_operand.vmem [shape: f32[1,32], index: 5, kind: input, shape index: {}]
  %s6 = inlined_call_operand.vmem [shape: f32[1,32], index: 6, kind: input, shape index: {}]
  %s7 = inlined_call_operand.vmem [shape: f32[32,32], index: 7, kind: input, shape index: {}]
  %s8 = inlined_call_operand.vmem [shape: f32[32,32], index: 8, kind: input, shape index: {}]
  %s9 = inlined_call_operand.vmem [shape: f32[1,32], index: 9, kind: input, shape index: {}]
  %s10 = inlined_call_operand.vmem [shape: f32[1,32], index: 10, kind: input, shape index: {}]
  %s11 = inlined_call_operand.vmem [shape: f32[1,32], index: 11, kind: input, shape index: {}]
  %s12 = inlined_call_operand.vmem [shape: f32[32,64], index: 12, kind: input, shape index: {}]
  %s13 = inlined_call_operand.vmem [shape: f32[1,64], index: 13, kind: input, shape index: {}]
  %s14 = inlined_call_operand.vmem [shape: f32[64,32], index: 14, kind: input, shape index: {}]
  %s15 = inlined_call_operand.vmem [shape: f32[1,32], index: 15, kind: input, shape index: {}]
  %s16 = inlined_call_operand.vmem [shape: f32[1,32], index: 16, kind: input, shape index: {}]
  %s17 = inlined_call_operand.vmem [shape: f32[1,32], index: 17, kind: input, shape index: {}]
  %s18 = inlined_call_operand.vmem [shape: f32[2,8,32], index: 18, kind: output, shape index: {}, may-alias: {0,18}]
  %s19 = sld [smem:[#allocation0]]
  $region105: #{decoder_forward.2} parent=0
    _
  %s21 = ssub.s32 1, %s19
  %s22 = scalar_select 0, %s21, %s19
  loop: start=0, step=1, limit=4
  $region2: #{decoder_forward.2} parent=0 // loop_pre_header
    _
  $region3: #{decoder_forward.2} parent=0 // loop_header
    %s24 = sphi 0, %s28
    %p25 = scmp.ge.s32.totalorder %s24, 4
    %s34 = sphi 0, %s36
    %s37 = sphi 0, %s34
    %s38 = sphi 0, %s37
    %s54 = sphi 0, %s38
    %s60 = sphi 0, %s62
    %s63 = sphi 0, %s60
    %s64 = sphi 0, %s63
    %s80 = sphi 0, %s64
    %s84 = sphi 0, %s84
    %s86 = sphi 0, %s84
    %s87 = sphi 0, %s86
    %s101 = sphi 0, %s87
    %s105 = sphi 0, %s105
    %s107 = sphi 0, %s105
    %s108 = sphi 0, %s107
    %s122 = sphi 0, %s108
    %s126 = sphi 0, %s126
    %s128 = sphi 0, %s126
    %s129 = sphi 0, %s128
    %s143 = sphi 0, %s129
    %s147 = sphi 0, %s147
    %s149 = sphi 0, %s147
    %s150 = sphi 0, %s149
    %s164 = sphi 0, %s150
    %s168 = sphi 0, %s168
    %s170 = sphi 0, %s168
    %s171 = sphi 0, %s170
    %s185 = sphi 0, %s171
    %s189 = sphi 0, %s189
    %s191 = sphi 0, %s189
    %s192 = sphi 0, %s191
    %s206 = sphi 0, %s192
    %s210 = sphi 0, %s210
    %s212 = sphi 0, %s210
    %s213 = sphi 0, %s212
    %s227 = sphi 0, %s213
    %s231 = sphi 0, %s231
    %s233 = sphi 0, %s231
    %s234 = sphi 0, %s233
    %s248 = sphi 0, %s234
    %s252 = sphi 0, %s252
    %s254 = sphi 0, %s252
    %s255 = sphi 0, %s254
    %s269 = sphi 0, %s255
    %s273 = sphi 0, %s273
    %s275 = sphi 0, %s273
    %s276 = sphi 0, %s275
    %s290 = sphi 0, %s276
    %s294 = sphi 0, %s294
    %s296 = sphi 0, %s294
    %s297 = sphi 0, %s296
    %s311 = sphi 0, %s297
    %s315 = sphi 0, %s315
    %s317 = sphi 0, %s315
    %s318 = sphi 0, %s317
    %s332 = sphi 0, %s318
    %s336 = sphi 0, %s336
    %s338 = sphi 0, %s336
    %s339 = sphi 0, %s338
    %s353 = sphi 0, %s339
    %s357 = sphi 0, %s357
    %s359 = sphi 0, %s357
    %s360 = sphi 0, %s359
    %s374 = sphi 0, %s360
    %s378 = sphi 0, %s378
    %s380 = sphi 0, %s378
    %s381 = sphi 0, %s380
    %s395 = sphi 0, %s381
    %s399 = sphi 0, %s399
    %s401 = sphi 0, %s399
    %s402 = sphi 0, %s401
    %s416 = sphi 0, %s402
    %s422 = sphi 0, %s424
    %s425 = sphi 0, %s422
    %s426 = sphi 0, %s425
    %s442 = sphi 0, %s426
  $region4: #{decoder_forward.2} parent=0 // loop_header_branch
    %27 = sbr.rel (%p25) target = $region8
  $region5: #{decoder_forward.2} parent=0 // loop_body
    %s29 = ssub.s32 %s24, 1
    %s30 = ssub.s32 %s24, 2
    %s31 = sadd.s32 %s24, 1
    %s32 = ssub.s32 %s24, %s31
    %p33 = scmp.eq.s32.totalorder %s32, 0
    %s35 = sadd.s32 %s34, 1
    %s36 = scalar_select %p33, %s34, %s35
    %p39 = pneg %p33
    %p40 = scmp.eq.s32.totalorder %s24, 1
    %p41 = por %p39, %p40
    %p42 = scmp.ne.s32.totalorder %s34, %s37
    %p43 = scmp.eq.s32.totalorder %s24, 0
    %p44 = por %p42, %p43
    %p45 = scmp.ne.s32.totalorder %s34, %s37
    %p46 = scmp.eq.s32.totalorder %s29, 1
    %p47 = por %p45, %p46
    %p48 = scmp.ne.s32.totalorder %s37, %s38
    %p49 = scmp.eq.s32.totalorder %s29, 0
    %p50 = por %p48, %p49
    %p51 = scmp.ne.s32.totalorder %s37, %s38
    %p52 = scmp.eq.s32.totalorder %s30, 1
    %p53 = por %p51, %p52
    %p55 = scmp.ne.s32.totalorder %s38, %s54
    %p56 = scmp.eq.s32.totalorder %s30, 0
    %p57 = por %p55, %p56
    %s58 = ssub.s32 %s24, %s31
    %p59 = scmp.eq.s32.totalorder %s58, 0
    %s61 = sadd.s32 %s60, 1
    %s62 = scalar_select %p59, %s60, %s61
    %p65 = pneg %p59
    %p66 = scmp.eq.s32.totalorder %s24, 1
    %p67 = por %p65, %p66
    %p68 = scmp.ne.s32.totalorder %s60, %s63
    %p69 = scmp.eq.s32.totalorder %s24, 0
    %p70 = por %p68, %p69
    %p71 = scmp.ne.s32.totalorder %s60, %s63
    %p72 = scmp.eq.s32.totalorder %s29, 1
    %p73 = por %p71, %p72
    %p74 = scmp.ne.s32.totalorder %s63, %s64
    %p75 = scmp.eq.s32.totalorder %s29, 0
    %p76 = por %p74, %p75
    %p77 = scmp.ne.s32.totalorder %s63, %s64
    %p78 = scmp.eq.s32.totalorder %s30, 1
    %p79 = por %p77, %p78
    %p81 = scmp.ne.s32.totalorder %s64, %s80
    %p82 = scmp.eq.s32.totalorder %s30, 0
    %p83 = por %p81, %p82
    %s85 = sadd.s32 %s84, 1
    %p88 = scmp.eq.s32.totalorder %s24, 1
    %p89 = scmp.ne.s32.totalorder %s84, %s86
    %p90 = scmp.eq.s32.totalorder %s24, 0
    %p91 = por %p89, %p90
    %p92 = scmp.ne.s32.totalorder %s84, %s86
    %p93 = scmp.eq.s32.totalorder %s29, 1
    %p94 = por %p92, %p93
    %p95 = scmp.ne.s32.totalorder %s86, %s87
    %p96 = scmp.eq.s32.totalorder %s29, 0
    %p97 = por %p95, %p96
    %p98 = scmp.ne.s32.totalorder %s86, %s87
    %p99 = scmp.eq.s32.totalorder %s30, 1
    %p100 = por %p98, %p99
    %p102 = scmp.ne.s32.totalorder %s87, %s101
    %p103 = scmp.eq.s32.totalorder %s30, 0
    %p104 = por %p102, %p103
    %s106 = sadd.s32 %s105, 1
    %p109 = scmp.eq.s32.totalorder %s24, 1
    %p110 = scmp.ne.s32.totalorder %s105, %s107
    %p111 = scmp.eq.s32.totalorder %s24, 0
    %p112 = por %p110, %p111
    %p113 = scmp.ne.s32.totalorder %s105, %s107
    %p114 = scmp.eq.s32.totalorder %s29, 1
    %p115 = por %p113, %p114
    %p116 = scmp.ne.s32.totalorder %s107, %s108
    %p117 = scmp.eq.s32.totalorder %s29, 0
    %p118 = por %p116, %p117
    %p119 = scmp.ne.s32.totalorder %s107, %s108
    %p120 = scmp.eq.s32.totalorder %s30, 1
    %p121 = por %p119, %p120
    %p123 = scmp.ne.s32.totalorder %s108, %s122
    %p124 = scmp.eq.s32.totalorder %s30, 0
    %p125 = por %p123, %p124
    %s127 = sadd.s32 %s126, 1
    %p130 = scmp.eq.s32.totalorder %s24, 1
    %p131 = scmp.ne.s32.totalorder %s126, %s128
    %p132 = scmp.eq.s32.totalorder %s24, 0
    %p133 = por %p131, %p132
    %p134 = scmp.ne.s32.totalorder %s126, %s128
    %p135 = scmp.eq.s32.totalorder %s29, 1
    %p136 = por %p134, %p135
    %p137 = scmp.ne.s32.totalorder %s128, %s129
    %p138 = scmp.eq.s32.totalorder %s29, 0
    %p139 = por %p137, %p138
    %p140 = scmp.ne.s32.totalorder %s128, %s129
    %p141 = scmp.eq.s32.totalorder %s30, 1
    %p142 = por %p140, %p141
    %p144 = scmp.ne.s32.totalorder %s129, %s143
    %p145 = scmp.eq.s32.totalorder %s30, 0
    %p146 = por %p144, %p145
    %s148 = sadd.s32 %s147, 1
    %p151 = scmp.eq.s32.totalorder %s24, 1
    %p152 = scmp.ne.s32.totalorder %s147, %s149
    %p153 = scmp.eq.s32.totalorder %s24, 0
    %p154 = por %p152, %p153
    %p155 = scmp.ne.s32.totalorder %s147, %s149
    %p156 = scmp.eq.s32.totalorder %s29, 1
    %p157 = por %p155, %p156
    %p158 = scmp.ne.s32.totalorder %s149, %s150
    %p159 = scmp.eq.s32.totalorder %s29, 0
    %p160 = por %p158, %p159
    %p161 = scmp.ne.s32.totalorder %s149, %s150
    %p162 = scmp.eq.s32.totalorder %s30, 1
    %p163 = por %p161, %p162
    %p165 = scmp.ne.s32.totalorder %s150, %s164
    %p166 = scmp.eq.s32.totalorder %s30, 0
    %p167 = por %p165, %p166
    %s169 = sadd.s32 %s168, 1
    %p172 = scmp.eq.s32.totalorder %s24, 1
    %p173 = scmp.ne.s32.totalorder %s168, %s170
    %p174 = scmp.eq.s32.totalorder %s24, 0
    %p175 = por %p173, %p174
    %p176 = scmp.ne.s32.totalorder %s168, %s170
    %p177 = scmp.eq.s32.totalorder %s29, 1
    %p178 = por %p176, %p177
    %p179 = scmp.ne.s32.totalorder %s170, %s171
    %p180 = scmp.eq.s32.totalorder %s29, 0
    %p181 = por %p179, %p180
    %p182 = scmp.ne.s32.totalorder %s170, %s171
    %p183 = scmp.eq.s32.totalorder %s30, 1
    %p184 = por %p182, %p183
    %p186 = scmp.ne.s32.totalorder %s171, %s185
    %p187 = scmp.eq.s32.totalorder %s30, 0
    %p188 = por %p186, %p187
    %s190 = sadd.s32 %s189, 1
    %p193 = scmp.eq.s32.totalorder %s24, 1
    %p194 = scmp.ne.s32.totalorder %s189, %s191
    %p195 = scmp.eq.s32.totalorder %s24, 0
    %p196 = por %p194, %p195
    %p197 = scmp.ne.s32.totalorder %s189, %s191
    %p198 = scmp.eq.s32.totalorder %s29, 1
    %p199 = por %p197, %p198
    %p200 = scmp.ne.s32.totalorder %s191, %s192
    %p201 = scmp.eq.s32.totalorder %s29, 0
    %p202 = por %p200, %p201
    %p203 = scmp.ne.s32.totalorder %s191, %s192
    %p204 = scmp.eq.s32.totalorder %s30, 1
    %p205 = por %p203, %p204
    %p207 = scmp.ne.s32.totalorder %s192, %s206
    %p208 = scmp.eq.s32.totalorder %s30, 0
    %p209 = por %p207, %p208
    %s211 = sadd.s32 %s210, 1
    %p214 = scmp.eq.s32.totalorder %s24, 1
    %p215 = scmp.ne.s32.totalorder %s210, %s212
    %p216 = scmp.eq.s32.totalorder %s24, 0
    %p217 = por %p215, %p216
    %p218 = scmp.ne.s32.totalorder %s210, %s212
    %p219 = scmp.eq.s32.totalorder %s29, 1
    %p220 = por %p218, %p219
    %p221 = scmp.ne.s32.totalorder %s212, %s213
    %p222 = scmp.eq.s32.totalorder %s29, 0
    %p223 = por %p221, %p222
    %p224 = scmp.ne.s32.totalorder %s212, %s213
    %p225 = scmp.eq.s32.totalorder %s30, 1
    %p226 = por %p224, %p225
    %p228 = scmp.ne.s32.totalorder %s213, %s227
    %p229 = scmp.eq.s32.totalorder %s30, 0
    %p230 = por %p228, %p229
    %s232 = sadd.s32 %s231, 1
    %p235 = scmp.eq.s32.totalorder %s24, 1
    %p236 = scmp.ne.s32.totalorder %s231, %s233
    %p237 = scmp.eq.s32.totalorder %s24, 0
    %p238 = por %p236, %p237
    %p239 = scmp.ne.s32.totalorder %s231, %s233
    %p240 = scmp.eq.s32.totalorder %s29, 1
    %p241 = por %p239, %p240
    %p242 = scmp.ne.s32.totalorder %s233, %s234
    %p243 = scmp.eq.s32.totalorder %s29, 0
    %p244 = por %p242, %p243
    %p245 = scmp.ne.s32.totalorder %s233, %s234
    %p246 = scmp.eq.s32.totalorder %s30, 1
    %p247 = por %p245, %p246
    %p249 = scmp.ne.s32.totalorder %s234, %s248
    %p250 = scmp.eq.s32.totalorder %s30, 0
    %p251 = por %p249, %p250
    %s253 = sadd.s32 %s252, 1
    %p256 = scmp.eq.s32.totalorder %s24, 1
    %p257 = scmp.ne.s32.totalorder %s252, %s254
    %p258 = scmp.eq.s32.totalorder %s24, 0
    %p259 = por %p257, %p258
    %p260 = scmp.ne.s32.totalorder %s252, %s254
    %p261 = scmp.eq.s32.totalorder %s29, 1
    %p262 = por %p260, %p261
    %p263 = scmp.ne.s32.totalorder %s254, %s255
    %p264 = scmp.eq.s32.totalorder %s29, 0
    %p265 = por %p263, %p264
    %p266 = scmp.ne.s32.totalorder %s254, %s255
    %p267 = scmp.eq.s32.totalorder %s30, 1
    %p268 = por %p266, %p267
    %p270 = scmp.ne.s32.totalorder %s255, %s269
    %p271 = scmp.eq.s32.totalorder %s30, 0
    %p272 = por %p270, %p271
    %s274 = sadd.s32 %s273, 1
    %p277 = scmp.eq.s32.totalorder %s24, 1
    %p278 = scmp.ne.s32.totalorder %s273, %s275
    %p279 = scmp.eq.s32.totalorder %s24, 0
    %p280 = por %p278, %p279
    %p281 = scmp.ne.s32.totalorder %s273, %s275
    %p282 = scmp.eq.s32.totalorder %s29, 1
    %p283 = por %p281, %p282
    %p284 = scmp.ne.s32.totalorder %s275, %s276
    %p285 = scmp.eq.s32.totalorder %s29, 0
    %p286 = por %p284, %p285
    %p287 = scmp.ne.s32.totalorder %s275, %s276
    %p288 = scmp.eq.s32.totalorder %s30, 1
    %p289 = por %p287, %p288
    %p291 = scmp.ne.s32.totalorder %s276, %s290
    %p292 = scmp.eq.s32.totalorder %s30, 0
    %p293 = por %p291, %p292
    %s295 = sadd.s32 %s294, 1
    %p298 = scmp.eq.s32.totalorder %s24, 1
    %p299 = scmp.ne.s32.totalorder %s294, %s296
    %p300 = scmp.eq.s32.totalorder %s24, 0
    %p301 = por %p299, %p300
    %p302 = scmp.ne.s32.totalorder %s294, %s296
    %p303 = scmp.eq.s32.totalorder %s29, 1
    %p304 = por %p302, %p303
    %p305 = scmp.ne.s32.totalorder %s296, %s297
    %p306 = scmp.eq.s32.totalorder %s29, 0
    %p307 = por %p305, %p306
    %p308 = scmp.ne.s32.totalorder %s296, %s297
    %p309 = scmp.eq.s32.totalorder %s30, 1
    %p310 = por %p308, %p309
    %p312 = scmp.ne.s32.totalorder %s297, %s311
    %p313 = scmp.eq.s32.totalorder %s30, 0
    %p314 = por %p312, %p313
    %s316 = sadd.s32 %s315, 1
    %p319 = scmp.eq.s32.totalorder %s24, 1
    %p320 = scmp.ne.s32.totalorder %s315, %s317
    %p321 = scmp.eq.s32.totalorder %s24, 0
    %p322 = por %p320, %p321
    %p323 = scmp.ne.s32.totalorder %s315, %s317
    %p324 = scmp.eq.s32.totalorder %s29, 1
    %p325 = por %p323, %p324
    %p326 = scmp.ne.s32.totalorder %s317, %s318
    %p327 = scmp.eq.s32.totalorder %s29, 0
    %p328 = por %p326, %p327
    %p329 = scmp.ne.s32.totalorder %s317, %s318
    %p330 = scmp.eq.s32.totalorder %s30, 1
    %p331 = por %p329, %p330
    %p333 = scmp.ne.s32.totalorder %s318, %s332
    %p334 = scmp.eq.s32.totalorder %s30, 0
    %p335 = por %p333, %p334
    %s337 = sadd.s32 %s336, 1
    %p340 = scmp.eq.s32.totalorder %s24, 1
    %p341 = scmp.ne.s32.totalorder %s336, %s338
    %p342 = scmp.eq.s32.totalorder %s24, 0
    %p343 = por %p341, %p342
    %p344 = scmp.ne.s32.totalorder %s336, %s338
    %p345 = scmp.eq.s32.totalorder %s29, 1
    %p346 = por %p344, %p345
    %p347 = scmp.ne.s32.totalorder %s338, %s339
    %p348 = scmp.eq.s32.totalorder %s29, 0
    %p349 = por %p347, %p348
    %p350 = scmp.ne.s32.totalorder %s338, %s339
    %p351 = scmp.eq.s32.totalorder %s30, 1
    %p352 = por %p350, %p351
    %p354 = scmp.ne.s32.totalorder %s339, %s353
    %p355 = scmp.eq.s32.totalorder %s30, 0
    %p356 = por %p354, %p355
    %s358 = sadd.s32 %s357, 1
    %p361 = scmp.eq.s32.totalorder %s24, 1
    %p362 = scmp.ne.s32.totalorder %s357, %s359
    %p363 = scmp.eq.s32.totalorder %s24, 0
    %p364 = por %p362, %p363
    %p365 = scmp.ne.s32.totalorder %s357, %s359
    %p366 = scmp.eq.s32.totalorder %s29, 1
    %p367 = por %p365, %p366
    %p368 = scmp.ne.s32.totalorder %s359, %s360
    %p369 = scmp.eq.s32.totalorder %s29, 0
    %p370 = por %p368, %p369
    %p371 = scmp.ne.s32.totalorder %s359, %s360
    %p372 = scmp.eq.s32.totalorder %s30, 1
    %p373 = por %p371, %p372
    %p375 = scmp.ne.s32.totalorder %s360, %s374
    %p376 = scmp.eq.s32.totalorder %s30, 0
    %p377 = por %p375, %p376
    %s379 = sadd.s32 %s378, 1
    %p382 = scmp.eq.s32.totalorder %s24, 1
    %p383 = scmp.ne.s32.totalorder %s378, %s380
    %p384 = scmp.eq.s32.totalorder %s24, 0
    %p385 = por %p383, %p384
    %p386 = scmp.ne.s32.totalorder %s378, %s380
    %p387 = scmp.eq.s32.totalorder %s29, 1
    %p388 = por %p386, %p387
    %p389 = scmp.ne.s32.totalorder %s380, %s381
    %p390 = scmp.eq.s32.totalorder %s29, 0
    %p391 = por %p389, %p390
    %p392 = scmp.ne.s32.totalorder %s380, %s381
    %p393 = scmp.eq.s32.totalorder %s30, 1
    %p394 = por %p392, %p393
    %p396 = scmp.ne.s32.totalorder %s381, %s395
    %p397 = scmp.eq.s32.totalorder %s30, 0
    %p398 = por %p396, %p397
    %s400 = sadd.s32 %s399, 1
    %p403 = scmp.eq.s32.totalorder %s24, 1
    %p404 = scmp.ne.s32.totalorder %s399, %s401
    %p405 = scmp.eq.s32.totalorder %s24, 0
    %p406 = por %p404, %p405
    %p407 = scmp.ne.s32.totalorder %s399, %s401
    %p408 = scmp.eq.s32.totalorder %s29, 1
    %p409 = por %p407, %p408
    %p410 = scmp.ne.s32.totalorder %s401, %s402
    %p411 = scmp.eq.s32.totalorder %s29, 0
    %p412 = por %p410, %p411
    %p413 = scmp.ne.s32.totalorder %s401, %s402
    %p414 = scmp.eq.s32.totalorder %s30, 1
    %p415 = por %p413, %p414
    %p417 = scmp.ne.s32.totalorder %s402, %s416
    %p418 = scmp.eq.s32.totalorder %s30, 0
    %p419 = por %p417, %p418
    %s420 = ssub.s32 %s24, %s31
    %p421 = scmp.eq.s32.totalorder %s420, 0
    %s423 = sadd.s32 %s422, 1
    %s424 = scalar_select %p421, %s422, %s423
    %p427 = pneg %p421
    %p428 = scmp.eq.s32.totalorder %s24, 1
    %p429 = por %p427, %p428
    %p430 = scmp.ne.s32.totalorder %s422, %s425
    %p431 = scmp.eq.s32.totalorder %s24, 0
    %p432 = por %p430, %p431
    %p433 = scmp.ne.s32.totalorder %s422, %s425
    %p434 = scmp.eq.s32.totalorder %s29, 1
    %p435 = por %p433, %p434
    %p436 = scmp.ne.s32.totalorder %s425, %s426
    %p437 = scmp.eq.s32.totalorder %s29, 0
    %p438 = por %p436, %p437
    %p439 = scmp.ne.s32.totalorder %s425, %s426
    %p440 = scmp.eq.s32.totalorder %s30, 1
    %p441 = por %p439, %p440
    %p443 = scmp.ne.s32.totalorder %s426, %s442
    %p444 = scmp.eq.s32.totalorder %s30, 0
    %p445 = por %p443, %p444
    %p446 = scmp.le.s32.totalorder 1, %s24
    %p447 = scmp.lt.s32.totalorder %s24, 3
    %p448 = pnand %p446, %p447
    %p449 = pneg %p448
    // Predicated region
    $region9: #{decoder_forward.2} parent=5 // pred_check
      _
    $region10: #{decoder_forward.2} parent=5 // pred_check_branch
      %451 = sbr.rel (%p448) target = $region12
    $region11: #{decoder_forward.2} parent=5 // pred_region
      %s452 = ssub.s32 %s24, 1
      // Predicated region
      $region13: #{decoder_forward.2} parent=11 // pred_check
        %p453 = pneg %p97
      $region14: #{decoder_forward.2} parent=11 // pred_check_branch
        %455 = sbr.rel (%p453) target = $region16
      $region15: #{decoder_forward.2} parent=11 // pred_region
        _
      $region16: #{decoder_forward.2} parent=11 // pred_fallthru
        _
      // Predicated region
      $region17: #{decoder_forward.2} parent=11 // pred_check
        %p456 = pneg %p118
      $region18: #{decoder_forward.2} parent=11 // pred_check_branch
        %458 = sbr.rel (%p456) target = $region20
      $region19: #{decoder_forward.2} parent=11 // pred_region
        _
      $region20: #{decoder_forward.2} parent=11 // pred_fallthru
        _
      // Predicated region
      $region21: #{decoder_forward.2} parent=11 // pred_check
        %p459 = pneg %p139
      $region22: #{decoder_forward.2} parent=11 // pred_check_branch
        %461 = sbr.rel (%p459) target = $region24
      $region23: #{decoder_forward.2} parent=11 // pred_region
        _
      $region24: #{decoder_forward.2} parent=11 // pred_fallthru
        _
      // Predicated region
      $region25: #{decoder_forward.2} parent=11 // pred_check
        %p462 = pneg %p160
      $region26: #{decoder_forward.2} parent=11 // pred_check_branch
        %464 = sbr.rel (%p462) target = $region28
      $region27: #{decoder_forward.2} parent=11 // pred_region
        _
      $region28: #{decoder_forward.2} parent=11 // pred_fallthru
        _
      // Predicated region
      $region29: #{decoder_forward.2} parent=11 // pred_check
        %p465 = pneg %p181
      $region30: #{decoder_forward.2} parent=11 // pred_check_branch
        %467 = sbr.rel (%p465) target = $region32
      $region31: #{decoder_forward.2} parent=11 // pred_region
        _
      $region32: #{decoder_forward.2} parent=11 // pred_fallthru
        _
      // Predicated region
      $region33: #{decoder_forward.2} parent=11 // pred_check
        %p468 = pneg %p202
      $region34: #{decoder_forward.2} parent=11 // pred_check_branch
        %470 = sbr.rel (%p468) target = $region36
      $region35: #{decoder_forward.2} parent=11 // pred_region
        _
      $region36: #{decoder_forward.2} parent=11 // pred_fallthru
        _
      // Predicated region
      $region37: #{decoder_forward.2} parent=11 // pred_check
        %p471 = pneg %p223
      $region38: #{decoder_forward.2} parent=11 // pred_check_branch
        %473 = sbr.rel (%p471) target = $region40
      $region39: #{decoder_forward.2} parent=11 // pred_region
        _
      $region40: #{decoder_forward.2} parent=11 // pred_fallthru
        _
      // Predicated region
      $region41: #{decoder_forward.2} parent=11 // pred_check
        %p474 = pneg %p244
      $region42: #{decoder_forward.2} parent=11 // pred_check_branch
        %476 = sbr.rel (%p474) target = $region44
      $region43: #{decoder_forward.2} parent=11 // pred_region
        _
      $region44: #{decoder_forward.2} parent=11 // pred_fallthru
        _
      // Predicated region
      $region45: #{decoder_forward.2} parent=11 // pred_check
        %p477 = pneg %p265
      $region46: #{decoder_forward.2} parent=11 // pred_check_branch
        %479 = sbr.rel (%p477) target = $region48
      $region47: #{decoder_forward.2} parent=11 // pred_region
        _
      $region48: #{decoder_forward.2} parent=11 // pred_fallthru
        _
      // Predicated region
      $region49: #{decoder_forward.2} parent=11 // pred_check
        %p480 = pneg %p286
      $region50: #{decoder_forward.2} parent=11 // pred_check_branch
        %482 = sbr.rel (%p480) target = $region52
      $region51: #{decoder_forward.2} parent=11 // pred_region
        _
      $region52: #{decoder_forward.2} parent=11 // pred_fallthru
        _
      // Predicated region
      $region53: #{decoder_forward.2} parent=11 // pred_check
        %p483 = pneg %p307
      $region54: #{decoder_forward.2} parent=11 // pred_check_branch
        %485 = sbr.rel (%p483) target = $region56
      $region55: #{decoder_forward.2} parent=11 // pred_region
        _
      $region56: #{decoder_forward.2} parent=11 // pred_fallthru
        _
      // Predicated region
      $region57: #{decoder_forward.2} parent=11 // pred_check
        %p486 = pneg %p328
      $region58: #{decoder_forward.2} parent=11 // pred_check_branch
        %488 = sbr.rel (%p486) target = $region60
      $region59: #{decoder_forward.2} parent=11 // pred_region
        _
      $region60: #{decoder_forward.2} parent=11 // pred_fallthru
        _
      // Predicated region
      $region61: #{decoder_forward.2} parent=11 // pred_check
        %p489 = pneg %p349
      $region62: #{decoder_forward.2} parent=11 // pred_check_branch
        %491 = sbr.rel (%p489) target = $region64
      $region63: #{decoder_forward.2} parent=11 // pred_region
        _
      $region64: #{decoder_forward.2} parent=11 // pred_fallthru
        _
      // Predicated region
      $region65: #{decoder_forward.2} parent=11 // pred_check
        %p492 = pneg %p370
      $region66: #{decoder_forward.2} parent=11 // pred_check_branch
        %494 = sbr.rel (%p492) target = $region68
      $region67: #{decoder_forward.2} parent=11 // pred_region
        _
      $region68: #{decoder_forward.2} parent=11 // pred_fallthru
        _
      // Predicated region
      $region69: #{decoder_forward.2} parent=11 // pred_check
        %p495 = pneg %p391
      $region70: #{decoder_forward.2} parent=11 // pred_check_branch
        %497 = sbr.rel (%p495) target = $region72
      $region71: #{decoder_forward.2} parent=11 // pred_region
        _
      $region72: #{decoder_forward.2} parent=11 // pred_fallthru
        _
      // Predicated region
      $region73: #{decoder_forward.2} parent=11 // pred_check
        %p498 = pneg %p412
      $region74: #{decoder_forward.2} parent=11 // pred_check_branch
        %500 = sbr.rel (%p498) target = $region76
      $region75: #{decoder_forward.2} parent=11 // pred_region
        _
      $region76: #{decoder_forward.2} parent=11 // pred_fallthru
        _
    $region12: #{decoder_forward.2} parent=5 // pred_fallthru
      _
    %p501 = scmp.lt.s32.totalorder %s24, 2
    // Predicated region
    $region77: #{decoder_forward.2} parent=5 // pred_check
      %p502 = pneg %p501
    $region78: #{decoder_forward.2} parent=5 // pred_check_branch
      %504 = sbr.rel (%p502) target = $region80
    $region79: #{decoder_forward.2} parent=5 // pred_region
      // Predicated region
      $region81: #{decoder_forward.2} parent=79 // pred_check
        %p505 = pneg %p44
      $region82: #{decoder_forward.2} parent=79 // pred_check_branch
        %507 = sbr.rel (%p505) target = $region84
      $region83: #{decoder_forward.2} parent=79 // pred_region
        %p508 = scmp.lt.s32.totalorder %s24, 1
        %s509 = scalar_select %p508, %s24, 1
        %s510 = smul.addr %s509, 8
        %s511 = scalar_lea.vmem %s0, %s510
      $region84: #{decoder_forward.2} parent=79 // pred_fallthru
        _
      // Predicated region
      $region85: #{decoder_forward.2} parent=79 // pred_check
        %p512 = pneg %p70
      $region86: #{decoder_forward.2} parent=79 // pred_check_branch
        %514 = sbr.rel (%p512) target = $region88
      $region87: #{decoder_forward.2} parent=79 // pred_region
        %p515 = scmp.lt.s32.totalorder %s24, 1
        %s516 = scalar_select %p515, %s24, 1
        %s517 = smul.addr %s516, 8
        %s518 = scalar_lea.vmem %s1, %s517
      $region88: #{decoder_forward.2} parent=79 // pred_fallthru
        _
    $region80: #{decoder_forward.2} parent=5 // pred_fallthru
      _
    %p519 = scmp.le.s32.totalorder 1, %s24
    %p520 = scmp.lt.s32.totalorder %s24, 3
    %p521 = pnand %p519, %p520
    %p522 = pneg %p521
    // Predicated region
    $region89: #{decoder_forward.2} parent=5 // pred_check
      _
    $region90: #{decoder_forward.2} parent=5 // pred_check_branch
      %524 = sbr.rel (%p521) target = $region92
    $region91: #{decoder_forward.2} parent=5 // pred_region
      %s525 = ssub.s32 %s24, 1
      %p526 = scmp.lt.s32.totalorder %s29, 1
      %s527 = scalar_select %p526, %s29, 1
      %s528 = smul.addr %s527, 8
      %s529 = scalar_lea.vmem %s0, %s528
      %p530 = pneg %p50
      %p531 = pneg %p47
      %p532 = scmp.lt.s32.totalorder %s29, 1
      %s533 = scalar_select %p532, %s29, 1
      %s534 = smul.addr %s533, 8
      %s535 = scalar_lea.vmem %s1, %s534
      %p536 = pneg %p76
      %p537 = pneg %p73
      %p538 = pneg %p97
      %p539 = pneg %p94
      %p540 = pneg %p118
      %p541 = pneg %p115
      %p542 = pneg %p139
      %p543 = pneg %p136
      %p544 = pneg %p160
      %p545 = pneg %p157
      %p546 = pneg %p181
      %p547 = pneg %p178
      %p548 = pneg %p202
      %p549 = pneg %p199
      %p550 = pneg %p223
      %p551 = pneg %p220
      %p552 = pneg %p244
      %p553 = pneg %p241
      %p554 = pneg %p265
      %p555 = pneg %p262
      %p556 = pneg %p286
      %p557 = pneg %p283
      %p558 = pneg %p307
      %p559 = pneg %p304
      %p560 = pneg %p328
      %p561 = pneg %p325
      %p562 = pneg %p349
      %p563 = pneg %p346
      %p564 = pneg %p370
      %p565 = pneg %p367
      %p566 = pneg %p391
      %p567 = pneg %p388
      %p568 = pneg %p412
      %p569 = pneg %p409
      %p570 = pneg %p438
      %p571 = pneg %p435
      %p572 = scmp.lt.s32.totalorder %s29, 1
      %s573 = scalar_select %p572, %s29, 1
      %s574 = smul.addr %s573, 8
      %s575 = scalar_lea.vmem %s18, %s574
      %p576 = scmp.lt.s32.totalorder %s29, 1
      %s577 = scalar_select %p576, %s29, 1
      %s578 = smul.addr %s577, 8
      %s579 = scalar_lea.vmem %s0, %s578
      %p580 = scmp.lt.s32.totalorder %s29, 1
      %s581 = scalar_select %p580, %s29, 1
      %s582 = smul.addr %s581, 8
      %s583 = scalar_lea.vmem %s1, %s582
      %p584 = scmp.lt.s32.totalorder %s29, 1
      %s585 = scalar_select %p584, %s29, 1
      %s586 = smul.addr %s585, 8
      %s587 = scalar_lea.vmem %s18, %s586
      %v588 = vld [vmem:[%s579] sm:$0xff]
      %v589 = vld [vmem:[%s5] sm:$0x1]
      %v590 = vld [vmem:[%s6] sm:$0x1]
      %vm591 = vcmask 261120
      %v592 = vsel %vm591, %v588, 0.0
      %593 = vadd.xlane.f32.xlu0 %v592
      %v594 = vpop.xlane.xlu0 %593
      %v595 = vrcp.pop 32.0
      %v596 = vmul.f32 %v594, %v595
      %v597 = vsub.f32 %v588, %v596
      %v598 = vmul.f32 %v597, %v597
      %v599 = vsel %vm591, %v598, 0.0
      %600 = vadd.xlane.f32.xlu0 %v599
      %v601 = vpop.xlane.xlu0 %600
      %v602 = vmul.f32 %v601, %v595
      %v603 = vadd.f32 %v602, 1e-05
      %v604 = vrsqrt.pop %v603
      %v605 = vmul.f32 %v597, %v604
      %v607 = vlaneseq
      %v608 = vshrl.u32 %v607, 7
      %v609 = vsub.s32 0, %v608
      %v610 = vrot.slane %v589, %v609
      %v612 = vmul.f32 %v605, %v610
      %v614 = vlaneseq
      %v615 = vshrl.u32 %v614, 7
      %v616 = vsub.s32 0, %v615
      %v617 = vrot.slane %v590, %v616
      %v619 = vadd.f32 %v612, %v617
      %v620 = vld [vmem:[%s2] sm:$0xff]
      %v621 = vld [vmem:[%s2 + $0x8] sm:$0xff]
      %v622 = vld [vmem:[%s2 + $0x10] sm:$0xff]
      %v623 = vld [vmem:[%s2 + $0x18] sm:$0xff]
      %v625 = vsel %vm591, %v619, 0
      %627 = vmatprep.subr.mxu0 0.0
      %628 = vmatpush1.msra.mxu0 %v620
      %629 = vmatprep.subr.mxu0 0.0
      %630 = vmatpush1.msra.mxu0 %v621
      %631 = vmatprep.subr.mxu0 0.0
      %632 = vmatpush1.msra.mxu0 %v622
      %633 = vmatprep.subr.mxu0 0.0
      %634 = vmatpush1.msra.mxu0 %v623
      %635 = vmatprep.subr.mxu0 0.0
      %636 = vmatpush1.msra.mxu0 0.0
      %637 = vmatprep.subr.mxu0 0.0
      %638 = vmatpush1.msra.mxu0 0.0
      %639 = vmatprep.subr.mxu0 0.0
      %640 = vmatpush1.msra.mxu0 0.0
      %641 = vmatprep.subr.mxu0 0.0
      %642 = vmatpush1.msra.mxu0 0.0
      %643 = vmatprep.subr.mxu0 0.0
      %644 = vmatpush1.msra.mxu0 0.0
      %645 = vmatprep.subr.mxu0 0.0
      %646 = vmatpush1.msra.mxu0 0.0
      %647 = vmatprep.subr.mxu0 0.0
      %648 = vmatpush1.msra.mxu0 0.0
      %649 = vmatprep.subr.mxu0 0.0
      %650 = vmatpush1.msra.mxu0 0.0
      %651 = vmatprep.subr.mxu0 0.0
      %652 = vmatpush1.msra.mxu0 0.0
      %653 = vmatprep.subr.mxu0 0.0
      %654 = vmatpush1.msra.mxu0 0.0
      %655 = vmatprep.subr.mxu0 0.0
      %656 = vmatpush1.msra.mxu0 0.0
      %657 = vmatprep.subr.mxu0 0.0
      %658 = vmatpush1.msra.mxu0 0.0
      %659 = vmatprep.subr.mxu0 0.0
      %660 = vmatpush1.msra.mxu0 0.0
      %661 = vmatprep.subr.mxu0 0.0
      %662 = vmatpush1.msra.mxu0 0.0
      %663 = vmatprep.subr.mxu0 0.0
      %664 = vmatpush1.msra.mxu0 0.0
      %665 = vmatprep.subr.mxu0 0.0
      %666 = vmatpush1.msra.mxu0 0.0
      %667 = vmatprep.subr.mxu0 0.0
      %668 = vmatpush1.msra.mxu0 0.0
      %669 = vmatprep.subr.mxu0 0.0
      %670 = vmatpush1.msra.mxu0 0.0
      %671 = vmatprep.subr.mxu0 0.0
      %672 = vmatpush1.msra.mxu0 0.0
      %673 = vmatprep.subr.mxu0 0.0
      %674 = vmatpush1.msra.mxu0 0.0
      %675 = vmatprep.subr.mxu0 0.0
      %676 = vmatpush1.msra.mxu0 0.0
      %677 = vmatprep.subr.mxu0 0.0
      %678 = vmatpush1.msra.mxu0 0.0
      %679 = vmatprep.subr.mxu0 0.0
      %680 = vmatpush1.msra.mxu0 0.0
      %681 = vmatprep.subr.mxu0 0.0
      %682 = vmatpush1.msra.mxu0 0.0
      %683 = vmatprep.subr.mxu0 0.0
      %684 = vmatpush1.msra.mxu0 0.0
      %685 = vmatprep.subr.mxu0 0.0
      %686 = vmatpush1.msra.mxu0 0.0
      %687 = vmatprep.subr.mxu0 0.0
      %688 = vmatpush1.msra.mxu0 0.0
      %689 = vmatprep.subr.mxu0 0.0
      %690 = vmatpush1.msra.mxu0 0.0
      %691 = vmatprep.mubr.f32.mxu0 0.0
      %692 = vmatmul.mubr.f32.gmra.mrb[0].mxu0 %v625
      %v693 = vpop.f32.mrb[0].mxu0
      %v694 = vadd.f32 0.0, %v693
      %v695 = vpop.f32.mrb[0].mxu0
      %696 = vdwg.mxu0
      %v697 = vmul.f32 %v694, 0.25
      %v698 = vlaneseq
      %v699 = vshrl.u32 %v698, 7
      %v700 = vlaneseq
      %v701 = vand.u32 %v700, 127
      %vm702 = vcmp.ge.s32.totalorder %v699, %v701
      %704 = vrot.lane.b32.xlu0 %v694, 96
      %v705 = vpop.permute.xlu0 %704
      %vm706 = vcmask 130048
      %v708 = vsel %vm706, %v697, 0
      %v710 = vsel %vm706, %v705, 0
      %712 = vmatprep.subr.mxu0 0.0
      %713 = vmatpush1.xpose.msra.mxu0 %v710
      %714 = vmatprep.subr.mxu0 0.0
      %715 = vmatpush1.xpose.msra.mxu0 0.0
      %716 = vmatprep.subr.mxu0 0.0
      %717 = vmatpush1.xpose.msra.mxu0 0.0
      %718 = vmatprep.subr.mxu0 0.0
      %719 = vmatpush1.xpose.msra.mxu0 0.0
      %720 = vmatprep.subr.mxu0 0.0
      %721 = vmatpush1.xpose.msra.mxu0 0.0
      %722 = vmatprep.subr.mxu0 0.0
      %723 = vmatpush1.xpose.msra.mxu0 0.0
      %724 = vmatprep.subr.mxu0 0.0
      %725 = vmatpush1.xpose.msra.mxu0 0.0
      %726 = vmatprep.subr.mxu0 0.0
      %727 = vmatpush1.xpose.msra.mxu0 0.0
      %728 = vmatprep.subr.mxu0 0.0
      %729 = vmatpush1.xpose.msra.mxu0 0.0
      %730 = vmatprep.subr.mxu0 0.0
      %731 = vmatpush1.xpose.msra.mxu0 0.0
      %732 = vmatprep.subr.mxu0 0.0
      %733 = vmatpush1.xpose.msra.mxu0 0.0
      %734 = vmatprep.subr.mxu0 0.0
      %735 = vmatpush1.xpose.msra.mxu0 0.0
      %736 = vmatprep.subr.mxu0 0.0
      %737 = vmatpush1.xpose.msra.mxu0 0.0
      %738 = vmatprep.subr.mxu0 0.0
      %739 = vmatpush1.xpose.msra.mxu0 0.0
      %740 = vmatprep.subr.mxu0 0.0
      %741 = vmatpush1.xpose.msra.mxu0 0.0
      %742 = vmatprep.subr.mxu0 0.0
      %743 = vmatpush1.xpose.msra.mxu0 0.0
      %744 = vmatprep.subr.mxu0 0.0
      %745 = vmatpush1.xpose.msra.mxu0 0.0
      %746 = vmatprep.subr.mxu0 0.0
      %747 = vmatpush1.xpose.msra.mxu0 0.0
      %748 = vmatprep.subr.mxu0 0.0
      %749 = vmatpush1.xpose.msra.mxu0 0.0
      %750 = vmatprep.subr.mxu0 0.0
      %751 = vmatpush1.xpose.msra.mxu0 0.0
      %752 = vmatprep.subr.mxu0 0.0
      %753 = vmatpush1.xpose.msra.mxu0 0.0
      %754 = vmatprep.subr.mxu0 0.0
      %755 = vmatpush1.xpose.msra.mxu0 0.0
      %756 = vmatprep.subr.mxu0 0.0
      %757 = vmatpush1.xpose.msra.mxu0 0.0
      %758 = vmatprep.subr.mxu0 0.0
      %759 = vmatpush1.xpose.msra.mxu0 0.0
      %760 = vmatprep.subr.mxu0 0.0
      %761 = vmatpush1.xpose.msra.mxu0 0.0
      %762 = vmatprep.subr.mxu0 0.0
      %763 = vmatpush1.xpose.msra.mxu0 0.0
      %764 = vmatprep.subr.mxu0 0.0
      %765 = vmatpush1.xpose.msra.mxu0 0.0
      %766 = vmatprep.subr.mxu0 0.0
      %767 = vmatpush1.xpose.msra.mxu0 0.0
      %768 = vmatprep.subr.mxu0 0.0
      %769 = vmatpush1.xpose.msra.mxu0 0.0
      %770 = vmatprep.subr.mxu0 0.0
      %771 = vmatpush1.xpose.msra.mxu0 0.0
      %772 = vmatprep.subr.mxu0 0.0
      %773 = vmatpush1.xpose.msra.mxu0 0.0
      %774 = vmatprep.subr.mxu0 0.0
      %775 = vmatpush1.xpose.msra.mxu0 0.0
      %776 = vmatprep.mubr.f32.mxu0 0.0
      %777 = vmatmul.mubr.f32.gmra.mrb[0].mxu0 %v708
      %v778 = vpop.f32.mrb[0].mxu0
      %v779 = vadd.f32 0.0, %v778
      %v780 = vpop.f32.mrb[0].mxu0
      %781 = vdwg.mxu0
      %v782 = vsel %vm702, %v779, -1e+30
      %vm783 = vcmask 64512
      %v784 = vsel %vm783, %v782, -inf
      %785 = vmax.xlane.f32.xlu0 %v784
      %v786 = vpop.xlane.xlu0 %785
      %v787 = vsub.f32 %v782, %v786
      %v788 = vmul.f32 %v787, 1.442695
      %v789 = vpow.pop %v788
      %v790 = vsel %vm783, %v789, 0.0
      %791 = vadd.xlane.f32.xlu0 %v790
      %v792 = vpop.xlane.xlu0 %791
      %v793 = vrcp.pop %v792
      %v794 = vmul.f32 %v789, %v793
      %795 = vrot.lane.b32.xlu0 %v694, 64
      %v796 = vpop.permute.xlu0 %795
      %v799 = vsel %vm783, %v794, 0
      %801 = vmatprep.subr.mxu0 0.0
      %802 = vmatpush1.msra.mxu0 %v796
      %803 = vmatprep.subr.mxu0 0.0
      %804 = vmatpush1.msra.mxu0 0.0
      %805 = vmatprep.subr.mxu0 0.0
      %806 = vmatpush1.msra.mxu0 0.0
      %807 = vmatprep.subr.mxu0 0.0
      %808 = vmatpush1.msra.mxu0 0.0
      %809 = vmatprep.subr.mxu0 0.0
      %810 = vmatpush1.msra.mxu0 0.0
      %811 = vmatprep.subr.mxu0 0.0
      %812 = vmatpush1.msra.mxu0 0.0
      %813 = vmatprep.subr.mxu0 0.0
      %814 = vmatpush1.msra.mxu0 0.0
      %815 = vmatprep.subr.mxu0 0.0
      %816 = vmatpush1.msra.mxu0 0.0
      %817 = vmatprep.subr.mxu0 0.0
      %818 = vmatpush1.msra.mxu0 0.0
      %819 = vmatprep.subr.mxu0 0.0
      %820 = vmatpush1.msra.mxu0 0.0
      %821 = vmatprep.subr.mxu0 0.0
      %822 = vmatpush1.msra.mxu0 0.0
      %823 = vmatprep.subr.mxu0 0.0
      %824 = vmatpush1.msra.mxu0 0.0
      %825 = vmatprep.subr.mxu0 0.0
      %826 = vmatpush1.msra.mxu0 0.0
      %827 = vmatprep.subr.mxu0 0.0
      %828 = vmatpush1.msra.mxu0 0.0
      %829 = vmatprep.subr.mxu0 0.0
      %830 = vmatpush1.msra.mxu0 0.0
      %831 = vmatprep.subr.mxu0 0.0
      %832 = vmatpush1.msra.mxu0 0.0
      %833 = vmatprep.subr.mxu0 0.0
      %834 = vmatpush1.msra.mxu0 0.0
      %835 = vmatprep.subr.mxu0 0.0
      %836 = vmatpush1.msra.mxu0 0.0
      %837 = vmatprep.subr.mxu0 0.0
      %838 = vmatpush1.msra.mxu0 0.0
      %839 = vmatprep.subr.mxu0 0.0
      %840 = vmatpush1.msra.mxu0 0.0
      %841 = vmatprep.subr.mxu0 0.0
      %842 = vmatpush1.msra.mxu0 0.0
      %843 = vmatprep.subr.mxu0 0.0
      %844 = vmatpush1.msra.mxu0 0.0
      %845 = vmatprep.subr.mxu0 0.0
      %846 = vmatpush1.msra.mxu0 0.0
      %847 = vmatprep.subr.mxu0 0.0
      %848 = vmatpush1.msra.mxu0 0.0
      %849 = vmatprep.subr.mxu0 0.0
      %850 = vmatpush1.msra.mxu0 0.0
      %851 = vmatprep.subr.mxu0 0.0
      %852 = vmatpush1.msra.mxu0 0.0
      %853 = vmatprep.subr.mxu0 0.0
      %854 = vmatpush1.msra.mxu0 0.0
      %855 = vmatprep.subr.mxu0 0.0
      %856 = vmatpush1.msra.mxu0 0.0
      %857 = vmatprep.subr.mxu0 0.0
      %858 = vmatpush1.msra.mxu0 0.0
      %859 = vmatprep.subr.mxu0 0.0
      %860 = vmatpush1.msra.mxu0 0.0
      %861 = vmatprep.subr.mxu0 0.0
      %862 = vmatpush1.msra.mxu0 0.0
      %863 = vmatprep.subr.mxu0 0.0
      %864 = vmatpush1.msra.mxu0 0.0
      %865 = vmatprep.mubr.f32.mxu0 0.0
      %866 = vmatmul.mubr.f32.gmra.mrb[0].mxu0 %v799
      %v867 = vpop.f32.mrb[0].mxu0
      %v868 = vadd.f32 0.0, %v867
      %v869 = vpop.f32.mrb[0].mxu0
      %870 = vdwg.mxu0
      %871 = vst.msk [vmem:[#allocation2] sm:$0xff] %vm706, %v868
      %872 = vrot.lane.b32.xlu0 %v697, 112
      %v873 = vpop.permute.xlu0 %872
      %874 = vrot.lane.b32.xlu0 %v694, 80
      %v875 = vpop.permute.xlu0 %874
      %v876 = vsel %vm706, %v873, 0
      %v878 = vsel %vm706, %v875, 0
      %880 = vmatprep.subr.mxu0 0.0
      %881 = vmatpush1.xpose.msra.mxu0 %v878
      %882 = vmatprep.subr.mxu0 0.0
      %883 = vmatpush1.xpose.msra.mxu0 0.0
      %884 = vmatprep.subr.mxu0 0.0
      %885 = vmatpush1.xpose.msra.mxu0 0.0
      %886 = vmatprep.subr.mxu0 0.0
      %887 = vmatpush1.xpose.msra.mxu0 0.0
      %888 = vmatprep.subr.mxu0 0.0
      %889 = vmatpush1.xpose.msra.mxu0 0.0
      %890 = vmatprep.subr.mxu0 0.0
      %891 = vmatpush1.xpose.msra.mxu0 0.0
      %892 = vmatprep.subr.mxu0 0.0
      %893 = vmatpush1.xpose.msra.mxu0 0.0
      %894 = vmatprep.subr.mxu0 0.0
      %895 = vmatpush1.xpose.msra.mxu0 0.0
      %896 = vmatprep.subr.mxu0 0.0
      %897 = vmatpush1.xpose.msra.mxu0 0.0
      %898 = vmatprep.subr.mxu0 0.0
      %899 = vmatpush1.xpose.msra.mxu0 0.0
      %900 = vmatprep.subr.mxu0 0.0
      %901 = vmatpush1.xpose.msra.mxu0 0.0
      %902 = vmatprep.subr.mxu0 0.0
      %903 = vmatpush1.xpose.msra.mxu0 0.0
      %904 = vmatprep.subr.mxu0 0.0
      %905 = vmatpush1.xpose.msra.mxu0 0.0
      %906 = vmatprep.subr.mxu0 0.0
      %907 = vmatpush1.xpose.msra.mxu0 0.0
      %908 = vmatprep.subr.mxu0 0.0
      %909 = vmatpush1.xpose.msra.mxu0 0.0
      %910 = vmatprep.subr.mxu0 0.0
      %911 = vmatpush1.xpose.msra.mxu0 0.0
      %912 = vmatprep.subr.mxu0 0.0
      %913 = vmatpush1.xpose.msra.mxu0 0.0
      %914 = vmatprep.subr.mxu0 0.0
      %915 = vmatpush1.xpose.msra.mxu0 0.0
      %916 = vmatprep.subr.mxu0 0.0
      %917 = vmatpush1.xpose.msra.mxu0 0.0
      %918 = vmatprep.subr.mxu0 0.0
      %919 = vmatpush1.xpose.msra.mxu0 0.0
      %920 = vmatprep.subr.mxu0 0.0
      %921 = vmatpush1.xpose.msra.mxu0 0.0
      %922 = vmatprep.subr.mxu0 0.0
      %923 = vmatpush1.xpose.msra.mxu0 0.0
      %924 = vmatprep.subr.mxu0 0.0
      %925 = vmatpush1.xpose.msra.mxu0 0.0
      %926 = vmatprep.subr.mxu0 0.0
      %927 = vmatpush1.xpose.msra.mxu0 0.0
      %928 = vmatprep.subr.mxu0 0.0
      %929 = vmatpush1.xpose.msra.mxu0 0.0
      %930 = vmatprep.subr.mxu0 0.0
      %931 = vmatpush1.xpose.msra.mxu0 0.0
      %932 = vmatprep.subr.mxu0 0.0
      %933 = vmatpush1.xpose.msra.mxu0 0.0
      %934 = vmatprep.subr.mxu0 0.0
      %935 = vmatpush1.xpose.msra.mxu0 0.0
      %936 = vmatprep.subr.mxu0 0.0
      %937 = vmatpush1.xpose.msra.mxu0 0.0
      %938 = vmatprep.subr.mxu0 0.0
      %939 = vmatpush1.xpose.msra.mxu0 0.0
      %940 = vmatprep.subr.mxu0 0.0
      %941 = vmatpush1.xpose.msra.mxu0 0.0
      %942 = vmatprep.subr.mxu0 0.0
      %943 = vmatpush1.xpose.msra.mxu0 0.0
      %944 = vmatprep.mubr.f32.mxu0 0.0
      %945 = vmatmul.mubr.f32.gmra.mrb[0].mxu0 %v876
      %v946 = vpop.f32.mrb[0].mxu0
      %v947 = vadd.f32 0.0, %v946
      %v948 = vpop.f32.mrb[0].mxu0
      %949 = vdwg.mxu0
      %v950 = vsel %vm702, %v947, -1e+30
      %v951 = vsel %vm783, %v950, -inf
      %952 = vmax.xlane.f32.xlu0 %v951
      %v953 = vpop.xlane.xlu0 %952
      %v954 = vsub.f32 %v950, %v953
      %v955 = vmul.f32 %v954, 1.442695
      %v956 = vpow.pop %v955
      %v957 = vsel %vm783, %v956, 0.0
      %958 = vadd.xlane.f32.xlu0 %v957
      %v959 = vpop.xlane.xlu0 %958
      %v960 = vrcp.pop %v959
      %v961 = vmul.f32 %v956, %v960
      %962 = vrot.lane.b32.xlu0 %v694, 48
      %v963 = vpop.permute.xlu0 %962
      %v966 = vsel %vm783, %v961, 0
      %968 = vmatprep.subr.mxu0 0.0
      %969 = vmatpush1.msra.mxu0 %v963
      %970 = vmatprep.subr.mxu0 0.0
      %971 = vmatpush1.msra.mxu0 0.0
      %972 = vmatprep.subr.mxu0 0.0
      %973 = vmatpush1.msra.mxu0 0.0
      %974 = vmatprep.subr.mxu0 0.0
      %975 = vmatpush1.msra.mxu0 0.0
      %976 = vmatprep.subr.mxu0 0.0
      %977 = vmatpush1.msra.mxu0 0.0
      %978 = vmatprep.subr.mxu0 0.0
      %979 = vmatpush1.msra.mxu0 0.0
      %980 = vmatprep.subr.mxu0 0.0
      %981 = vmatpush1.msra.mxu0 0.0
      %982 = vmatprep.subr.mxu0 0.0
      %983 = vmatpush1.msra.mxu0 0.0
      %984 = vmatprep.subr.mxu0 0.0
      %985 = vmatpush1.msra.mxu0 0.0
      %986 = vmatprep.subr.mxu0 0.0
      %987 = vmatpush1.msra.mxu0 0.0
      %988 = vmatprep.subr.mxu0 0.0
      %989 = vmatpush1.msra.mxu0 0.0
      %990 = vmatprep.subr.mxu0 0.0
      %991 = vmatpush1.msra.mxu0 0.0
      %992 = vmatprep.subr.mxu0 0.0
      %993 = vmatpush1.msra.mxu0 0.0
      %994 = vmatprep.subr.mxu0 0.0
      %995 = vmatpush1.msra.mxu0 0.0
      %996 = vmatprep.subr.mxu0 0.0
      %997 = vmatpush1.msra.mxu0 0.0
      %998 = vmatprep.subr.mxu0 0.0
      %999 = vmatpush1.msra.mxu0 0.0
      %1000 = vmatprep.subr.mxu0 0.0
      %1001 = vmatpush1.msra.mxu0 0.0
      %1002 = vmatprep.subr.mxu0 0.0
      %1003 = vmatpush1.msra.mxu0 0.0
      %1004 = vmatprep.subr.mxu0 0.0
      %1005 = vmatpush1.msra.mxu0 0.0
      %1006 = vmatprep.subr.mxu0 0.0
      %1007 = vmatpush1.msra.mxu0 0.0
      %1008 = vmatprep.subr.mxu0 0.0
      %1009 = vmatpush1.msra.mxu0 0.0
      %1010 = vmatprep.subr.mxu0 0.0
      %1011 = vmatpush1.msra.mxu0 0.0
      %1012 = vmatprep.subr.mxu0 0.0
      %1013 = vmatpush1.msra.mxu0 0.0
      %1014 = vmatprep.subr.mxu0 0.0
      %1015 = vmatpush1.msra.mxu0 0.0
      %1016 = vmatprep.subr.mxu0 0.0
      %1017 = vmatpush1.msra.mxu0 0.0
      %1018 = vmatprep.subr.mxu0 0.0
      %1019 = vmatpush1.msra.mxu0 0.0
      %1020 = vmatprep.subr.mxu0 0.0
      %1021 = vmatpush1.msra.mxu0 0.0
      %1022 = vmatprep.subr.mxu0 0.0
      %1023 = vmatpush1.msra.mxu0 0.0
      %1024 = vmatprep.subr.mxu0 0.0
      %1025 = vmatpush1.msra.mxu0 0.0
      %1026 = vmatprep.subr.mxu0 0.0
      %1027 = vmatpush1.msra.mxu0 0.0
      %1028 = vmatprep.subr.mxu0 0.0
      %1029 = vmatpush1.msra.mxu0 0.0
      %1030 = vmatprep.subr.mxu0 0.0
      %1031 = vmatpush1.msra.mxu0 0.0
      %1032 = vmatprep.mubr.f32.mxu0 0.0
      %1033 = vmatmul.mubr.f32.gmra.mrb[0].mxu0 %v966
      %v1034 = vpop.f32.mrb[0].mxu0
      %v1035 = vadd.f32 0.0, %v1034
      %v1036 = vpop.f32.mrb[0].mxu0
      %1037 = vdwg.mxu0
      %1039 = vrot.lane.b32.xlu0 %v1035, 16
      %v1040 = vpop.permute.xlu0 %1039
      %vm1042 = vcmask 261248
      %1043 = vst.msk [vmem:[#allocation2] sm:$0xff] %vm1042, %v1040
      %v1044 = vld [vmem:[#allocation2] sm:$0xff]
      %v1045 = vld [vmem:[%s3] sm:$0xff]
      %v1046 = vld [vmem:[%s3 + $0x8] sm:$0xff]
      %v1047 = vld [vmem:[%s3 + $0x10] sm:$0xff]
      %v1048 = vld [vmem:[%s3 + $0x18] sm:$0xff]
      %v1049 = vld [vmem:[%s4] sm:$0x1]
      %v1051 = vlaneseq
      %v1052 = vshrl.u32 %v1051, 7
      %v1053 = vsub.s32 0, %v1052
      %v1054 = vrot.slane %v1049, %v1053
      %v1057 = vsel %vm591, %v1044, 0
      %1059 = vmatprep.subr.mxu0 0.0
      %1060 = vmatpush1.msra.mxu0 %v1045
      %1061 = vmatprep.subr.mxu0 0.0
      %1062 = vmatpush1.msra.mxu0 %v1046
      %1063 = vmatprep.subr.mxu0 0.0
      %1064 = vmatpush1.msra.mxu0 %v1047
      %1065 = vmatprep.subr.mxu0 0.0
      %1066 = vmatpush1.msra.mxu0 %v1048
      %1067 = vmatprep.subr.mxu0 0.0
      %1068 = vmatpush1.msra.mxu0 0.0
      %1069 = vmatprep.subr.mxu0 0.0
      %1070 = vmatpush1.msra.mxu0 0.0
      %1071 = vmatprep.subr.mxu0 0.0
      %1072 = vmatpush1.msra.mxu0 0.0
      %1073 = vmatprep.subr.mxu0 0.0
      %1074 = vmatpush1.msra.mxu0 0.0
      %1075 = vmatprep.subr.mxu0 0.0
      %1076 = vmatpush1.msra.mxu0 0.0
      %1077 = vmatprep.subr.mxu0 0.0
      %1078 = vmatpush1.msra.mxu0 0.0
      %1079 = vmatprep.subr.mxu0 0.0
      %1080 = vmatpush1.msra.mxu0 0.0
      %1081 = vmatprep.subr.mxu0 0.0
      %1082 = vmatpush1.msra.mxu0 0.0
      %1083 = vmatprep.subr.mxu0 0.0
      %1084 = vmatpush1.msra.mxu0 0.0
      %1085 = vmatprep.subr.mxu0 0.0
      %1086 = vmatpush1.msra.mxu0 0.0
      %1087 = vmatprep.subr.mxu0 0.0
      %1088 = vmatpush1.msra.mxu0 0.0
      %1089 = vmatprep.subr.mxu0 0.0
      %1090 = vmatpush1.msra.mxu0 0.0
      %1091 = vmatprep.subr.mxu0 0.0
      %1092 = vmatpush1.msra.mxu0 0.0
      %1093 = vmatprep.subr.mxu0 0.0
      %1094 = vmatpush1.msra.mxu0 0.0
      %1095 = vmatprep.subr.mxu0 0.0
      %1096 = vmatpush1.msra.mxu0 0.0
      %1097 = vmatprep.subr.mxu0 0.0
      %1098 = vmatpush1.msra.mxu0 0.0
      %1099 = vmatprep.subr.mxu0 0.0
      %1100 = vmatpush1.msra.mxu0 0.0
      %1101 = vmatprep.subr.mxu0 0.0
      %1102 = vmatpush1.msra.mxu0 0.0
      %1103 = vmatprep.subr.mxu0 0.0
      %1104 = vmatpush1.msra.mxu0 0.0
      %1105 = vmatprep.subr.mxu0 0.0
      %1106 = vmatpush1.msra.mxu0 0.0
      %1107 = vmatprep.subr.mxu0 0.0
      %1108 = vmatpush1.msra.mxu0 0.0
      %1109 = vmatprep.subr.mxu0 0.0
      %1110 = vmatpush1.msra.mxu0 0.0
      %1111 = vmatprep.subr.mxu0 0.0
      %1112 = vmatpush1.msra.mxu0 0.0
      %1113 = vmatprep.subr.mxu0 0.0
      %1114 = vmatpush1.msra.mxu0 0.0
      %1115 = vmatprep.subr.mxu0 0.0
      %1116 = vmatpush1.msra.mxu0 0.0
      %1117 = vmatprep.subr.mxu0 0.0
      %1118 = vmatpush1.msra.mxu0 0.0
      %1119 = vmatprep.subr.mxu0 0.0
      %1120 = vmatpush1.msra.mxu0 0.0
      %1121 = vmatprep.subr.mxu0 0.0
      %1122 = vmatpush1.msra.mxu0 0.0
      %1123 = vmatprep.mubr.f32.mxu0 0.0
      %1124 = vmatmul.mubr.f32.gmra.mrb[0].mxu0 %v1057
      %v1125 = vpop.f32.mrb[0].mxu0
      %v1126 = vadd.f32 %v1054, %v1125
      %v1127 = vpop.f32.mrb[0].mxu0
      %1128 = vdwg.mxu0
      %v1129 = vadd.f32 %v588, %v1126
      %v1130 = vld [vmem:[%s583] sm:$0xff]
      %v1131 = vld [vmem:[%s10] sm:$0x1]
      %v1132 = vld [vmem:[%s11] sm:$0x1]
      %v1133 = vsel %vm591, %v1129, 0.0
      %1134 = vadd.xlane.f32.xlu0 %v1133
      %v1135 = vpop.xlane.xlu0 %1134
      %v1136 = vmul.f32 %v1135, %v595
      %v1137 = vsub.f32 %v1129, %v1136
      %v1138 = vmul.f32 %v1137, %v1137
      %v1139 = vsel %vm591, %v1138, 0.0
      %1140 = vadd.xlane.f32.xlu0 %v1139
      %v1141 = vpop.xlane.xlu0 %1140
      %v1142 = vmul.f32 %v1141, %v595
      %v1143 = vadd.f32 %v1142, 1e-05
      %v1144 = vrsqrt.pop %v1143
      %v1145 = vmul.f32 %v1137, %v1144
      %v1147 = vlaneseq
      %v1148 = vshrl.u32 %v1147, 7
      %v1149 = vsub.s32 0, %v1148
      %v1150 = vrot.slane %v1131, %v1149
      %v1152 = vmul.f32 %v1145, %v1150
      %v1154 = vlaneseq
      %v1155 = vshrl.u32 %v1154, 7
      %v1156 = vsub.s32 0, %v1155
      %v1157 = vrot.slane %v1132, %v1156
      %v1159 = vadd.f32 %v1152, %v1157
      %v1160 = vld [vmem:[%s7] sm:$0xff]
      %v1161 = vld [vmem:[%s7 + $0x8] sm:$0xff]
      %v1162 = vld [vmem:[%s7 + $0x10] sm:$0xff]
      %v1163 = vld [vmem:[%s7 + $0x18] sm:$0xff]
      %v1165 = vsel %vm591, %v1159, 0
      %1167 = vmatprep.subr.mxu0 0.0
      %1168 = vmatpush1.msra.mxu0 %v1160
      %1169 = vmatprep.subr.mxu0 0.0
      %1170 = vmatpush1.msra.mxu0 %v1161
      %1171 = vmatprep.subr.mxu0 0.0
      %1172 = vmatpush1.msra.mxu0 %v1162
      %1173 = vmatprep.subr.mxu0 0.0
      %1174 = vmatpush1.msra.mxu0 %v1163
      %1175 = vmatprep.subr.mxu0 0.0
      %1176 = vmatpush1.msra.mxu0 0.0
      %1177 = vmatprep.subr.mxu0 0.0
      %1178 = vmatpush1.msra.mxu0 0.0
      %1179 = vmatprep.subr.mxu0 0.0
      %1180 = vmatpush1.msra.mxu0 0.0
      %1181 = vmatprep.subr.mxu0 0.0
      %1182 = vmatpush1.msra.mxu0 0.0
      %1183 = vmatprep.subr.mxu0 0.0
      %1184 = vmatpush1.msra.mxu0 0.0
      %1185 = vmatprep.subr.mxu0 0.0
      %1186 = vmatpush1.msra.mxu0 0.0
      %1187 = vmatprep.subr.mxu0 0.0
      %1188 = vmatpush1.msra.mxu0 0.0
      %1189 = vmatprep.subr.mxu0 0.0
      %1190 = vmatpush1.msra.mxu0 0.0
      %1191 = vmatprep.subr.mxu0 0.0
      %1192 = vmatpush1.msra.mxu0 0.0
      %1193 = vmatprep.subr.mxu0 0.0
      %1194 = vmatpush1.msra.mxu0 0.0
      %1195 = vmatprep.subr.mxu0 0.0
      %1196 = vmatpush1.msra.mxu0 0.0
      %1197 = vmatprep.subr.mxu0 0.0
      %1198 = vmatpush1.msra.mxu0 0.0
      %1199 = vmatprep.subr.mxu0 0.0
      %1200 = vmatpush1.msra.mxu0 0.0
      %1201 = vmatprep.subr.mxu0 0.0
      %1202 = vmatpush1.msra.mxu0 0.0
      %1203 = vmatprep.subr.mxu0 0.0
      %1204 = vmatpush1.msra.mxu0 0.0
      %1205 = vmatprep.subr.mxu0 0.0
      %1206 = vmatpush1.msra.mxu0 0.0
      %1207 = vmatprep.subr.mxu0 0.0
      %1208 = vmatpush1.msra.mxu0 0.0
      %1209 = vmatprep.subr.mxu0 0.0
      %1210 = vmatpush1.msra.mxu0 0.0
      %1211 = vmatprep.subr.mxu0 0.0
      %1212 = vmatpush1.msra.mxu0 0.0
      %1213 = vmatprep.subr.mxu0 0.0
      %1214 = vmatpush1.msra.mxu0 0.0
      %1215 = vmatprep.subr.mxu0 0.0
      %1216 = vmatpush1.msra.mxu0 0.0
      %1217 = vmatprep.subr.mxu0 0.0
      %1218 = vmatpush1.msra.mxu0 0.0
      %1219 = vmatprep.subr.mxu0 0.0
      %1220 = vmatpush1.msra.mxu0 0.0
      %1221 = vmatprep.subr.mxu0 0.0
      %1222 = vmatpush1.msra.mxu0 0.0
      %1223 = vmatprep.subr.mxu0 0.0
      %1224 = vmatpush1.msra.mxu0 0.0
      %1225 = vmatprep.subr.mxu0 0.0
      %1226 = vmatpush1.msra.mxu0 0.0
      %1227 = vmatprep.subr.mxu0 0.0
      %1228 = vmatpush1.msra.mxu0 0.0
      %1229 = vmatprep.subr.mxu0 0.0
      %1230 = vmatpush1.msra.mxu0 0.0
      %1231 = vmatprep.mubr.f32.mxu0 0.0
      %1232 = vmatmul.mubr.f32.gmra.mrb[0].mxu0 %v1165
      %v1233 = vpop.f32.mrb[0].mxu0
      %v1234 = vadd.f32 0.0, %v1233
      %v1235 = vpop.f32.mrb[0].mxu0
      %1236 = vdwg.mxu0
      %v1237 = vmul.f32 %v1234, 0.25
      %v1239 = vsel %vm706, %v1237, 0
      %v1242 = vsel %vm706, %v1130, 0
      %1244 = vmatprep.subr.mxu0 0.0
      %1245 = vmatpush1.xpose.msra.mxu0 %v1242
      %1246 = vmatprep.subr.mxu0 0.0
      %1247 = vmatpush1.xpose.msra.mxu0 0.0
      %1248 = vmatprep.subr.mxu0 0.0
      %1249 = vmatpush1.xpose.msra.mxu0 0.0
      %1250 = vmatprep.subr.mxu0 0.0
      %1251 = vmatpush1.xpose.msra.mxu0 0.0
      %1252 = vmatprep.subr.mxu0 0.0
      %1253 = vmatpush1.xpose.msra.mxu0 0.0
      %1254 = vmatprep.subr.mxu0 0.0
      %1255 = vmatpush1.xpose.msra.mxu0 0.0
      %1256 = vmatprep.subr.mxu0 0.0
      %1257 = vmatpush1.xpose.msra.mxu0 0.0
      %1258 = vmatprep.subr.mxu0 0.0
      %1259 = vmatpush1.xpose.msra.mxu0 0.0
      %1260 = vmatprep.subr.mxu0 0.0
      %1261 = vmatpush1.xpose.msra.mxu0 0.0
      %1262 = vmatprep.subr.mxu0 0.0
      %1263 = vmatpush1.xpose.msra.mxu0 0.0
      %1264 = vmatprep.subr.mxu0 0.0
      %1265 = vmatpush1.xpose.msra.mxu0 0.0
      %1266 = vmatprep.subr.mxu0 0.0
      %1267 = vmatpush1.xpose.msra.mxu0 0.0
      %1268 = vmatprep.subr.mxu0 0.0
      %1269 = vmatpush1.xpose.msra.mxu0 0.0
      %1270 = vmatprep.subr.mxu0 0.0
      %1271 = vmatpush1.xpose.msra.mxu0 0.0
      %1272 = vmatprep.subr.mxu0 0.0
      %1273 = vmatpush1.xpose.msra.mxu0 0.0
      %1274 = vmatprep.subr.mxu0 0.0
      %1275 = vmatpush1.xpose.msra.mxu0 0.0
      %1276 = vmatprep.subr.mxu0 0.0
      %1277 = vmatpush1.xpose.msra.mxu0 0.0
      %1278 = vmatprep.subr.mxu0 0.0
      %1279 = vmatpush1.xpose.msra.mxu0 0.0
      %1280 = vmatprep.subr.mxu0 0.0
      %1281 = vmatpush1.xpose.msra.mxu0 0.0
      %1282 = vmatprep.subr.mxu0 0.0
      %1283 = vmatpush1.xpose.msra.mxu0 0.0
      %1284 = vmatprep.subr.mxu0 0.0
      %1285 = vmatpush1.xpose.msra.mxu0 0.0
      %1286 = vmatprep.subr.mxu0 0.0
      %1287 = vmatpush1.xpose.msra.mxu0 0.0
      %1288 = vmatprep.subr.mxu0 0.0
      %1289 = vmatpush1.xpose.msra.mxu0 0.0
      %1290 = vmatprep.subr.mxu0 0.0
      %1291 = vmatpush1.xpose.msra.mxu0 0.0
      %1292 = vmatprep.subr.mxu0 0.0
      %1293 = vmatpush1.xpose.msra.mxu0 0.0
      %1294 = vmatprep.subr.mxu0 0.0
      %1295 = vmatpush1.xpose.msra.mxu0 0.0
      %1296 = vmatprep.subr.mxu0 0.0
      %1297 = vmatpush1.xpose.msra.mxu0 0.0
      %1298 = vmatprep.subr.mxu0 0.0
      %1299 = vmatpush1.xpose.msra.mxu0 0.0
      %1300 = vmatprep.subr.mxu0 0.0
      %1301 = vmatpush1.xpose.msra.mxu0 0.0
      %1302 = vmatprep.subr.mxu0 0.0
      %1303 = vmatpush1.xpose.msra.mxu0 0.0
      %1304 = vmatprep.subr.mxu0 0.0
      %1305 = vmatpush1.xpose.msra.mxu0 0.0
      %1306 = vmatprep.subr.mxu0 0.0
      %1307 = vmatpush1.xpose.msra.mxu0 0.0
      %1308 = vmatprep.mubr.f32.mxu0 0.0
      %1309 = vmatmul.mubr.f32.gmra.mrb[0].mxu0 %v1239
      %v1310 = vpop.f32.mrb[0].mxu0
      %v1311 = vadd.f32 0.0, %v1310
      %v1312 = vpop.f32.mrb[0].mxu0
      %1313 = vdwg.mxu0
      %v1314 = vsel %vm783, %v1311, -inf
      %1315 = vmax.xlane.f32.xlu0 %v1314
      %v1316 = vpop.xlane.xlu0 %1315
      %v1317 = vsub.f32 %v1311, %v1316
      %v1318 = vmul.f32 %v1317, 1.442695
      %v1319 = vpow.pop %v1318
      %v1320 = vsel %vm783, %v1319, 0.0
      %1321 = vadd.xlane.f32.xlu0 %v1320
      %v1322 = vpop.xlane.xlu0 %1321
      %v1323 = vrcp.pop %v1322
      %v1324 = vmul.f32 %v1319, %v1323
      %v1326 = vsel %vm783, %v1324, 0
      %1328 = vmatprep.subr.mxu0 0.0
      %1329 = vmatpush1.msra.mxu0 %v1130
      %1330 = vmatprep.subr.mxu0 0.0
      %1331 = vmatpush1.msra.mxu0 0.0
      %1332 = vmatprep.subr.mxu0 0.0
      %1333 = vmatpush1.msra.mxu0 0.0
      %1334 = vmatprep.subr.mxu0 0.0
      %1335 = vmatpush1.msra.mxu0 0.0
      %1336 = vmatprep.subr.mxu0 0.0
      %1337 = vmatpush1.msra.mxu0 0.0
      %1338 = vmatprep.subr.mxu0 0.0
      %1339 = vmatpush1.msra.mxu0 0.0
      %1340 = vmatprep.subr.mxu0 0.0
      %1341 = vmatpush1.msra.mxu0 0.0
      %1342 = vmatprep.subr.mxu0 0.0
      %1343 = vmatpush1.msra.mxu0 0.0
      %1344 = vmatprep.subr.mxu0 0.0
      %1345 = vmatpush1.msra.mxu0 0.0
      %1346 = vmatprep.subr.mxu0 0.0
      %1347 = vmatpush1.msra.mxu0 0.0
      %1348 = vmatprep.subr.mxu0 0.0
      %1349 = vmatpush1.msra.mxu0 0.0
      %1350 = vmatprep.subr.mxu0 0.0
      %1351 = vmatpush1.msra.mxu0 0.0
      %1352 = vmatprep.subr.mxu0 0.0
      %1353 = vmatpush1.msra.mxu0 0.0
      %1354 = vmatprep.subr.mxu0 0.0
      %1355 = vmatpush1.msra.mxu0 0.0
      %1356 = vmatprep.subr.mxu0 0.0
      %1357 = vmatpush1.msra.mxu0 0.0
      %1358 = vmatprep.subr.mxu0 0.0
      %1359 = vmatpush1.msra.mxu0 0.0
      %1360 = vmatprep.subr.mxu0 0.0
      %1361 = vmatpush1.msra.mxu0 0.0
      %1362 = vmatprep.subr.mxu0 0.0
      %1363 = vmatpush1.msra.mxu0 0.0
      %1364 = vmatprep.subr.mxu0 0.0
      %1365 = vmatpush1.msra.mxu0 0.0
      %1366 = vmatprep.subr.mxu0 0.0
      %1367 = vmatpush1.msra.mxu0 0.0
      %1368 = vmatprep.subr.mxu0 0.0
      %1369 = vmatpush1.msra.mxu0 0.0
      %1370 = vmatprep.subr.mxu0 0.0
      %1371 = vmatpush1.msra.mxu0 0.0
      %1372 = vmatprep.subr.mxu0 0.0
      %1373 = vmatpush1.msra.mxu0 0.0
      %1374 = vmatprep.subr.mxu0 0.0
      %1375 = vmatpush1.msra.mxu0 0.0
      %1376 = vmatprep.subr.mxu0 0.0
      %1377 = vmatpush1.msra.mxu0 0.0
      %1378 = vmatprep.subr.mxu0 0.0
      %1379 = vmatpush1.msra.mxu0 0.0
      %1380 = vmatprep.subr.mxu0 0.0
      %1381 = vmatpush1.msra.mxu0 0.0
      %1382 = vmatprep.subr.mxu0 0.0
      %1383 = vmatpush1.msra.mxu0 0.0
      %1384 = vmatprep.subr.mxu0 0.0
      %1385 = vmatpush1.msra.mxu0 0.0
      %1386 = vmatprep.subr.mxu0 0.0
      %1387 = vmatpush1.msra.mxu0 0.0
      %1388 = vmatprep.subr.mxu0 0.0
      %1389 = vmatpush1.msra.mxu0 0.0
      %1390 = vmatprep.subr.mxu0 0.0
      %1391 = vmatpush1.msra.mxu0 0.0
      %1392 = vmatprep.mubr.f32.mxu0 0.0
      %1393 = vmatmul.mubr.f32.gmra.mrb[0].mxu0 %v1326
      %v1394 = vpop.f32.mrb[0].mxu0
      %v1395 = vadd.f32 0.0, %v1394
      %v1396 = vpop.f32.mrb[0].mxu0
      %1397 = vdwg.mxu0
      %1398 = vst.msk [vmem:[#allocation2] sm:$0xff] %vm706, %v1395
      %1399 = vrot.lane.b32.xlu0 %v1237, 112
      %v1400 = vpop.permute.xlu0 %1399
      %1401 = vrot.lane.b32.xlu0 %v1130, 112
      %v1402 = vpop.permute.xlu0 %1401
      %v1403 = vsel %vm706, %v1400, 0
      %v1405 = vsel %vm706, %v1402, 0
      %1407 = vmatprep.subr.mxu0 0.0
      %1408 = vmatpush1.xpose.msra.mxu0 %v1405
      %1409 = vmatprep.subr.mxu0 0.0
      %1410 = vmatpush1.xpose.msra.mxu0 0.0
      %1411 = vmatprep.subr.mxu0 0.0
      %1412 = vmatpush1.xpose.msra.mxu0 0.0
      %1413 = vmatprep.subr.mxu0 0.0
      %1414 = vmatpush1.xpose.msra.mxu0 0.0
      %1415 = vmatprep.subr.mxu0 0.0
      %1416 = vmatpush1.xpose.msra.mxu0 0.0
      %1417 = vmatprep.subr.mxu0 0.0
      %1418 = vmatpush1.xpose.msra.mxu0 0.0
      %1419 = vmatprep.subr.mxu0 0.0
      %1420 = vmatpush1.xpose.msra.mxu0 0.0
      %1421 = vmatprep.subr.mxu0 0.0
      %1422 = vmatpush1.xpose.msra.mxu0 0.0
      %1423 = vmatprep.subr.mxu0 0.0
      %1424 = vmatpush1.xpose.msra.mxu0 0.0
      %1425 = vmatprep.subr.mxu0 0.0
      %1426 = vmatpush1.xpose.msra.mxu0 0.0
      %1427 = vmatprep.subr.mxu0 0.0
      %1428 = vmatpush1.xpose.msra.mxu0 0.0
      %1429 = vmatprep.subr.mxu0 0.0
      %1430 = vmatpush1.xpose.msra.mxu0 0.0
      %1431 = vmatprep.subr.mxu0 0.0
      %1432 = vmatpush1.xpose.msra.mxu0 0.0
      %1433 = vmatprep.subr.mxu0 0.0
      %1434 = vmatpush1.xpose.msra.mxu0 0.0
      %1435 = vmatprep.subr.mxu0 0.0
      %1436 = vmatpush1.xpose.msra.mxu0 0.0
      %1437 = vmatprep.subr.mxu0 0.0
      %1438 = vmatpush1.xpose.msra.mxu0 0.0
      %1439 = vmatprep.subr.mxu0 0.0
      %1440 = vmatpush1.xpose.msra.mxu0 0.0
      %1441 = vmatprep.subr.mxu0 0.0
      %1442 = vmatpush1.xpose.msra.mxu0 0.0
      %1443 = vmatprep.subr.mxu0 0.0
      %1444 = vmatpush1.xpose.msra.mxu0 0.0
      %1445 = vmatprep.subr.mxu0 0.0
      %1446 = vmatpush1.xpose.msra.mxu0 0.0
      %1447 = vmatprep.subr.mxu0 0.0
      %1448 = vmatpush1.xpose.msra.mxu0 0.0
      %1449 = vmatprep.subr.mxu0 0.0
      %1450 = vmatpush1.xpose.msra.mxu0 0.0
      %1451 = vmatprep.subr.mxu0 0.0
      %1452 = vmatpush1.xpose.msra.mxu0 0.0
      %1453 = vmatprep.subr.mxu0 0.0
      %1454 = vmatpush1.xpose.msra.mxu0 0.0
      %1455 = vmatprep.subr.mxu0 0.0
      %1456 = vmatpush1.xpose.msra.mxu0 0.0
      %1457 = vmatprep.subr.mxu0 0.0
      %1458 = vmatpush1.xpose.msra.mxu0 0.0
      %1459 = vmatprep.subr.mxu0 0.0
      %1460 = vmatpush1.xpose.msra.mxu0 0.0
      %1461 = vmatprep.subr.mxu0 0.0
      %1462 = vmatpush1.xpose.msra.mxu0 0.0
      %1463 = vmatprep.subr.mxu0 0.0
      %1464 = vmatpush1.xpose.msra.mxu0 0.0
      %1465 = vmatprep.subr.mxu0 0.0
      %1466 = vmatpush1.xpose.msra.mxu0 0.0
      %1467 = vmatprep.subr.mxu0 0.0
      %1468 = vmatpush1.xpose.msra.mxu0 0.0
      %1469 = vmatprep.subr.mxu0 0.0
      %1470 = vmatpush1.xpose.msra.mxu0 0.0
      %1471 = vmatprep.mubr.f32.mxu0 0.0
      %1472 = vmatmul.mubr.f32.gmra.mrb[0].mxu0 %v1403
      %v1473 = vpop.f32.mrb[0].mxu0
      %v1474 = vadd.f32 0.0, %v1473
      %v1475 = vpop.f32.mrb[0].mxu0
      %1476 = vdwg.mxu0
      %v1477 = vsel %vm783, %v1474, -inf
      %1478 = vmax.xlane.f32.xlu0 %v1477
      %v1479 = vpop.xlane.xlu0 %1478
      %v1480 = vsub.f32 %v1474, %v1479
      %v1481 = vmul.f32 %v1480, 1.442695
      %v1482 = vpow.pop %v1481
      %v1483 = vsel %vm783, %v1482, 0.0
      %1484 = vadd.xlane.f32.xlu0 %v1483
      %v1485 = vpop.xlane.xlu0 %1484
      %v1486 = vrcp.pop %v1485
      %v1487 = vmul.f32 %v1482, %v1486
      %v1490 = vsel %vm783, %v1487, 0
      %1492 = vmatprep.subr.mxu0 0.0
      %1493 = vmatpush1.msra.mxu0 %v1402
      %1494 = vmatprep.subr.mxu0 0.0
      %1495 = vmatpush1.msra.mxu0 0.0
      %1496 = vmatprep.subr.mxu0 0.0
      %1497 = vmatpush1.msra.mxu0 0.0
      %1498 = vmatprep.subr.mxu0 0.0
      %1499 = vmatpush1.msra.mxu0 0.0
      %1500 = vmatprep.subr.mxu0 0.0
      %1501 = vmatpush1.msra.mxu0 0.0
      %1502 = vmatprep.subr.mxu0 0.0
      %1503 = vmatpush1.msra.mxu0 0.0
      %1504 = vmatprep.subr.mxu0 0.0
      %1505 = vmatpush1.msra.mxu0 0.0
      %1506 = vmatprep.subr.mxu0 0.0
      %1507 = vmatpush1.msra.mxu0 0.0
      %1508 = vmatprep.subr.mxu0 0.0
      %1509 = vmatpush1.msra.mxu0 0.0
      %1510 = vmatprep.subr.mxu0 0.0
      %1511 = vmatpush1.msra.mxu0 0.0
      %1512 = vmatprep.subr.mxu0 0.0
      %1513 = vmatpush1.msra.mxu0 0.0
      %1514 = vmatprep.subr.mxu0 0.0
      %1515 = vmatpush1.msra.mxu0 0.0
      %1516 = vmatprep.subr.mxu0 0.0
      %1517 = vmatpush1.msra.mxu0 0.0
      %1518 = vmatprep.subr.mxu0 0.0
      %1519 = vmatpush1.msra.mxu0 0.0
      %1520 = vmatprep.subr.mxu0 0.0
      %1521 = vmatpush1.msra.mxu0 0.0
      %1522 = vmatprep.subr.mxu0 0.0
      %1523 = vmatpush1.msra.mxu0 0.0
      %1524 = vmatprep.subr.mxu0 0.0
      %1525 = vmatpush1.msra.mxu0 0.0
      %1526 = vmatprep.subr.mxu0 0.0
      %1527 = vmatpush1.msra.mxu0 0.0
      %1528 = vmatprep.subr.mxu0 0.0
      %1529 = vmatpush1.msra.mxu0 0.0
      %1530 = vmatprep.subr.mxu0 0.0
      %1531 = vmatpush1.msra.mxu0 0.0
      %1532 = vmatprep.subr.mxu0 0.0
      %1533 = vmatpush1.msra.mxu0 0.0
      %1534 = vmatprep.subr.mxu0 0.0
      %1535 = vmatpush1.msra.mxu0 0.0
      %1536 = vmatprep.subr.mxu0 0.0
      %1537 = vmatpush1.msra.mxu0 0.0
      %1538 = vmatprep.subr.mxu0 0.0
      %1539 = vmatpush1.msra.mxu0 0.0
      %1540 = vmatprep.subr.mxu0 0.0
      %1541 = vmatpush1.msra.mxu0 0.0
      %1542 = vmatprep.subr.mxu0 0.0
      %1543 = vmatpush1.msra.mxu0 0.0
      %1544 = vmatprep.subr.mxu0 0.0
      %1545 = vmatpush1.msra.mxu0 0.0
      %1546 = vmatprep.subr.mxu0 0.0
      %1547 = vmatpush1.msra.mxu0 0.0
      %1548 = vmatprep.subr.mxu0 0.0
      %1549 = vmatpush1.msra.mxu0 0.0
      %1550 = vmatprep.subr.mxu0 0.0
      %1551 = vmatpush1.msra.mxu0 0.0
      %1552 = vmatprep.subr.mxu0 0.0
      %1553 = vmatpush1.msra.mxu0 0.0
      %1554 = vmatprep.subr.mxu0 0.0
      %1555 = vmatpush1.msra.mxu0 0.0
      %1556 = vmatprep.mubr.f32.mxu0 0.0
      %1557 = vmatmul.mubr.f32.gmra.mrb[0].mxu0 %v1490
      %v1558 = vpop.f32.mrb[0].mxu0
      %v1559 = vadd.f32 0.0, %v1558
      %v1560 = vpop.f32.mrb[0].mxu0
      %1561 = vdwg.mxu0
      %1563 = vrot.lane.b32.xlu0 %v1559, 16
      %v1564 = vpop.permute.xlu0 %1563
      %1566 = vst.msk [vmem:[#allocation2] sm:$0xff] %vm1042, %v1564
      %v1567 = vld [vmem:[#allocation2] sm:$0xff]
      %v1568 = vld [vmem:[%s8] sm:$0xff]
      %v1569 = vld [vmem:[%s8 + $0x8] sm:$0xff]
      %v1570 = vld [vmem:[%s8 + $0x10] sm:$0xff]
      %v1571 = vld [vmem:[%s8 + $0x18] sm:$0xff]
      %v1572 = vld [vmem:[%s9] sm:$0x1]
      %v1574 = vlaneseq
      %v1575 = vshrl.u32 %v1574, 7
      %v1576 = vsub.s32 0, %v1575
      %v1577 = vrot.slane %v1572, %v1576
      %v1580 = vsel %vm591, %v1567, 0
      %1582 = vmatprep.subr.mxu0 0.0
      %1583 = vmatpush1.msra.mxu0 %v1568
      %1584 = vmatprep.subr.mxu0 0.0
      %1585 = vmatpush1.msra.mxu0 %v1569
      %1586 = vmatprep.subr.mxu0 0.0
      %1587 = vmatpush1.msra.mxu0 %v1570
      %1588 = vmatprep.subr.mxu0 0.0
      %1589 = vmatpush1.msra.mxu0 %v1571
      %1590 = vmatprep.subr.mxu0 0.0
      %1591 = vmatpush1.msra.mxu0 0.0
      %1592 = vmatprep.subr.mxu0 0.0
      %1593 = vmatpush1.msra.mxu0 0.0
      %1594 = vmatprep.subr.mxu0 0.0
      %1595 = vmatpush1.msra.mxu0 0.0
      %1596 = vmatprep.subr.mxu0 0.0
      %1597 = vmatpush1.msra.mxu0 0.0
      %1598 = vmatprep.subr.mxu0 0.0
      %1599 = vmatpush1.msra.mxu0 0.0
      %1600 = vmatprep.subr.mxu0 0.0
      %1601 = vmatpush1.msra.mxu0 0.0
      %1602 = vmatprep.subr.mxu0 0.0
      %1603 = vmatpush1.msra.mxu0 0.0
      %1604 = vmatprep.subr.mxu0 0.0
      %1605 = vmatpush1.msra.mxu0 0.0
      %1606 = vmatprep.subr.mxu0 0.0
      %1607 = vmatpush1.msra.mxu0 0.0
      %1608 = vmatprep.subr.mxu0 0.0
      %1609 = vmatpush1.msra.mxu0 0.0
      %1610 = vmatprep.subr.mxu0 0.0
      %1611 = vmatpush1.msra.mxu0 0.0
      %1612 = vmatprep.subr.mxu0 0.0
      %1613 = vmatpush1.msra.mxu0 0.0
      %1614 = vmatprep.subr.mxu0 0.0
      %1615 = vmatpush1.msra.mxu0 0.0
      %1616 = vmatprep.subr.mxu0 0.0
      %1617 = vmatpush1.msra.mxu0 0.0
      %1618 = vmatprep.subr.mxu0 0.0
      %1619 = vmatpush1.msra.mxu0 0.0
      %1620 = vmatprep.subr.mxu0 0.0
      %1621 = vmatpush1.msra.mxu0 0.0
      %1622 = vmatprep.subr.mxu0 0.0
      %1623 = vmatpush1.msra.mxu0 0.0
      %1624 = vmatprep.subr.mxu0 0.0
      %1625 = vmatpush1.msra.mxu0 0.0
      %1626 = vmatprep.subr.mxu0 0.0
      %1627 = vmatpush1.msra.mxu0 0.0
      %1628 = vmatprep.subr.mxu0 0.0
      %1629 = vmatpush1.msra.mxu0 0.0
      %1630 = vmatprep.subr.mxu0 0.0
      %1631 = vmatpush1.msra.mxu0 0.0
      %1632 = vmatprep.subr.mxu0 0.0
      %1633 = vmatpush1.msra.mxu0 0.0
      %1634 = vmatprep.subr.mxu0 0.0
      %1635 = vmatpush1.msra.mxu0 0.0
      %1636 = vmatprep.subr.mxu0 0.0
      %1637 = vmatpush1.msra.mxu0 0.0
      %1638 = vmatprep.subr.mxu0 0.0
      %1639 = vmatpush1.msra.mxu0 0.0
      %1640 = vmatprep.subr.mxu0 0.0
      %1641 = vmatpush1.msra.mxu0 0.0
      %1642 = vmatprep.subr.mxu0 0.0
      %1643 = vmatpush1.msra.mxu0 0.0
      %1644 = vmatprep.subr.mxu0 0.0
      %1645 = vmatpush1.msra.mxu0 0.0
      %1646 = vmatprep.mubr.f32.mxu0 0.0
      %1647 = vmatmul.mubr.f32.gmra.mrb[0].mxu0 %v1580
      %v1648 = vpop.f32.mrb[0].mxu0
      %v1649 = vadd.f32 %v1577, %v1648
      %v1650 = vpop.f32.mrb[0].mxu0
      %1651 = vdwg.mxu0
      %v1652 = vadd.f32 %v1129, %v1649
      %v1653 = vld [vmem:[%s16] sm:$0x1]
      %v1654 = vld [vmem:[%s17] sm:$0x1]
      %v1655 = vsel %vm591, %v1652, 0.0
      %1656 = vadd.xlane.f32.xlu0 %v1655
      %v1657 = vpop.xlane.xlu0 %1656
      %v1658 = vmul.f32 %v1657, %v595
      %v1659 = vsub.f32 %v1652, %v1658
      %v1660 = vmul.f32 %v1659, %v1659
      %v1661 = vsel %vm591, %v1660, 0.0
      %1662 = vadd.xlane.f32.xlu0 %v1661
      %v1663 = vpop.xlane.xlu0 %1662
      %v1664 = vmul.f32 %v1663, %v595
      %v1665 = vadd.f32 %v1664, 1e-05
      %v1666 = vrsqrt.pop %v1665
      %v1667 = vmul.f32 %v1659, %v1666
      %v1669 = vlaneseq
      %v1670 = vshrl.u32 %v1669, 7
      %v1671 = vsub.s32 0, %v1670
      %v1672 = vrot.slane %v1653, %v1671
      %v1674 = vmul.f32 %v1667, %v1672
      %v1676 = vlaneseq
      %v1677 = vshrl.u32 %v1676, 7
      %v1678 = vsub.s32 0, %v1677
      %v1679 = vrot.slane %v1654, %v1678
      %v1681 = vadd.f32 %v1674, %v1679
      %v1682 = vld [vmem:[%s12] sm:$0xff]
      %v1683 = vld [vmem:[%s12 + $0x8] sm:$0xff]
      %v1684 = vld [vmem:[%s12 + $0x10] sm:$0xff]
      %v1685 = vld [vmem:[%s12 + $0x18] sm:$0xff]
      %v1686 = vld [vmem:[%s13] sm:$0x1]
      %v1688 = vlaneseq
      %v1689 = vshrl.u32 %v1688, 7
      %v1690 = vsub.s32 0, %v1689
      %v1691 = vrot.slane %v1686, %v1690
      %v1694 = vsel %vm591, %v1681, 0
      %1696 = vmatprep.subr.mxu0 0.0
      %1697 = vmatpush1.msra.mxu0 %v1682
      %1698 = vmatprep.subr.mxu0 0.0
      %1699 = vmatpush1.msra.mxu0 %v1683
      %1700 = vmatprep.subr.mxu0 0.0
      %1701 = vmatpush1.msra.mxu0 %v1684
      %1702 = vmatprep.subr.mxu0 0.0
      %1703 = vmatpush1.msra.mxu0 %v1685
      %1704 = vmatprep.subr.mxu0 0.0
      %1705 = vmatpush1.msra.mxu0 0.0
      %1706 = vmatprep.subr.mxu0 0.0
      %1707 = vmatpush1.msra.mxu0 0.0
      %1708 = vmatprep.subr.mxu0 0.0
      %1709 = vmatpush1.msra.mxu0 0.0
      %1710 = vmatprep.subr.mxu0 0.0
      %1711 = vmatpush1.msra.mxu0 0.0
      %1712 = vmatprep.subr.mxu0 0.0
      %1713 = vmatpush1.msra.mxu0 0.0
      %1714 = vmatprep.subr.mxu0 0.0
      %1715 = vmatpush1.msra.mxu0 0.0
      %1716 = vmatprep.subr.mxu0 0.0
      %1717 = vmatpush1.msra.mxu0 0.0
      %1718 = vmatprep.subr.mxu0 0.0
      %1719 = vmatpush1.msra.mxu0 0.0
      %1720 = vmatprep.subr.mxu0 0.0
      %1721 = vmatpush1.msra.mxu0 0.0
      %1722 = vmatprep.subr.mxu0 0.0
      %1723 = vmatpush1.msra.mxu0 0.0
      %1724 = vmatprep.subr.mxu0 0.0
      %1725 = vmatpush1.msra.mxu0 0.0
      %1726 = vmatprep.subr.mxu0 0.0
      %1727 = vmatpush1.msra.mxu0 0.0
      %1728 = vmatprep.subr.mxu0 0.0
      %1729 = vmatpush1.msra.mxu0 0.0
      %1730 = vmatprep.subr.mxu0 0.0
      %1731 = vmatpush1.msra.mxu0 0.0
      %1732 = vmatprep.subr.mxu0 0.0
      %1733 = vmatpush1.msra.mxu0 0.0
      %1734 = vmatprep.subr.mxu0 0.0
      %1735 = vmatpush1.msra.mxu0 0.0
      %1736 = vmatprep.subr.mxu0 0.0
      %1737 = vmatpush1.msra.mxu0 0.0
      %1738 = vmatprep.subr.mxu0 0.0
      %1739 = vmatpush1.msra.mxu0 0.0
      %1740 = vmatprep.subr.mxu0 0.0
      %1741 = vmatpush1.msra.mxu0 0.0
      %1742 = vmatprep.subr.mxu0 0.0
      %1743 = vmatpush1.msra.mxu0 0.0
      %1744 = vmatprep.subr.mxu0 0.0
      %1745 = vmatpush1.msra.mxu0 0.0
      %1746 = vmatprep.subr.mxu0 0.0
      %1747 = vmatpush1.msra.mxu0 0.0
      %1748 = vmatprep.subr.mxu0 0.0
      %1749 = vmatpush1.msra.mxu0 0.0
      %1750 = vmatprep.subr.mxu0 0.0
      %1751 = vmatpush1.msra.mxu0 0.0
      %1752 = vmatprep.subr.mxu0 0.0
      %1753 = vmatpush1.msra.mxu0 0.0
      %1754 = vmatprep.subr.mxu0 0.0
      %1755 = vmatpush1.msra.mxu0 0.0
      %1756 = vmatprep.subr.mxu0 0.0
      %1757 = vmatpush1.msra.mxu0 0.0
      %1758 = vmatprep.subr.mxu0 0.0
      %1759 = vmatpush1.msra.mxu0 0.0
      %1760 = vmatprep.mubr.f32.mxu0 0.0
      %1761 = vmatmul.mubr.f32.gmra.mrb[0].mxu0 %v1694
      %v1762 = vpop.f32.mrb[0].mxu0
      %v1763 = vadd.f32 %v1691, %v1762
      %v1764 = vpop.f32.mrb[0].mxu0
      %1765 = vdwg.mxu0
      %v1766 = vmax.f32 %v1763, 0.0
      %vm1767 = vcmp.ne.f32.partialorder %v1763, %v1763
      %v1768 = vadd.f32 %v1763, 0.0
      %v1769 = vand.u32 2147483647, %v1763
      %v1770 = vsub.f32 0.0, %v1769
      %v1771 = vmul.f32 %v1770, 1.442695
      %v1772 = vpow.pop %v1771
      %v1773 = vadd.f32 %v1772, 1.0
      %v1774 = vlog2.pop %v1773
      %v1775 = vmul.f32 %v1774, 0.6931472
      %v1776 = vmul.f32 -0.5, %v1772
      %v1777 = vadd.f32 %v1776, 1.0
      %v1778 = vmul.f32 %v1777, %v1772
      %v1779 = vand.u32 2147483647, %v1772
      %vm1780 = vcmp.lt.f32.partialorder %v1779, 0.0004427343
      %v1781 = vsel %vm1780, %v1778, %v1775
      %v1782 = vadd.f32 %v1766, %v1781
      %v1783 = vsel %vm1767, %v1768, %v1782
      %v1784 = vtanh.pop %v1783
      %v1785 = vmul.f32 %v1763, %v1784
      %v1786 = vld [vmem:[%s14] sm:$0xff]
      %v1787 = vld [vmem:[%s14 + $0x8] sm:$0xff]
      %v1788 = vld [vmem:[%s14 + $0x10] sm:$0xff]
      %v1789 = vld [vmem:[%s14 + $0x18] sm:$0xff]
      %v1790 = vld [vmem:[%s14 + $0x20] sm:$0xff]
      %v1791 = vld [vmem:[%s14 + $0x28] sm:$0xff]
      %v1792 = vld [vmem:[%s14 + $0x30] sm:$0xff]
      %v1793 = vld [vmem:[%s14 + $0x38] sm:$0xff]
      %v1794 = vld [vmem:[%s15] sm:$0x1]
      %v1796 = vlaneseq
      %v1797 = vshrl.u32 %v1796, 7
      %v1798 = vsub.s32 0, %v1797
      %v1799 = vrot.slane %v1794, %v1798
      %vm1801 = vcmask 523264
      %v1803 = vsel %vm1801, %v1785, 0
      %1805 = vmatprep.subr.mxu0 0.0
      %1806 = vmatpush1.msra.mxu0 %v1786
      %1807 = vmatprep.subr.mxu0 0.0
      %1808 = vmatpush1.msra.mxu0 %v1787
      %1809 = vmatprep.subr.mxu0 0.0
      %1810 = vmatpush1.msra.mxu0 %v1788
      %1811 = vmatprep.subr.mxu0 0.0
      %1812 = vmatpush1.msra.mxu0 %v1789
      %1813 = vmatprep.subr.mxu0 0.0
      %1814 = vmatpush1.msra.mxu0 %v1790
      %1815 = vmatprep.subr.mxu0 0.0
      %1816 = vmatpush1.msra.mxu0 %v1791
      %1817 = vmatprep.subr.mxu0 0.0
      %1818 = vmatpush1.msra.mxu0 %v1792
      %1819 = vmatprep.subr.mxu0 0.0
      %1820 = vmatpush1.msra.mxu0 %v1793
      %1821 = vmatprep.subr.mxu0 0.0
      %1822 = vmatpush1.msra.mxu0 0.0
      %1823 = vmatprep.subr.mxu0 0.0
      %1824 = vmatpush1.msra.mxu0 0.0
      %1825 = vmatprep.subr.mxu0 0.0
      %1826 = vmatpush1.msra.mxu0 0.0
      %1827 = vmatprep.subr.mxu0 0.0
      %1828 = vmatpush1.msra.mxu0 0.0
      %1829 = vmatprep.subr.mxu0 0.0
      %1830 = vmatpush1.msra.mxu0 0.0
      %1831 = vmatprep.subr.mxu0 0.0
      %1832 = vmatpush1.msra.mxu0 0.0
      %1833 = vmatprep.subr.mxu0 0.0
      %1834 = vmatpush1.msra.mxu0 0.0
      %1835 = vmatprep.subr.mxu0 0.0
      %1836 = vmatpush1.msra.mxu0 0.0
      %1837 = vmatprep.subr.mxu0 0.0
      %1838 = vmatpush1.msra.mxu0 0.0
      %1839 = vmatprep.subr.mxu0 0.0
      %1840 = vmatpush1.msra.mxu0 0.0
      %1841 = vmatprep.subr.mxu0 0.0
      %1842 = vmatpush1.msra.mxu0 0.0
      %1843 = vmatprep.subr.mxu0 0.0
      %1844 = vmatpush1.msra.mxu0 0.0
      %1845 = vmatprep.subr.mxu0 0.0
      %1846 = vmatpush1.msra.mxu0 0.0
      %1847 = vmatprep.subr.mxu0 0.0
      %1848 = vmatpush1.msra.mxu0 0.0
      %1849 = vmatprep.subr.mxu0 0.0
      %1850 = vmatpush1.msra.mxu0 0.0
      %1851 = vmatprep.subr.mxu0 0.0
      %1852 = vmatpush1.msra.mxu0 0.0
      %1853 = vmatprep.subr.mxu0 0.0
      %1854 = vmatpush1.msra.mxu0 0.0
      %1855 = vmatprep.subr.mxu0 0.0
      %1856 = vmatpush1.msra.mxu0 0.0
      %1857 = vmatprep.subr.mxu0 0.0
      %1858 = vmatpush1.msra.mxu0 0.0
      %1859 = vmatprep.subr.mxu0 0.0
      %1860 = vmatpush1.msra.mxu0 0.0
      %1861 = vmatprep.subr.mxu0 0.0
      %1862 = vmatpush1.msra.mxu0 0.0
      %1863 = vmatprep.subr.mxu0 0.0
      %1864 = vmatpush1.msra.mxu0 0.0
      %1865 = vmatprep.subr.mxu0 0.0
      %1866 = vmatpush1.msra.mxu0 0.0
      %1867 = vmatprep.subr.mxu0 0.0
      %1868 = vmatpush1.msra.mxu0 0.0
      %1869 = vmatprep.mubr.f32.mxu0 0.0
      %1870 = vmatmul.mubr.f32.gmra.mrb[0].mxu0 %v1803
      %v1871 = vpop.f32.mrb[0].mxu0
      %v1872 = vadd.f32 %v1799, %v1871
      %v1873 = vpop.f32.mrb[0].mxu0
      %1874 = vdwg.mxu0
      %v1875 = vadd.f32 %v1652, %v1872
      %1876 = vst.msk [vmem:[%s587] sm:$0xff] %vm591, %v1875
      %p1877 = scmp.lt.s32.totalorder %s29, 1
      %s1878 = scalar_select %p1877, %s29, 1
      %s1879 = smul.addr %s1878, 8
      %s1880 = scalar_lea.vmem %s18, %s1879
      // Predicated region
      $region93: #{decoder_forward.2} parent=91 // pred_check
        %p1881 = pneg %p435
      $region94: #{decoder_forward.2} parent=91 // pred_check_branch
        %1883 = sbr.rel (%p1881) target = $region96
      $region95: #{decoder_forward.2} parent=91 // pred_region
        _
      $region96: #{decoder_forward.2} parent=91 // pred_fallthru
        _
    $region92: #{decoder_forward.2} parent=5 // pred_fallthru
      _
    %p1884 = scmp.le.s32.totalorder 2, %s24
    // Predicated region
    $region97: #{decoder_forward.2} parent=5 // pred_check
      %p1885 = pneg %p1884
    $region98: #{decoder_forward.2} parent=5 // pred_check_branch
      %1887 = sbr.rel (%p1885) target = $region100
    $region99: #{decoder_forward.2} parent=5 // pred_region
      %s1888 = ssub.s32 %s24, 2
      // Predicated region
      $region101: #{decoder_forward.2} parent=99 // pred_check
        %p1889 = pneg %p441
      $region102: #{decoder_forward.2} parent=99 // pred_check_branch
        %1891 = sbr.rel (%p1889) target = $region104
      $region103: #{decoder_forward.2} parent=99 // pred_region
        %p1892 = scmp.lt.s32.totalorder %s30, 1
        %s1893 = scalar_select %p1892, %s30, 1
        %s1894 = smul.addr %s1893, 8
        %s1895 = scalar_lea.vmem %s18, %s1894
      $region104: #{decoder_forward.2} parent=99 // pred_fallthru
        _
    $region100: #{decoder_forward.2} parent=5 // pred_fallthru
      _
  $region6: #{decoder_forward.2} parent=0 // loop_footer
    %s28 = sadd.s32 1, %s24
  $region7: #{decoder_forward.2} parent=0 // loop_footer_branch
    %23 = sbr.rel target = $region3
  $region8: #{decoder_forward.2} parent=0 // loop_exit
    _

// kernel: decoder_forward.3
$region0: #{decoder_forward.3}
  #allocation0 [shape = 'u32[]', space=smem, size = 0x4, offset = 0x4, fixed_abs, tag = 'smem constant byte address 0x4 - core index']
  #allocation1 [shape = 'u32[144,128]{1,0:T(1,128)}', space=vmem, size = 0x12000, scoped, tag = 'internal scratch']
  #allocation2 [shape = 'f32[8,32]{1,0:T(8,128)}', space=vmem, size = 0x1000, scoped, tag = 'scratch operand']
  %s0 = inlined_call_operand.hbm [shape: f32[2,8,32], index: 0, kind: input, shape index: {}, may-alias: {0,18}]
  %s1 = inlined_call_operand.vmem [shape: f32[2,8,32], index: 1, kind: input, shape index: {}]
  %s2 = inlined_call_operand.vmem [shape: f32[32,96], index: 2, kind: input, shape index: {}]
  %s3 = inlined_call_operand.vmem [shape: f32[32,32], index: 3, kind: input, shape index: {}]
  %s4 = inlined_call_operand.vmem [shape: f32[1,32], index: 4, kind: input, shape index: {}]
  %s5 = inlined_call_operand.vmem [shape: f32[1,32], index: 5, kind: input, shape index: {}]
  %s6 = inlined_call_operand.vmem [shape: f32[1,32], index: 6, kind: input, shape index: {}]
  %s7 = inlined_call_operand.vmem [shape: f32[32,32], index: 7, kind: input, shape index: {}]
  %s8 = inlined_call_operand.vmem [shape: f32[32,32], index: 8, kind: input, shape index: {}]
  %s9 = inlined_call_operand.vmem [shape: f32[1,32], index: 9, kind: input, shape index: {}]
  %s10 = inlined_call_operand.vmem [shape: f32[1,32], index: 10, kind: input, shape index: {}]
  %s11 = inlined_call_operand.vmem [shape: f32[1,32], index: 11, kind: input, shape index: {}]
  %s12 = inlined_call_operand.vmem [shape: f32[32,64], index: 12, kind: input, shape index: {}]
  %s13 = inlined_call_operand.vmem [shape: f32[1,64], index: 13, kind: input, shape index: {}]
  %s14 = inlined_call_operand.vmem [shape: f32[64,32], index: 14, kind: input, shape index: {}]
  %s15 = inlined_call_operand.vmem [shape: f32[1,32], index: 15, kind: input, shape index: {}]
  %s16 = inlined_call_operand.vmem [shape: f32[1,32], index: 16, kind: input, shape index: {}]
  %s17 = inlined_call_operand.vmem [shape: f32[1,32], index: 17, kind: input, shape index: {}]
  %s18 = inlined_call_operand.hbm [shape: f32[2,8,32], index: 18, kind: output, shape index: {}, may-alias: {0,18}]
  %s19 = sld [smem:[#allocation0]]
  $region109: #{decoder_forward.3} parent=0
    _
  %s21 = ssub.s32 1, %s19
  %s22 = scalar_select 0, %s21, %s19
  $region1: #{decoder_forward.3} parent=0
    #allocation3 [shape = 'u8[8192]{0}', space=vmem, size = 0x2000, scoped, tag = 'input window, operand 0']
    #allocation4 [shape = 's32[2]{0}', space=sflag, size = 0x8, scoped, tag = 'scoped memory for decoder_forward.3']
    #allocation5 [shape = 's32[2]{0}', space=sflag, size = 0x8, scoped, tag = 'scoped memory for decoder_forward.3']
    #allocation6 [shape = 'u8[8192]{0}', space=vmem, size = 0x2000, scoped, tag = 'output window, operand 0']
    %23 = vsyncpa [#allocation4], 0
    %s24 = scalar_lea.sflag [#allocation4], 1
    %25 = vsyncpa %s24, 0
    %26 = vsyncpa [#allocation5], 0
    %s27 = scalar_lea.sflag [#allocation5], 1
    %28 = vsyncpa %s27, 0
    loop: start=0, step=1, limit=4
    $region2: #{decoder_forward.3} parent=1 // loop_pre_header
      _
    $region3: #{decoder_forward.3} parent=1 // loop_header
      %s30 = sphi 0, %s34
      %p31 = scmp.ge.s32.totalorder %s30, 4
      %s40 = sphi 0, %s42
      %s43 = sphi 0, %s40
      %s44 = sphi 0, %s43
      %s60 = sphi 0, %s44
      %s66 = sphi 0, %s68
      %s69 = sphi 0, %s66
      %s70 = sphi 0, %s69
      %s86 = sphi 0, %s70
      %s90 = sphi 0, %s90
      %s92 = sphi 0, %s90
      %s93 = sphi 0, %s92
      %s107 = sphi 0, %s93
      %s111 = sphi 0, %s111
      %s113 = sphi 0, %s111
      %s114 = sphi 0, %s113
      %s128 = sphi 0, %s114
      %s132 = sphi 0, %s132
      %s134 = sphi 0, %s132
      %s135 = sphi 0, %s134
      %s149 = sphi 0, %s135
      %s153 = sphi 0, %s153
      %s155 = sphi 0, %s153
      %s156 = sphi 0, %s155
      %s170 = sphi 0, %s156
      %s174 = sphi 0, %s174
      %s176 = sphi 0, %s174
      %s177 = sphi 0, %s176
      %s191 = sphi 0, %s177
      %s195 = sphi 0, %s195
      %s197 = sphi 0, %s195
      %s198 = sphi 0, %s197
      %s212 = sphi 0, %s198
      %s216 = sphi 0, %s216
      %s218 = sphi 0, %s216
      %s219 = sphi 0, %s218
      %s233 = sphi 0, %s219
      %s237 = sphi 0, %s237
      %s239 = sphi 0, %s237
      %s240 = sphi 0, %s239
      %s254 = sphi 0, %s240
      %s258 = sphi 0, %s258
      %s260 = sphi 0, %s258
      %s261 = sphi 0, %s260
      %s275 = sphi 0, %s261
      %s279 = sphi 0, %s279
      %s281 = sphi 0, %s279
      %s282 = sphi 0, %s281
      %s296 = sphi 0, %s282
      %s300 = sphi 0, %s300
      %s302 = sphi 0, %s300
      %s303 = sphi 0, %s302
      %s317 = sphi 0, %s303
      %s321 = sphi 0, %s321
      %s323 = sphi 0, %s321
      %s324 = sphi 0, %s323
      %s338 = sphi 0, %s324
      %s342 = sphi 0, %s342
      %s344 = sphi 0, %s342
      %s345 = sphi 0, %s344
      %s359 = sphi 0, %s345
      %s363 = sphi 0, %s363
      %s365 = sphi 0, %s363
      %s366 = sphi 0, %s365
      %s380 = sphi 0, %s366
      %s384 = sphi 0, %s384
      %s386 = sphi 0, %s384
      %s387 = sphi 0, %s386
      %s401 = sphi 0, %s387
      %s405 = sphi 0, %s405
      %s407 = sphi 0, %s405
      %s408 = sphi 0, %s407
      %s422 = sphi 0, %s408
      %s428 = sphi 0, %s430
      %s431 = sphi 0, %s428
      %s432 = sphi 0, %s431
      %s448 = sphi 0, %s432
    $region4: #{decoder_forward.3} parent=1 // loop_header_branch
      %33 = sbr.rel (%p31) target = $region8
    $region5: #{decoder_forward.3} parent=1 // loop_body
      %s35 = ssub.s32 %s30, 1
      %s36 = ssub.s32 %s30, 2
      %s37 = sadd.s32 %s30, 1
      %s38 = ssub.s32 %s30, %s37
      %p39 = scmp.eq.s32.totalorder %s38, 0
      %s41 = sadd.s32 %s40, 1
      %s42 = scalar_select %p39, %s40, %s41
      %p45 = pneg %p39
      %p46 = scmp.eq.s32.totalorder %s30, 1
      %p47 = por %p45, %p46
      %p48 = scmp.ne.s32.totalorder %s40, %s43
      %p49 = scmp.eq.s32.totalorder %s30, 0
      %p50 = por %p48, %p49
      %p51 = scmp.ne.s32.totalorder %s40, %s43
      %p52 = scmp.eq.s32.totalorder %s35, 1
      %p53 = por %p51, %p52
      %p54 = scmp.ne.s32.totalorder %s43, %s44
      %p55 = scmp.eq.s32.totalorder %s35, 0
      %p56 = por %p54, %p55
      %p57 = scmp.ne.s32.totalorder %s43, %s44
      %p58 = scmp.eq.s32.totalorder %s36, 1
      %p59 = por %p57, %p58
      %p61 = scmp.ne.s32.totalorder %s44, %s60
      %p62 = scmp.eq.s32.totalorder %s36, 0
      %p63 = por %p61, %p62
      %s64 = ssub.s32 %s30, %s37
      %p65 = scmp.eq.s32.totalorder %s64, 0
      %s67 = sadd.s32 %s66, 1
      %s68 = scalar_select %p65, %s66, %s67
      %p71 = pneg %p65
      %p72 = scmp.eq.s32.totalorder %s30, 1
      %p73 = por %p71, %p72
      %p74 = scmp.ne.s32.totalorder %s66, %s69
      %p75 = scmp.eq.s32.totalorder %s30, 0
      %p76 = por %p74, %p75
      %p77 = scmp.ne.s32.totalorder %s66, %s69
      %p78 = scmp.eq.s32.totalorder %s35, 1
      %p79 = por %p77, %p78
      %p80 = scmp.ne.s32.totalorder %s69, %s70
      %p81 = scmp.eq.s32.totalorder %s35, 0
      %p82 = por %p80, %p81
      %p83 = scmp.ne.s32.totalorder %s69, %s70
      %p84 = scmp.eq.s32.totalorder %s36, 1
      %p85 = por %p83, %p84
      %p87 = scmp.ne.s32.totalorder %s70, %s86
      %p88 = scmp.eq.s32.totalorder %s36, 0
      %p89 = por %p87, %p88
      %s91 = sadd.s32 %s90, 1
      %p94 = scmp.eq.s32.totalorder %s30, 1
      %p95 = scmp.ne.s32.totalorder %s90, %s92
      %p96 = scmp.eq.s32.totalorder %s30, 0
      %p97 = por %p95, %p96
      %p98 = scmp.ne.s32.totalorder %s90, %s92
      %p99 = scmp.eq.s32.totalorder %s35, 1
      %p100 = por %p98, %p99
      %p101 = scmp.ne.s32.totalorder %s92, %s93
      %p102 = scmp.eq.s32.totalorder %s35, 0
      %p103 = por %p101, %p102
      %p104 = scmp.ne.s32.totalorder %s92, %s93
      %p105 = scmp.eq.s32.totalorder %s36, 1
      %p106 = por %p104, %p105
      %p108 = scmp.ne.s32.totalorder %s93, %s107
      %p109 = scmp.eq.s32.totalorder %s36, 0
      %p110 = por %p108, %p109
      %s112 = sadd.s32 %s111, 1
      %p115 = scmp.eq.s32.totalorder %s30, 1
      %p116 = scmp.ne.s32.totalorder %s111, %s113
      %p117 = scmp.eq.s32.totalorder %s30, 0
      %p118 = por %p116, %p117
      %p119 = scmp.ne.s32.totalorder %s111, %s113
      %p120 = scmp.eq.s32.totalorder %s35, 1
      %p121 = por %p119, %p120
      %p122 = scmp.ne.s32.totalorder %s113, %s114
      %p123 = scmp.eq.s32.totalorder %s35, 0
      %p124 = por %p122, %p123
      %p125 = scmp.ne.s32.totalorder %s113, %s114
      %p126 = scmp.eq.s32.totalorder %s36, 1
      %p127 = por %p125, %p126
      %p129 = scmp.ne.s32.totalorder %s114, %s128
      %p130 = scmp.eq.s32.totalorder %s36, 0
      %p131 = por %p129, %p130
      %s133 = sadd.s32 %s132, 1
      %p136 = scmp.eq.s32.totalorder %s30, 1
      %p137 = scmp.ne.s32.totalorder %s132, %s134
      %p138 = scmp.eq.s32.totalorder %s30, 0
      %p139 = por %p137, %p138
      %p140 = scmp.ne.s32.totalorder %s132, %s134
      %p141 = scmp.eq.s32.totalorder %s35, 1
      %p142 = por %p140, %p141
      %p143 = scmp.ne.s32.totalorder %s134, %s135
      %p144 = scmp.eq.s32.totalorder %s35, 0
      %p145 = por %p143, %p144
      %p146 = scmp.ne.s32.totalorder %s134, %s135
      %p147 = scmp.eq.s32.totalorder %s36, 1
      %p148 = por %p146, %p147
      %p150 = scmp.ne.s32.totalorder %s135, %s149
      %p151 = scmp.eq.s32.totalorder %s36, 0
      %p152 = por %p150, %p151
      %s154 = sadd.s32 %s153, 1
      %p157 = scmp.eq.s32.totalorder %s30, 1
      %p158 = scmp.ne.s32.totalorder %s153, %s155
      %p159 = scmp.eq.s32.totalorder %s30, 0
      %p160 = por %p158, %p159
      %p161 = scmp.ne.s32.totalorder %s153, %s155
      %p162 = scmp.eq.s32.totalorder %s35, 1
      %p163 = por %p161, %p162
      %p164 = scmp.ne.s32.totalorder %s155, %s156
      %p165 = scmp.eq.s32.totalorder %s35, 0
      %p166 = por %p164, %p165
      %p167 = scmp.ne.s32.totalorder %s155, %s156
      %p168 = scmp.eq.s32.totalorder %s36, 1
      %p169 = por %p167, %p168
      %p171 = scmp.ne.s32.totalorder %s156, %s170
      %p172 = scmp.eq.s32.totalorder %s36, 0
      %p173 = por %p171, %p172
      %s175 = sadd.s32 %s174, 1
      %p178 = scmp.eq.s32.totalorder %s30, 1
      %p179 = scmp.ne.s32.totalorder %s174, %s176
      %p180 = scmp.eq.s32.totalorder %s30, 0
      %p181 = por %p179, %p180
      %p182 = scmp.ne.s32.totalorder %s174, %s176
      %p183 = scmp.eq.s32.totalorder %s35, 1
      %p184 = por %p182, %p183
      %p185 = scmp.ne.s32.totalorder %s176, %s177
      %p186 = scmp.eq.s32.totalorder %s35, 0
      %p187 = por %p185, %p186
      %p188 = scmp.ne.s32.totalorder %s176, %s177
      %p189 = scmp.eq.s32.totalorder %s36, 1
      %p190 = por %p188, %p189
      %p192 = scmp.ne.s32.totalorder %s177, %s191
      %p193 = scmp.eq.s32.totalorder %s36, 0
      %p194 = por %p192, %p193
      %s196 = sadd.s32 %s195, 1
      %p199 = scmp.eq.s32.totalorder %s30, 1
      %p200 = scmp.ne.s32.totalorder %s195, %s197
      %p201 = scmp.eq.s32.totalorder %s30, 0
      %p202 = por %p200, %p201
      %p203 = scmp.ne.s32.totalorder %s195, %s197
      %p204 = scmp.eq.s32.totalorder %s35, 1
      %p205 = por %p203, %p204
      %p206 = scmp.ne.s32.totalorder %s197, %s198
      %p207 = scmp.eq.s32.totalorder %s35, 0
      %p208 = por %p206, %p207
      %p209 = scmp.ne.s32.totalorder %s197, %s198
      %p210 = scmp.eq.s32.totalorder %s36, 1
      %p211 = por %p209, %p210
      %p213 = scmp.ne.s32.totalorder %s198, %s212
      %p214 = scmp.eq.s32.totalorder %s36, 0
      %p215 = por %p213, %p214
      %s217 = sadd.s32 %s216, 1
      %p220 = scmp.eq.s32.totalorder %s30, 1
      %p221 = scmp.ne.s32.totalorder %s216, %s218
      %p222 = scmp.eq.s32.totalorder %s30, 0
      %p223 = por %p221, %p222
      %p224 = scmp.ne.s32.totalorder %s216, %s218
      %p225 = scmp.eq.s32.totalorder %s35, 1
      %p226 = por %p224, %p225
      %p227 = scmp.ne.s32.totalorder %s218, %s219
      %p228 = scmp.eq.s32.totalorder %s35, 0
      %p229 = por %p227, %p228
      %p230 = scmp.ne.s32.totalorder %s218, %s219
      %p231 = scmp.eq.s32.totalorder %s36, 1
      %p232 = por %p230, %p231
      %p234 = scmp.ne.s32.totalorder %s219, %s233
      %p235 = scmp.eq.s32.totalorder %s36, 0
      %p236 = por %p234, %p235
      %s238 = sadd.s32 %s237, 1
      %p241 = scmp.eq.s32.totalorder %s30, 1
      %p242 = scmp.ne.s32.totalorder %s237, %s239
      %p243 = scmp.eq.s32.totalorder %s30, 0
      %p244 = por %p242, %p243
      %p245 = scmp.ne.s32.totalorder %s237, %s239
      %p246 = scmp.eq.s32.totalorder %s35, 1
      %p247 = por %p245, %p246
      %p248 = scmp.ne.s32.totalorder %s239, %s240
      %p249 = scmp.eq.s32.totalorder %s35, 0
      %p250 = por %p248, %p249
      %p251 = scmp.ne.s32.totalorder %s239, %s240
      %p252 = scmp.eq.s32.totalorder %s36, 1
      %p253 = por %p251, %p252
      %p255 = scmp.ne.s32.totalorder %s240, %s254
      %p256 = scmp.eq.s32.totalorder %s36, 0
      %p257 = por %p255, %p256
      %s259 = sadd.s32 %s258, 1
      %p262 = scmp.eq.s32.totalorder %s30, 1
      %p263 = scmp.ne.s32.totalorder %s258, %s260
      %p264 = scmp.eq.s32.totalorder %s30, 0
      %p265 = por %p263, %p264
      %p266 = scmp.ne.s32.totalorder %s258, %s260
      %p267 = scmp.eq.s32.totalorder %s35, 1
      %p268 = por %p266, %p267
      %p269 = scmp.ne.s32.totalorder %s260, %s261
      %p270 = scmp.eq.s32.totalorder %s35, 0
      %p271 = por %p269, %p270
      %p272 = scmp.ne.s32.totalorder %s260, %s261
      %p273 = scmp.eq.s32.totalorder %s36, 1
      %p274 = por %p272, %p273
      %p276 = scmp.ne.s32.totalorder %s261, %s275
      %p277 = scmp.eq.s32.totalorder %s36, 0
      %p278 = por %p276, %p277
      %s280 = sadd.s32 %s279, 1
      %p283 = scmp.eq.s32.totalorder %s30, 1
      %p284 = scmp.ne.s32.totalorder %s279, %s281
      %p285 = scmp.eq.s32.totalorder %s30, 0
      %p286 = por %p284, %p285
      %p287 = scmp.ne.s32.totalorder %s279, %s281
      %p288 = scmp.eq.s32.totalorder %s35, 1
      %p289 = por %p287, %p288
      %p290 = scmp.ne.s32.totalorder %s281, %s282
      %p291 = scmp.eq.s32.totalorder %s35, 0
      %p292 = por %p290, %p291
      %p293 = scmp.ne.s32.totalorder %s281, %s282
      %p294 = scmp.eq.s32.totalorder %s36, 1
      %p295 = por %p293, %p294
      %p297 = scmp.ne.s32.totalorder %s282, %s296
      %p298 = scmp.eq.s32.totalorder %s36, 0
      %p299 = por %p297, %p298
      %s301 = sadd.s32 %s300, 1
      %p304 = scmp.eq.s32.totalorder %s30, 1
      %p305 = scmp.ne.s32.totalorder %s300, %s302
      %p306 = scmp.eq.s32.totalorder %s30, 0
      %p307 = por %p305, %p306
      %p308 = scmp.ne.s32.totalorder %s300, %s302
      %p309 = scmp.eq.s32.totalorder %s35, 1
      %p310 = por %p308, %p309
      %p311 = scmp.ne.s32.totalorder %s302, %s303
      %p312 = scmp.eq.s32.totalorder %s35, 0
      %p313 = por %p311, %p312
      %p314 = scmp.ne.s32.totalorder %s302, %s303
      %p315 = scmp.eq.s32.totalorder %s36, 1
      %p316 = por %p314, %p315
      %p318 = scmp.ne.s32.totalorder %s303, %s317
      %p319 = scmp.eq.s32.totalorder %s36, 0
      %p320 = por %p318, %p319
      %s322 = sadd.s32 %s321, 1
      %p325 = scmp.eq.s32.totalorder %s30, 1
      %p326 = scmp.ne.s32.totalorder %s321, %s323
      %p327 = scmp.eq.s32.totalorder %s30, 0
      %p328 = por %p326, %p327
      %p329 = scmp.ne.s32.totalorder %s321, %s323
      %p330 = scmp.eq.s32.totalorder %s35, 1
      %p331 = por %p329, %p330
      %p332 = scmp.ne.s32.totalorder %s323, %s324
      %p333 = scmp.eq.s32.totalorder %s35, 0
      %p334 = por %p332, %p333
      %p335 = scmp.ne.s32.totalorder %s323, %s324
      %p336 = scmp.eq.s32.totalorder %s36, 1
      %p337 = por %p335, %p336
      %p339 = scmp.ne.s32.totalorder %s324, %s338
      %p340 = scmp.eq.s32.totalorder %s36, 0
      %p341 = por %p339, %p340
      %s343 = sadd.s32 %s342, 1
      %p346 = scmp.eq.s32.totalorder %s30, 1
      %p347 = scmp.ne.s32.totalorder %s342, %s344
      %p348 = scmp.eq.s32.totalorder %s30, 0
      %p349 = por %p347, %p348
      %p350 = scmp.ne.s32.totalorder %s342, %s344
      %p351 = scmp.eq.s32.totalorder %s35, 1
      %p352 = por %p350, %p351
      %p353 = scmp.ne.s32.totalorder %s344, %s345
      %p354 = scmp.eq.s32.totalorder %s35, 0
      %p355 = por %p353, %p354
      %p356 = scmp.ne.s32.totalorder %s344, %s345
      %p357 = scmp.eq.s32.totalorder %s36, 1
      %p358 = por %p356, %p357
      %p360 = scmp.ne.s32.totalorder %s345, %s359
      %p361 = scmp.eq.s32.totalorder %s36, 0
      %p362 = por %p360, %p361
      %s364 = sadd.s32 %s363, 1
      %p367 = scmp.eq.s32.totalorder %s30, 1
      %p368 = scmp.ne.s32.totalorder %s363, %s365
      %p369 = scmp.eq.s32.totalorder %s30, 0
      %p370 = por %p368, %p369
      %p371 = scmp.ne.s32.totalorder %s363, %s365
      %p372 = scmp.eq.s32.totalorder %s35, 1
      %p373 = por %p371, %p372
      %p374 = scmp.ne.s32.totalorder %s365, %s366
      %p375 = scmp.eq.s32.totalorder %s35, 0
      %p376 = por %p374, %p375
      %p377 = scmp.ne.s32.totalorder %s365, %s366
      %p378 = scmp.eq.s32.totalorder %s36, 1
      %p379 = por %p377, %p378
      %p381 = scmp.ne.s32.totalorder %s366, %s380
      %p382 = scmp.eq.s32.totalorder %s36, 0
      %p383 = por %p381, %p382
      %s385 = sadd.s32 %s384, 1
      %p388 = scmp.eq.s32.totalorder %s30, 1
      %p389 = scmp.ne.s32.totalorder %s384, %s386
      %p390 = scmp.eq.s32.totalorder %s30, 0
      %p391 = por %p389, %p390
      %p392 = scmp.ne.s32.totalorder %s384, %s386
      %p393 = scmp.eq.s32.totalorder %s35, 1
      %p394 = por %p392, %p393
      %p395 = scmp.ne.s32.totalorder %s386, %s387
      %p396 = scmp.eq.s32.totalorder %s35, 0
      %p397 = por %p395, %p396
      %p398 = scmp.ne.s32.totalorder %s386, %s387
      %p399 = scmp.eq.s32.totalorder %s36, 1
      %p400 = por %p398, %p399
      %p402 = scmp.ne.s32.totalorder %s387, %s401
      %p403 = scmp.eq.s32.totalorder %s36, 0
      %p404 = por %p402, %p403
      %s406 = sadd.s32 %s405, 1
      %p409 = scmp.eq.s32.totalorder %s30, 1
      %p410 = scmp.ne.s32.totalorder %s405, %s407
      %p411 = scmp.eq.s32.totalorder %s30, 0
      %p412 = por %p410, %p411
      %p413 = scmp.ne.s32.totalorder %s405, %s407
      %p414 = scmp.eq.s32.totalorder %s35, 1
      %p415 = por %p413, %p414
      %p416 = scmp.ne.s32.totalorder %s407, %s408
      %p417 = scmp.eq.s32.totalorder %s35, 0
      %p418 = por %p416, %p417
      %p419 = scmp.ne.s32.totalorder %s407, %s408
      %p420 = scmp.eq.s32.totalorder %s36, 1
      %p421 = por %p419, %p420
      %p423 = scmp.ne.s32.totalorder %s408, %s422
      %p424 = scmp.eq.s32.totalorder %s36, 0
      %p425 = por %p423, %p424
      %s426 = ssub.s32 %s30, %s37
      %p427 = scmp.eq.s32.totalorder %s426, 0
      %s429 = sadd.s32 %s428, 1
      %s430 = scalar_select %p427, %s428, %s429
      %p433 = pneg %p427
      %p434 = scmp.eq.s32.totalorder %s30, 1
      %p435 = por %p433, %p434
      %p436 = scmp.ne.s32.totalorder %s428, %s431
      %p437 = scmp.eq.s32.totalorder %s30, 0
      %p438 = por %p436, %p437
      %p439 = scmp.ne.s32.totalorder %s428, %s431
      %p440 = scmp.eq.s32.totalorder %s35, 1
      %p441 = por %p439, %p440
      %p442 = scmp.ne.s32.totalorder %s431, %s432
      %p443 = scmp.eq.s32.totalorder %s35, 0
      %p444 = por %p442, %p443
      %p445 = scmp.ne.s32.totalorder %s431, %s432
      %p446 = scmp.eq.s32.totalorder %s36, 1
      %p447 = por %p445, %p446
      %p449 = scmp.ne.s32.totalorder %s432, %s448
      %p450 = scmp.eq.s32.totalorder %s36, 0
      %p451 = por %p449, %p450
      %p452 = scmp.le.s32.totalorder 1, %s30
      %p453 = scmp.lt.s32.totalorder %s30, 3
      %p454 = pnand %p452, %p453
      %p455 = pneg %p454
      // Predicated region
      $region9: #{decoder_forward.3} parent=5 // pred_check
        _
      $region10: #{decoder_forward.3} parent=5 // pred_check_branch
        %457 = sbr.rel (%p454) target = $region12
      $region11: #{decoder_forward.3} parent=5 // pred_region
        %s458 = ssub.s32 %s30, 1
        // Predicated region
        $region13: #{decoder_forward.3} parent=11 // pred_check
          %p459 = pneg %p103
        $region14: #{decoder_forward.3} parent=11 // pred_check_branch
          %461 = sbr.rel (%p459) target = $region16
        $region15: #{decoder_forward.3} parent=11 // pred_region
          _
        $region16: #{decoder_forward.3} parent=11 // pred_fallthru
          _
        // Predicated region
        $region17: #{decoder_forward.3} parent=11 // pred_check
          %p462 = pneg %p124
        $region18: #{decoder_forward.3} parent=11 // pred_check_branch
          %464 = sbr.rel (%p462) target = $region20
        $region19: #{decoder_forward.3} parent=11 // pred_region
          _
        $region20: #{decoder_forward.3} parent=11 // pred_fallthru
          _
        // Predicated region
        $region21: #{decoder_forward.3} parent=11 // pred_check
          %p465 = pneg %p145
        $region22: #{decoder_forward.3} parent=11 // pred_check_branch
          %467 = sbr.rel (%p465) target = $region24
        $region23: #{decoder_forward.3} parent=11 // pred_region
          _
        $region24: #{decoder_forward.3} parent=11 // pred_fallthru
          _
        // Predicated region
        $region25: #{decoder_forward.3} parent=11 // pred_check
          %p468 = pneg %p166
        $region26: #{decoder_forward.3} parent=11 // pred_check_branch
          %470 = sbr.rel (%p468) target = $region28
        $region27: #{decoder_forward.3} parent=11 // pred_region
          _
        $region28: #{decoder_forward.3} parent=11 // pred_fallthru
          _
        // Predicated region
        $region29: #{decoder_forward.3} parent=11 // pred_check
          %p471 = pneg %p187
        $region30: #{decoder_forward.3} parent=11 // pred_check_branch
          %473 = sbr.rel (%p471) target = $region32
        $region31: #{decoder_forward.3} parent=11 // pred_region
          _
        $region32: #{decoder_forward.3} parent=11 // pred_fallthru
          _
        // Predicated region
        $region33: #{decoder_forward.3} parent=11 // pred_check
          %p474 = pneg %p208
        $region34: #{decoder_forward.3} parent=11 // pred_check_branch
          %476 = sbr.rel (%p474) target = $region36
        $region35: #{decoder_forward.3} parent=11 // pred_region
          _
        $region36: #{decoder_forward.3} parent=11 // pred_fallthru
          _
        // Predicated region
        $region37: #{decoder_forward.3} parent=11 // pred_check
          %p477 = pneg %p229
        $region38: #{decoder_forward.3} parent=11 // pred_check_branch
          %479 = sbr.rel (%p477) target = $region40
        $region39: #{decoder_forward.3} parent=11 // pred_region
          _
        $region40: #{decoder_forward.3} parent=11 // pred_fallthru
          _
        // Predicated region
        $region41: #{decoder_forward.3} parent=11 // pred_check
          %p480 = pneg %p250
        $region42: #{decoder_forward.3} parent=11 // pred_check_branch
          %482 = sbr.rel (%p480) target = $region44
        $region43: #{decoder_forward.3} parent=11 // pred_region
          _
        $region44: #{decoder_forward.3} parent=11 // pred_fallthru
          _
        // Predicated region
        $region45: #{decoder_forward.3} parent=11 // pred_check
          %p483 = pneg %p271
        $region46: #{decoder_forward.3} parent=11 // pred_check_branch
          %485 = sbr.rel (%p483) target = $region48
        $region47: #{decoder_forward.3} parent=11 // pred_region
          _
        $region48: #{decoder_forward.3} parent=11 // pred_fallthru
          _
        // Predicated region
        $region49: #{decoder_forward.3} parent=11 // pred_check
          %p486 = pneg %p292
        $region50: #{decoder_forward.3} parent=11 // pred_check_branch
          %488 = sbr.rel (%p486) target = $region52
        $region51: #{decoder_forward.3} parent=11 // pred_region
          _
        $region52: #{decoder_forward.3} parent=11 // pred_fallthru
          _
        // Predicated region
        $region53: #{decoder_forward.3} parent=11 // pred_check
          %p489 = pneg %p313
        $region54: #{decoder_forward.3} parent=11 // pred_check_branch
          %491 = sbr.rel (%p489) target = $region56
        $region55: #{decoder_forward.3} parent=11 // pred_region
          _
        $region56: #{decoder_forward.3} parent=11 // pred_fallthru
          _
        // Predicated region
        $region57: #{decoder_forward.3} parent=11 // pred_check
          %p492 = pneg %p334
        $region58: #{decoder_forward.3} parent=11 // pred_check_branch
          %494 = sbr.rel (%p492) target = $region60
        $region59: #{decoder_forward.3} parent=11 // pred_region
          _
        $region60: #{decoder_forward.3} parent=11 // pred_fallthru
          _
        // Predicated region
        $region61: #{decoder_forward.3} parent=11 // pred_check
          %p495 = pneg %p355
        $region62: #{decoder_forward.3} parent=11 // pred_check_branch
          %497 = sbr.rel (%p495) target = $region64
        $region63: #{decoder_forward.3} parent=11 // pred_region
          _
        $region64: #{decoder_forward.3} parent=11 // pred_fallthru
          _
        // Predicated region
        $region65: #{decoder_forward.3} parent=11 // pred_check
          %p498 = pneg %p376
        $region66: #{decoder_forward.3} parent=11 // pred_check_branch
          %500 = sbr.rel (%p498) target = $region68
        $region67: #{decoder_forward.3} parent=11 // pred_region
          _
        $region68: #{decoder_forward.3} parent=11 // pred_fallthru
          _
        // Predicated region
        $region69: #{decoder_forward.3} parent=11 // pred_check
          %p501 = pneg %p397
        $region70: #{decoder_forward.3} parent=11 // pred_check_branch
          %503 = sbr.rel (%p501) target = $region72
        $region71: #{decoder_forward.3} parent=11 // pred_region
          _
        $region72: #{decoder_forward.3} parent=11 // pred_fallthru
          _
        // Predicated region
        $region73: #{decoder_forward.3} parent=11 // pred_check
          %p504 = pneg %p418
        $region74: #{decoder_forward.3} parent=11 // pred_check_branch
          %506 = sbr.rel (%p504) target = $region76
        $region75: #{decoder_forward.3} parent=11 // pred_region
          _
        $region76: #{decoder_forward.3} parent=11 // pred_fallthru
          _
      $region12: #{decoder_forward.3} parent=5 // pred_fallthru
        _
      %p507 = scmp.lt.s32.totalorder %s30, 2
      // Predicated region
      $region77: #{decoder_forward.3} parent=5 // pred_check
        %p508 = pneg %p507
      $region78: #{decoder_forward.3} parent=5 // pred_check_branch
        %510 = sbr.rel (%p508) target = $region80
      $region79: #{decoder_forward.3} parent=5 // pred_region
        // Predicated region
        $region81: #{decoder_forward.3} parent=79 // pred_check
          %p511 = pneg %p50
        $region82: #{decoder_forward.3} parent=79 // pred_check_branch
          %513 = sbr.rel (%p511) target = $region84
        $region83: #{decoder_forward.3} parent=79 // pred_region
          %s514 = sand.u32 %s40, 1
          %s515 = scalar_lea.sflag [#allocation4], %s514
          %s516 = sand.u32 %s40, 1
          %s517 = smul.addr %s516, 8
          %s518 = scalar_lea.vmem [#allocation3], %s517
          %s520 = ssub.s32 128, 128
          %521 = vsyncadd %s515, %s520
          %s522 = smul.addr %s30, 128
          %s523 = scalar_lea.hbm %s0, %s522
          %s525 = sshll.u32 %s518, 4
          %s526 = int_to_ptr.vmem [resolvable:$true] %s525
          %528 = dma.hbm_to_vmem [thread:$0]  %s523, 128, %s526, %s515
        $region84: #{decoder_forward.3} parent=79 // pred_fallthru
          _
        // Predicated region
        $region85: #{decoder_forward.3} parent=79 // pred_check
          %p529 = pneg %p76
        $region86: #{decoder_forward.3} parent=79 // pred_check_branch
          %531 = sbr.rel (%p529) target = $region88
        $region87: #{decoder_forward.3} parent=79 // pred_region
          %p532 = scmp.lt.s32.totalorder %s30, 1
          %s533 = scalar_select %p532, %s30, 1
          %s534 = smul.addr %s533, 8
          %s535 = scalar_lea.vmem %s1, %s534
        $region88: #{decoder_forward.3} parent=79 // pred_fallthru
          _
      $region80: #{decoder_forward.3} parent=5 // pred_fallthru
        _
      %p536 = scmp.le.s32.totalorder 1, %s30
      %p537 = scmp.lt.s32.totalorder %s30, 3
      %p538 = pnand %p536, %p537
      %p539 = pneg %p538
      // Predicated region
      $region89: #{decoder_forward.3} parent=5 // pred_check
        _
      $region90: #{decoder_forward.3} parent=5 // pred_check_branch
        %541 = sbr.rel (%p538) target = $region92
      $region91: #{decoder_forward.3} parent=5 // pred_region
        %s542 = ssub.s32 %s30, 1
        %s543 = sand.u32 %s43, 1
        %s544 = scalar_lea.sflag [#allocation4], %s543
        %s545 = sand.u32 %s43, 1
        %s546 = smul.addr %s545, 8
        %s547 = scalar_lea.vmem [#allocation3], %s546
        // Predicated region
        $region93: #{decoder_forward.3} parent=91 // pred_check
          %p548 = pneg %p56
        $region94: #{decoder_forward.3} parent=91 // pred_check_branch
          %550 = sbr.rel (%p548) target = $region96
        $region95: #{decoder_forward.3} parent=91 // pred_region
          %551 = dma.done %s544, 128
        $region96: #{decoder_forward.3} parent=91 // pred_fallthru
          _
        %s552 = sand.u32 %s43, 1
        %s553 = scalar_lea.sflag [#allocation4], %s552
        %s554 = sand.u32 %s43, 1
        %s555 = smul.addr %s554, 8
        %s556 = scalar_lea.vmem [#allocation3], %s555
        %p557 = pneg %p56
        %p558 = pneg %p53
        %p559 = scmp.lt.s32.totalorder %s35, 1
        %s560 = scalar_select %p559, %s35, 1
        %s561 = smul.addr %s560, 8
        %s562 = scalar_lea.vmem %s1, %s561
        %p563 = pneg %p82
        %p564 = pneg %p79
        %p565 = pneg %p103
        %p566 = pneg %p100
        %p567 = pneg %p124
        %p568 = pneg %p121
        %p569 = pneg %p145
        %p570 = pneg %p142
        %p571 = pneg %p166
        %p572 = pneg %p163
        %p573 = pneg %p187
        %p574 = pneg %p184
        %p575 = pneg %p208
        %p576 = pneg %p205
        %p577 = pneg %p229
        %p578 = pneg %p226
        %p579 = pneg %p250
        %p580 = pneg %p247
        %p581 = pneg %p271
        %p582 = pneg %p268
        %p583 = pneg %p292
        %p584 = pneg %p289
        %p585 = pneg %p313
        %p586 = pneg %p310
        %p587 = pneg %p334
        %p588 = pneg %p331
        %p589 = pneg %p355
        %p590 = pneg %p352
        %p591 = pneg %p376
        %p592 = pneg %p373
        %p593 = pneg %p397
        %p594 = pneg %p394
        %p595 = pneg %p418
        %p596 = pneg %p415
        %p597 = pneg %p444
        %p598 = pneg %p441
        %s599 = sand.u32 %s431, 1
        %s600 = scalar_lea.sflag [#allocation5], %s599
        %s601 = sand.u32 %s431, 1
        %s602 = smul.addr %s601, 8
        %s603 = scalar_lea.vmem [#allocation6], %s602
        %p604 = scmp.lt.s32.totalorder %s35, 1
        %s605 = scalar_select %p604, %s35, 1
        %s606 = smul.addr %s605, 8
        %s607 = scalar_lea.vmem %s1, %s606
        %v608 = vld [vmem:[%s547] sm:$0xff]
        %v609 = vld [vmem:[%s5] sm:$0x1]
        %v610 = vld [vmem:[%s6] sm:$0x1]
        %vm611 = vcmask 261120
        %v612 = vsel %vm611, %v608, 0.0
        %613 = vadd.xlane.f32.xlu0 %v612
        %v614 = vpop.xlane.xlu0 %613
        %v615 = vrcp.pop 32.0
        %v616 = vmul.f32 %v614, %v615
        %v617 = vsub.f32 %v608, %v616
        %v618 = vmul.f32 %v617, %v617
        %v619 = vsel %vm611, %v618, 0.0
        %620 = vadd.xlane.f32.xlu0 %v619
        %v621 = vpop.xlane.xlu0 %620
        %v622 = vmul.f32 %v621, %v615
        %v623 = vadd.f32 %v622, 1e-05
        %v624 = vrsqrt.pop %v623
        %v625 = vmul.f32 %v617, %v624
        %v627 = vlaneseq
        %v628 = vshrl.u32 %v627, 7
        %v629 = vsub.s32 0, %v628
        %v630 = vrot.slane %v609, %v629
        %v632 = vmul.f32 %v625, %v630
        %v634 = vlaneseq
        %v635 = vshrl.u32 %v634, 7
        %v636 = vsub.s32 0, %v635
        %v637 = vrot.slane %v610, %v636
        %v639 = vadd.f32 %v632, %v637
        %v640 = vld [vmem:[%s2] sm:$0xff]
        %v641 = vld [vmem:[%s2 + $0x8] sm:$0xff]
        %v642 = vld [vmem:[%s2 + $0x10] sm:$0xff]
        %v643 = vld [vmem:[%s2 + $0x18] sm:$0xff]
        %v645 = vsel %vm611, %v639, 0
        %647 = vmatprep.subr.mxu0 0.0
        %648 = vmatpush1.msra.mxu0 %v640
        %649 = vmatprep.subr.mxu0 0.0
        %650 = vmatpush1.msra.mxu0 %v641
        %651 = vmatprep.subr.mxu0 0.0
        %652 = vmatpush1.msra.mxu0 %v642
        %653 = vmatprep.subr.mxu0 0.0
        %654 = vmatpush1.msra.mxu0 %v643
        %655 = vmatprep.subr.mxu0 0.0
        %656 = vmatpush1.msra.mxu0 0.0
        %657 = vmatprep.subr.mxu0 0.0
        %658 = vmatpush1.msra.mxu0 0.0
        %659 = vmatprep.subr.mxu0 0.0
        %660 = vmatpush1.msra.mxu0 0.0
        %661 = vmatprep.subr.mxu0 0.0
        %662 = vmatpush1.msra.mxu0 0.0
        %663 = vmatprep.subr.mxu0 0.0
        %664 = vmatpush1.msra.mxu0 0.0
        %665 = vmatprep.subr.mxu0 0.0
        %666 = vmatpush1.msra.mxu0 0.0
        %667 = vmatprep.subr.mxu0 0.0
        %668 = vmatpush1.msra.mxu0 0.0
        %669 = vmatprep.subr.mxu0 0.0
        %670 = vmatpush1.msra.mxu0 0.0
        %671 = vmatprep.subr.mxu0 0.0
        %672 = vmatpush1.msra.mxu0 0.0
        %673 = vmatprep.subr.mxu0 0.0
        %674 = vmatpush1.msra.mxu0 0.0
        %675 = vmatprep.subr.mxu0 0.0
        %676 = vmatpush1.msra.mxu0 0.0
        %677 = vmatprep.subr.mxu0 0.0
        %678 = vmatpush1.msra.mxu0 0.0
        %679 = vmatprep.subr.mxu0 0.0
        %680 = vmatpush1.msra.mxu0 0.0
        %681 = vmatprep.subr.mxu0 0.0
        %682 = vmatpush1.msra.mxu0 0.0
        %683 = vmatprep.subr.mxu0 0.0
        %684 = vmatpush1.msra.mxu0 0.0
        %685 = vmatprep.subr.mxu0 0.0
        %686 = vmatpush1.msra.mxu0 0.0
        %687 = vmatprep.subr.mxu0 0.0
        %688 = vmatpush1.msra.mxu0 0.0
        %689 = vmatprep.subr.mxu0 0.0
        %690 = vmatpush1.msra.mxu0 0.0
        %691 = vmatprep.subr.mxu0 0.0
        %692 = vmatpush1.msra.mxu0 0.0
        %693 = vmatprep.subr.mxu0 0.0
        %694 = vmatpush1.msra.mxu0 0.0
        %695 = vmatprep.subr.mxu0 0.0
        %696 = vmatpush1.msra.mxu0 0.0
        %697 = vmatprep.subr.mxu0 0.0
        %698 = vmatpush1.msra.mxu0 0.0
        %699 = vmatprep.subr.mxu0 0.0
        %700 = vmatpush1.msra.mxu0 0.0
        %701 = vmatprep.subr.mxu0 0.0
        %702 = vmatpush1.msra.mxu0 0.0
        %703 = vmatprep.subr.mxu0 0.0
        %704 = vmatpush1.msra.mxu0 0.0
        %705 = vmatprep.subr.mxu0 0.0
        %706 = vmatpush1.msra.mxu0 0.0
        %707 = vmatprep.subr.mxu0 0.0
        %708 = vmatpush1.msra.mxu0 0.0
        %709 = vmatprep.subr.mxu0 0.0
        %710 = vmatpush1.msra.mxu0 0.0
        %711 = vmatprep.mubr.f32.mxu0 0.0
        %712 = vmatmul.mubr.f32.gmra.mrb[0].mxu0 %v645
        %v713 = vpop.f32.mrb[0].mxu0
        %v714 = vadd.f32 0.0, %v713
        %v715 = vpop.f32.mrb[0].mxu0
        %716 = vdwg.mxu0
        %v717 = vmul.f32 %v714, 0.25
        %v718 = vlaneseq
        %v719 = vshrl.u32 %v718, 7
        %v720 = vlaneseq
        %v721 = vand.u32 %v720, 127
        %vm722 = vcmp.ge.s32.totalorder %v719, %v721
        %724 = vrot.lane.b32.xlu0 %v714, 96
        %v725 = vpop.permute.xlu0 %724
        %vm726 = vcmask 130048
        %v728 = vsel %vm726, %v717, 0
        %v730 = vsel %vm726, %v725, 0
        %732 = vmatprep.subr.mxu0 0.0
        %733 = vmatpush1.xpose.msra.mxu0 %v730
        %734 = vmatprep.subr.mxu0 0.0
        %735 = vmatpush1.xpose.msra.mxu0 0.0
        %736 = vmatprep.subr.mxu0 0.0
        %737 = vmatpush1.xpose.msra.mxu0 0.0
        %738 = vmatprep.subr.mxu0 0.0
        %739 = vmatpush1.xpose.msra.mxu0 0.0
        %740 = vmatprep.subr.mxu0 0.0
        %741 = vmatpush1.xpose.msra.mxu0 0.0
        %742 = vmatprep.subr.mxu0 0.0
        %743 = vmatpush1.xpose.msra.mxu0 0.0
        %744 = vmatprep.subr.mxu0 0.0
        %745 = vmatpush1.xpose.msra.mxu0 0.0
        %746 = vmatprep.subr.mxu0 0.0
        %747 = vmatpush1.xpose.msra.mxu0 0.0
        %748 = vmatprep.subr.mxu0 0.0
        %749 = vmatpush1.xpose.msra.mxu0 0.0
        %750 = vmatprep.subr.mxu0 0.0
        %751 = vmatpush1.xpose.msra.mxu0 0.0
        %752 = vmatprep.subr.mxu0 0.0
        %753 = vmatpush1.xpose.msra.mxu0 0.0
        %754 = vmatprep.subr.mxu0 0.0
        %755 = vmatpush1.xpose.msra.mxu0 0.0
        %756 = vmatprep.subr.mxu0 0.0
        %757 = vmatpush1.xpose.msra.mxu0 0.0
        %758 = vmatprep.subr.mxu0 0.0
        %759 = vmatpush1.xpose.msra.mxu0 0.0
        %760 = vmatprep.subr.mxu0 0.0
        %761 = vmatpush1.xpose.msra.mxu0 0.0
        %762 = vmatprep.subr.mxu0 0.0
        %763 = vmatpush1.xpose.msra.mxu0 0.0
        %764 = vmatprep.subr.mxu0 0.0
        %765 = vmatpush1.xpose.msra.mxu0 0.0
        %766 = vmatprep.subr.mxu0 0.0
        %767 = vmatpush1.xpose.msra.mxu0 0.0
        %768 = vmatprep.subr.mxu0 0.0
        %769 = vmatpush1.xpose.msra.mxu0 0.0
        %770 = vmatprep.subr.mxu0 0.0
        %771 = vmatpush1.xpose.msra.mxu0 0.0
        %772 = vmatprep.subr.mxu0 0.0
        %773 = vmatpush1.xpose.msra.mxu0 0.0
        %774 = vmatprep.subr.mxu0 0.0
        %775 = vmatpush1.xpose.msra.mxu0 0.0
        %776 = vmatprep.subr.mxu0 0.0
        %777 = vmatpush1.xpose.msra.mxu0 0.0
        %778 = vmatprep.subr.mxu0 0.0
        %779 = vmatpush1.xpose.msra.mxu0 0.0
        %780 = vmatprep.subr.mxu0 0.0
        %781 = vmatpush1.xpose.msra.mxu0 0.0
        %782 = vmatprep.subr.mxu0 0.0
        %783 = vmatpush1.xpose.msra.mxu0 0.0
        %784 = vmatprep.subr.mxu0 0.0
        %785 = vmatpush1.xpose.msra.mxu0 0.0
        %786 = vmatprep.subr.mxu0 0.0
        %787 = vmatpush1.xpose.msra.mxu0 0.0
        %788 = vmatprep.subr.mxu0 0.0
        %789 = vmatpush1.xpose.msra.mxu0 0.0
        %790 = vmatprep.subr.mxu0 0.0
        %791 = vmatpush1.xpose.msra.mxu0 0.0
        %792 = vmatprep.subr.mxu0 0.0
        %793 = vmatpush1.xpose.msra.mxu0 0.0
        %794 = vmatprep.subr.mxu0 0.0
        %795 = vmatpush1.xpose.msra.mxu0 0.0
        %796 = vmatprep.mubr.f32.mxu0 0.0
        %797 = vmatmul.mubr.f32.gmra.mrb[0].mxu0 %v728
        %v798 = vpop.f32.mrb[0].mxu0
        %v799 = vadd.f32 0.0, %v798
        %v800 = vpop.f32.mrb[0].mxu0
        %801 = vdwg.mxu0
        %v802 = vsel %vm722, %v799, -1e+30
        %vm803 = vcmask 64512
        %v804 = vsel %vm803, %v802, -inf
        %805 = vmax.xlane.f32.xlu0 %v804
        %v806 = vpop.xlane.xlu0 %805
        %v807 = vsub.f32 %v802, %v806
        %v808 = vmul.f32 %v807, 1.442695
        %v809 = vpow.pop %v808
        %v810 = vsel %vm803, %v809, 0.0
        %811 = vadd.xlane.f32.xlu0 %v810
        %v812 = vpop.xlane.xlu0 %811
        %v813 = vrcp.pop %v812
        %v814 = vmul.f32 %v809, %v813
        %815 = vrot.lane.b32.xlu0 %v714, 64
        %v816 = vpop.permute.xlu0 %815
        %v819 = vsel %vm803, %v814, 0
        %821 = vmatprep.subr.mxu0 0.0
        %822 = vmatpush1.msra.mxu0 %v816
        %823 = vmatprep.subr.mxu0 0.0
        %824 = vmatpush1.msra.mxu0 0.0
        %825 = vmatprep.subr.mxu0 0.0
        %826 = vmatpush1.msra.mxu0 0.0
        %827 = vmatprep.subr.mxu0 0.0
        %828 = vmatpush1.msra.mxu0 0.0
        %829 = vmatprep.subr.mxu0 0.0
        %830 = vmatpush1.msra.mxu0 0.0
        %831 = vmatprep.subr.mxu0 0.0
        %832 = vmatpush1.msra.mxu0 0.0
        %833 = vmatprep.subr.mxu0 0.0
        %834 = vmatpush1.msra.mxu0 0.0
        %835 = vmatprep.subr.mxu0 0.0
        %836 = vmatpush1.msra.mxu0 0.0
        %837 = vmatprep.subr.mxu0 0.0
        %838 = vmatpush1.msra.mxu0 0.0
        %839 = vmatprep.subr.mxu0 0.0
        %840 = vmatpush1.msra.mxu0 0.0
        %841 = vmatprep.subr.mxu0 0.0
        %842 = vmatpush1.msra.mxu0 0.0
        %843 = vmatprep.subr.mxu0 0.0
        %844 = vmatpush1.msra.mxu0 0.0
        %845 = vmatprep.subr.mxu0 0.0
        %846 = vmatpush1.msra.mxu0 0.0
        %847 = vmatprep.subr.mxu0 0.0
        %848 = vmatpush1.msra.mxu0 0.0
        %849 = vmatprep.subr.mxu0 0.0
        %850 = vmatpush1.msra.mxu0 0.0
        %851 = vmatprep.subr.mxu0 0.0
        %852 = vmatpush1.msra.mxu0 0.0
        %853 = vmatprep.subr.mxu0 0.0
        %854 = vmatpush1.msra.mxu0 0.0
        %855 = vmatprep.subr.mxu0 0.0
        %856 = vmatpush1.msra.mxu0 0.0
        %857 = vmatprep.subr.mxu0 0.0
        %858 = vmatpush1.msra.mxu0 0.0
        %859 = vmatprep.subr.mxu0 0.0
        %860 = vmatpush1.msra.mxu0 0.0
        %861 = vmatprep.subr.mxu0 0.0
        %862 = vmatpush1.msra.mxu0 0.0
        %863 = vmatprep.subr.mxu0 0.0
        %864 = vmatpush1.msra.mxu0 0.0
        %865 = vmatprep.subr.mxu0 0.0
        %866 = vmatpush1.msra.mxu0 0.0
        %867 = vmatprep.subr.mxu0 0.0
        %868 = vmatpush1.msra.mxu0 0.0
        %869 = vmatprep.subr.mxu0 0.0
        %870 = vmatpush1.msra.mxu0 0.0
        %871 = vmatprep.subr.mxu0 0.0
        %872 = vmatpush1.msra.mxu0 0.0
        %873 = vmatprep.subr.mxu0 0.0
        %874 = vmatpush1.msra.mxu0 0.0
        %875 = vmatprep.subr.mxu0 0.0
        %876 = vmatpush1.msra.mxu0 0.0
        %877 = vmatprep.subr.mxu0 0.0
        %878 = vmatpush1.msra.mxu0 0.0
        %879 = vmatprep.subr.mxu0 0.0
        %880 = vmatpush1.msra.mxu0 0.0
        %881 = vmatprep.subr.mxu0 0.0
        %882 = vmatpush1.msra.mxu0 0.0
        %883 = vmatprep.subr.mxu0 0.0
        %884 = vmatpush1.msra.mxu0 0.0
        %885 = vmatprep.mubr.f32.mxu0 0.0
        %886 = vmatmul.mubr.f32.gmra.mrb[0].mxu0 %v819
        %v887 = vpop.f32.mrb[0].mxu0
        %v888 = vadd.f32 0.0, %v887
        %v889 = vpop.f32.mrb[0].mxu0
        %890 = vdwg.mxu0
        %891 = vst.msk [vmem:[#allocation2] sm:$0xff] %vm726, %v888
        %892 = vrot.lane.b32.xlu0 %v717, 112
        %v893 = vpop.permute.xlu0 %892
        %894 = vrot.lane.b32.xlu0 %v714, 80
        %v895 = vpop.permute.xlu0 %894
        %v896 = vsel %vm726, %v893, 0
        %v898 = vsel %vm726, %v895, 0
        %900 = vmatprep.subr.mxu0 0.0
        %901 = vmatpush1.xpose.msra.mxu0 %v898
        %902 = vmatprep.subr.mxu0 0.0
        %903 = vmatpush1.xpose.msra.mxu0 0.0
        %904 = vmatprep.subr.mxu0 0.0
        %905 = vmatpush1.xpose.msra.mxu0 0.0
        %906 = vmatprep.subr.mxu0 0.0
        %907 = vmatpush1.xpose.msra.mxu0 0.0
        %908 = vmatprep.subr.mxu0 0.0
        %909 = vmatpush1.xpose.msra.mxu0 0.0
        %910 = vmatprep.subr.mxu0 0.0
        %911 = vmatpush1.xpose.msra.mxu0 0.0
        %912 = vmatprep.subr.mxu0 0.0
        %913 = vmatpush1.xpose.msra.mxu0 0.0
        %914 = vmatprep.subr.mxu0 0.0
        %915 = vmatpush1.xpose.msra.mxu0 0.0
        %916 = vmatprep.subr.mxu0 0.0
        %917 = vmatpush1.xpose.msra.mxu0 0.0
        %918 = vmatprep.subr.mxu0 0.0
        %919 = vmatpush1.xpose.msra.mxu0 0.0
        %920 = vmatprep.subr.mxu0 0.0
        %921 = vmatpush1.xpose.msra.mxu0 0.0
        %922 = vmatprep.subr.mxu0 0.0
        %923 = vmatpush1.xpose.msra.mxu0 0.0
        %924 = vmatprep.subr.mxu0 0.0
        %925 = vmatpush1.xpose.msra.mxu0 0.0
        %926 = vmatprep.subr.mxu0 0.0
        %927 = vmatpush1.xpose.msra.mxu0 0.0
        %928 = vmatprep.subr.mxu0 0.0
        %929 = vmatpush1.xpose.msra.mxu0 0.0
        %930 = vmatprep.subr.mxu0 0.0
        %931 = vmatpush1.xpose.msra.mxu0 0.0
        %932 = vmatprep.subr.mxu0 0.0
        %933 = vmatpush1.xpose.msra.mxu0 0.0
        %934 = vmatprep.subr.mxu0 0.0
        %935 = vmatpush1.xpose.msra.mxu0 0.0
        %936 = vmatprep.subr.mxu0 0.0
        %937 = vmatpush1.xpose.msra.mxu0 0.0
        %938 = vmatprep.subr.mxu0 0.0
        %939 = vmatpush1.xpose.msra.mxu0 0.0
        %940 = vmatprep.subr.mxu0 0.0
        %941 = vmatpush1.xpose.msra.mxu0 0.0
        %942 = vmatprep.subr.mxu0 0.0
        %943 = vmatpush1.xpose.msra.mxu0 0.0
        %944 = vmatprep.subr.mxu0 0.0
        %945 = vmatpush1.xpose.msra.mxu0 0.0
        %946 = vmatprep.subr.mxu0 0.0
        %947 = vmatpush1.xpose.msra.mxu0 0.0
        %948 = vmatprep.subr.mxu0 0.0
        %949 = vmatpush1.xpose.msra.mxu0 0.0
        %950 = vmatprep.subr.mxu0 0.0
        %951 = vmatpush1.xpose.msra.mxu0 0.0
        %952 = vmatprep.subr.mxu0 0.0
        %953 = vmatpush1.xpose.msra.mxu0 0.0
        %954 = vmatprep.subr.mxu0 0.0
        %955 = vmatpush1.xpose.msra.mxu0 0.0
        %956 = vmatprep.subr.mxu0 0.0
        %957 = vmatpush1.xpose.msra.mxu0 0.0
        %958 = vmatprep.subr.mxu0 0.0
        %959 = vmatpush1.xpose.msra.mxu0 0.0
        %960 = vmatprep.subr.mxu0 0.0
        %961 = vmatpush1.xpose.msra.mxu0 0.0
        %962 = vmatprep.subr.mxu0 0.0
        %963 = vmatpush1.xpose.msra.mxu0 0.0
        %964 = vmatprep.mubr.f32.mxu0 0.0
        %965 = vmatmul.mubr.f32.gmra.mrb[0].mxu0 %v896
        %v966 = vpop.f32.mrb[0].mxu0
        %v967 = vadd.f32 0.0, %v966
        %v968 = vpop.f32.mrb[0].mxu0
        %969 = vdwg.mxu0
        %v970 = vsel %vm722, %v967, -1e+30
        %v971 = vsel %vm803, %v970, -inf
        %972 = vmax.xlane.f32.xlu0 %v971
        %v973 = vpop.xlane.xlu0 %972
        %v974 = vsub.f32 %v970, %v973
        %v975 = vmul.f32 %v974, 1.442695
        %v976 = vpow.pop %v975
        %v977 = vsel %vm803, %v976, 0.0
        %978 = vadd.xlane.f32.xlu0 %v977
        %v979 = vpop.xlane.xlu0 %978
        %v980 = vrcp.pop %v979
        %v981 = vmul.f32 %v976, %v980
        %982 = vrot.lane.b32.xlu0 %v714, 48
        %v983 = vpop.permute.xlu0 %982
        %v986 = vsel %vm803, %v981, 0
        %988 = vmatprep.subr.mxu0 0.0
        %989 = vmatpush1.msra.mxu0 %v983
        %990 = vmatprep.subr.mxu0 0.0
        %991 = vmatpush1.msra.mxu0 0.0
        %992 = vmatprep.subr.mxu0 0.0
        %993 = vmatpush1.msra.mxu0 0.0
        %994 = vmatprep.subr.mxu0 0.0
        %995 = vmatpush1.msra.mxu0 0.0
        %996 = vmatprep.subr.mxu0 0.0
        %997 = vmatpush1.msra.mxu0 0.0
        %998 = vmatprep.subr.mxu0 0.0
        %999 = vmatpush1.msra.mxu0 0.0
        %1000 = vmatprep.subr.mxu0 0.0
        %1001 = vmatpush1.msra.mxu0 0.0
        %1002 = vmatprep.subr.mxu0 0.0
        %1003 = vmatpush1.msra.mxu0 0.0
        %1004 = vmatprep.subr.mxu0 0.0
        %1005 = vmatpush1.msra.mxu0 0.0
        %1006 = vmatprep.subr.mxu0 0.0
        %1007 = vmatpush1.msra.mxu0 0.0
        %1008 = vmatprep.subr.mxu0 0.0
        %1009 = vmatpush1.msra.mxu0 0.0
        %1010 = vmatprep.subr.mxu0 0.0
        %1011 = vmatpush1.msra.mxu0 0.0
        %1012 = vmatprep.subr.mxu0 0.0
        %1013 = vmatpush1.msra.mxu0 0.0
        %1014 = vmatprep.subr.mxu0 0.0
        %1015 = vmatpush1.msra.mxu0 0.0
        %1016 = vmatprep.subr.mxu0 0.0
        %1017 = vmatpush1.msra.mxu0 0.0
        %1018 = vmatprep.subr.mxu0 0.0
        %1019 = vmatpush1.msra.mxu0 0.0
        %1020 = vmatprep.subr.mxu0 0.0
        %1021 = vmatpush1.msra.mxu0 0.0
        %1022 = vmatprep.subr.mxu0 0.0
        %1023 = vmatpush1.msra.mxu0 0.0
        %1024 = vmatprep.subr.mxu0 0.0
        %1025 = vmatpush1.msra.mxu0 0.0
        %1026 = vmatprep.subr.mxu0 0.0
        %1027 = vmatpush1.msra.mxu0 0.0
        %1028 = vmatprep.subr.mxu0 0.0
        %1029 = vmatpush1.msra.mxu0 0.0
        %1030 = vmatprep.subr.mxu0 0.0
        %1031 = vmatpush1.msra.mxu0 0.0
        %1032 = vmatprep.subr.mxu0 0.0
        %1033 = vmatpush1.msra.mxu0 0.0
        %1034 = vmatprep.subr.mxu0 0.0
        %1035 = vmatpush1.msra.mxu0 0.0
        %1036 = vmatprep.subr.mxu0 0.0
        %1037 = vmatpush1.msra.mxu0 0.0
        %1038 = vmatprep.subr.mxu0 0.0
        %1039 = vmatpush1.msra.mxu0 0.0
        %1040 = vmatprep.subr.mxu0 0.0
        %1041 = vmatpush1.msra.mxu0 0.0
        %1042 = vmatprep.subr.mxu0 0.0
        %1043 = vmatpush1.msra.mxu0 0.0
        %1044 = vmatprep.subr.mxu0 0.0
        %1045 = vmatpush1.msra.mxu0 0.0
        %1046 = vmatprep.subr.mxu0 0.0
        %1047 = vmatpush1.msra.mxu0 0.0
        %1048 = vmatprep.subr.mxu0 0.0
        %1049 = vmatpush1.msra.mxu0 0.0
        %1050 = vmatprep.subr.mxu0 0.0
        %1051 = vmatpush1.msra.mxu0 0.0
        %1052 = vmatprep.mubr.f32.mxu0 0.0
        %1053 = vmatmul.mubr.f32.gmra.mrb[0].mxu0 %v986
        %v1054 = vpop.f32.mrb[0].mxu0
        %v1055 = vadd.f32 0.0, %v1054
        %v1056 = vpop.f32.mrb[0].mxu0
        %1057 = vdwg.mxu0
        %1059 = vrot.lane.b32.xlu0 %v1055, 16
        %v1060 = vpop.permute.xlu0 %1059
        %vm1062 = vcmask 261248
        %1063 = vst.msk [vmem:[#allocation2] sm:$0xff] %vm1062, %v1060
        %v1064 = vld [vmem:[#allocation2] sm:$0xff]
        %v1065 = vld [vmem:[%s3] sm:$0xff]
        %v1066 = vld [vmem:[%s3 + $0x8] sm:$0xff]
        %v1067 = vld [vmem:[%s3 + $0x10] sm:$0xff]
        %v1068 = vld [vmem:[%s3 + $0x18] sm:$0xff]
        %v1069 = vld [vmem:[%s4] sm:$0x1]
        %v1071 = vlaneseq
        %v1072 = vshrl.u32 %v1071, 7
        %v1073 = vsub.s32 0, %v1072
        %v1074 = vrot.slane %v1069, %v1073
        %v1077 = vsel %vm611, %v1064, 0
        %1079 = vmatprep.subr.mxu0 0.0
        %1080 = vmatpush1.msra.mxu0 %v1065
        %1081 = vmatprep.subr.mxu0 0.0
        %1082 = vmatpush1.msra.mxu0 %v1066
        %1083 = vmatprep.subr.mxu0 0.0
        %1084 = vmatpush1.msra.mxu0 %v1067
        %1085 = vmatprep.subr.mxu0 0.0
        %1086 = vmatpush1.msra.mxu0 %v1068
        %1087 = vmatprep.subr.mxu0 0.0
        %1088 = vmatpush1.msra.mxu0 0.0
        %1089 = vmatprep.subr.mxu0 0.0
        %1090 = vmatpush1.msra.mxu0 0.0
        %1091 = vmatprep.subr.mxu0 0.0
        %1092 = vmatpush1.msra.mxu0 0.0
        %1093 = vmatprep.subr.mxu0 0.0
        %1094 = vmatpush1.msra.mxu0 0.0
        %1095 = vmatprep.subr.mxu0 0.0
        %1096 = vmatpush1.msra.mxu0 0.0
        %1097 = vmatprep.subr.mxu0 0.0
        %1098 = vmatpush1.msra.mxu0 0.0
        %1099 = vmatprep.subr.mxu0 0.0
        %1100 = vmatpush1.msra.mxu0 0.0
        %1101 = vmatprep.subr.mxu0 0.0
        %1102 = vmatpush1.msra.mxu0 0.0
        %1103 = vmatprep.subr.mxu0 0.0
        %1104 = vmatpush1.msra.mxu0 0.0
        %1105 = vmatprep.subr.mxu0 0.0
        %1106 = vmatpush1.msra.mxu0 0.0
        %1107 = vmatprep.subr.mxu0 0.0
        %1108 = vmatpush1.msra.mxu0 0.0
        %1109 = vmatprep.subr.mxu0 0.0
        %1110 = vmatpush1.msra.mxu0 0.0
        %1111 = vmatprep.subr.mxu0 0.0
        %1112 = vmatpush1.msra.mxu0 0.0
        %1113 = vmatprep.subr.mxu0 0.0
        %1114 = vmatpush1.msra.mxu0 0.0
        %1115 = vmatprep.subr.mxu0 0.0
        %1116 = vmatpush1.msra.mxu0 0.0
        %1117 = vmatprep.subr.mxu0 0.0
        %1118 = vmatpush1.msra.mxu0 0.0
        %1119 = vmatprep.subr.mxu0 0.0
        %1120 = vmatpush1.msra.mxu0 0.0
        %1121 = vmatprep.subr.mxu0 0.0
        %1122 = vmatpush1.msra.mxu0 0.0
        %1123 = vmatprep.subr.mxu0 0.0
        %1124 = vmatpush1.msra.mxu0 0.0
        %1125 = vmatprep.subr.mxu0 0.0
        %1126 = vmatpush1.msra.mxu0 0.0
        %1127 = vmatprep.subr.mxu0 0.0
        %1128 = vmatpush1.msra.mxu0 0.0
        %1129 = vmatprep.subr.mxu0 0.0
        %1130 = vmatpush1.msra.mxu0 0.0
        %1131 = vmatprep.subr.mxu0 0.0
        %1132 = vmatpush1.msra.mxu0 0.0
        %1133 = vmatprep.subr.mxu0 0.0
        %1134 = vmatpush1.msra.mxu0 0.0
        %1135 = vmatprep.subr.mxu0 0.0
        %1136 = vmatpush1.msra.mxu0 0.0
        %1137 = vmatprep.subr.mxu0 0.0
        %1138 = vmatpush1.msra.mxu0 0.0
        %1139 = vmatprep.subr.mxu0 0.0
        %1140 = vmatpush1.msra.mxu0 0.0
        %1141 = vmatprep.subr.mxu0 0.0
        %1142 = vmatpush1.msra.mxu0 0.0
        %1143 = vmatprep.mubr.f32.mxu0 0.0
        %1144 = vmatmul.mubr.f32.gmra.mrb[0].mxu0 %v1077
        %v1145 = vpop.f32.mrb[0].mxu0
        %v1146 = vadd.f32 %v1074, %v1145
        %v1147 = vpop.f32.mrb[0].mxu0
        %1148 = vdwg.mxu0
        %v1149 = vadd.f32 %v608, %v1146
        %v1150 = vld [vmem:[%s607] sm:$0xff]
        %v1151 = vld [vmem:[%s10] sm:$0x1]
        %v1152 = vld [vmem:[%s11] sm:$0x1]
        %v1153 = vsel %vm611, %v1149, 0.0
        %1154 = vadd.xlane.f32.xlu0 %v1153
        %v1155 = vpop.xlane.xlu0 %1154
        %v1156 = vmul.f32 %v1155, %v615
        %v1157 = vsub.f32 %v1149, %v1156
        %v1158 = vmul.f32 %v1157, %v1157
        %v1159 = vsel %vm611, %v1158, 0.0
        %1160 = vadd.xlane.f32.xlu0 %v1159
        %v1161 = vpop.xlane.xlu0 %1160
        %v1162 = vmul.f32 %v1161, %v615
        %v1163 = vadd.f32 %v1162, 1e-05
        %v1164 = vrsqrt.pop %v1163
        %v1165 = vmul.f32 %v1157, %v1164
        %v1167 = vlaneseq
        %v1168 = vshrl.u32 %v1167, 7
        %v1169 = vsub.s32 0, %v1168
        %v1170 = vrot.slane %v1151, %v1169
        %v1172 = vmul.f32 %v1165, %v1170
        %v1174 = vlaneseq
        %v1175 = vshrl.u32 %v1174, 7
        %v1176 = vsub.s32 0, %v1175
        %v1177 = vrot.slane %v1152, %v1176
        %v1179 = vadd.f32 %v1172, %v1177
        %v1180 = vld [vmem:[%s7] sm:$0xff]
        %v1181 = vld [vmem:[%s7 + $0x8] sm:$0xff]
        %v1182 = vld [vmem:[%s7 + $0x10] sm:$0xff]
        %v1183 = vld [vmem:[%s7 + $0x18] sm:$0xff]
        %v1185 = vsel %vm611, %v1179, 0
        %1187 = vmatprep.subr.mxu0 0.0
        %1188 = vmatpush1.msra.mxu0 %v1180
        %1189 = vmatprep.subr.mxu0 0.0
        %1190 = vmatpush1.msra.mxu0 %v1181
        %1191 = vmatprep.subr.mxu0 0.0
        %1192 = vmatpush1.msra.mxu0 %v1182
        %1193 = vmatprep.subr.mxu0 0.0
        %1194 = vmatpush1.msra.mxu0 %v1183
        %1195 = vmatprep.subr.mxu0 0.0
        %1196 = vmatpush1.msra.mxu0 0.0
        %1197 = vmatprep.subr.mxu0 0.0
        %1198 = vmatpush1.msra.mxu0 0.0
        %1199 = vmatprep.subr.mxu0 0.0
        %1200 = vmatpush1.msra.mxu0 0.0
        %1201 = vmatprep.subr.mxu0 0.0
        %1202 = vmatpush1.msra.mxu0 0.0
        %1203 = vmatprep.subr.mxu0 0.0
        %1204 = vmatpush1.msra.mxu0 0.0
        %1205 = vmatprep.subr.mxu0 0.0
        %1206 = vmatpush1.msra.mxu0 0.0
        %1207 = vmatprep.subr.mxu0 0.0
        %1208 = vmatpush1.msra.mxu0 0.0
        %1209 = vmatprep.subr.mxu0 0.0
        %1210 = vmatpush1.msra.mxu0 0.0
        %1211 = vmatprep.subr.mxu0 0.0
        %1212 = vmatpush1.msra.mxu0 0.0
        %1213 = vmatprep.subr.mxu0 0.0
        %1214 = vmatpush1.msra.mxu0 0.0
        %1215 = vmatprep.subr.mxu0 0.0
        %1216 = vmatpush1.msra.mxu0 0.0
        %1217 = vmatprep.subr.mxu0 0.0
        %1218 = vmatpush1.msra.mxu0 0.0
        %1219 = vmatprep.subr.mxu0 0.0
        %1220 = vmatpush1.msra.mxu0 0.0
        %1221 = vmatprep.subr.mxu0 0.0
        %1222 = vmatpush1.msra.mxu0 0.0
        %1223 = vmatprep.subr.mxu0 0.0
        %1224 = vmatpush1.msra.mxu0 0.0
        %1225 = vmatprep.subr.mxu0 0.0
        %1226 = vmatpush1.msra.mxu0 0.0
        %1227 = vmatprep.subr.mxu0 0.0
        %1228 = vmatpush1.msra.mxu0 0.0
        %1229 = vmatprep.subr.mxu0 0.0
        %1230 = vmatpush1.msra.mxu0 0.0
        %1231 = vmatprep.subr.mxu0 0.0
        %1232 = vmatpush1.msra.mxu0 0.0
        %1233 = vmatprep.subr.mxu0 0.0
        %1234 = vmatpush1.msra.mxu0 0.0
        %1235 = vmatprep.subr.mxu0 0.0
        %1236 = vmatpush1.msra.mxu0 0.0
        %1237 = vmatprep.subr.mxu0 0.0
        %1238 = vmatpush1.msra.mxu0 0.0
        %1239 = vmatprep.subr.mxu0 0.0
        %1240 = vmatpush1.msra.mxu0 0.0
        %1241 = vmatprep.subr.mxu0 0.0
        %1242 = vmatpush1.msra.mxu0 0.0
        %1243 = vmatprep.subr.mxu0 0.0
        %1244 = vmatpush1.msra.mxu0 0.0
        %1245 = vmatprep.subr.mxu0 0.0
        %1246 = vmatpush1.msra.mxu0 0.0
        %1247 = vmatprep.subr.mxu0 0.0
        %1248 = vmatpush1.msra.mxu0 0.0
        %1249 = vmatprep.subr.mxu0 0.0
        %1250 = vmatpush1.msra.mxu0 0.0
        %1251 = vmatprep.mubr.f32.mxu0 0.0
        %1252 = vmatmul.mubr.f32.gmra.mrb[0].mxu0 %v1185
        %v1253 = vpop.f32.mrb[0].mxu0
        %v1254 = vadd.f32 0.0, %v1253
        %v1255 = vpop.f32.mrb[0].mxu0
        %1256 = vdwg.mxu0
        %v1257 = vmul.f32 %v1254, 0.25
        %v1259 = vsel %vm726, %v1257, 0
        %v1262 = vsel %vm726, %v1150, 0
        %1264 = vmatprep.subr.mxu0 0.0
        %1265 = vmatpush1.xpose.msra.mxu0 %v1262
        %1266 = vmatprep.subr.mxu0 0.0
        %1267 = vmatpush1.xpose.msra.mxu0 0.0
        %1268 = vmatprep.subr.mxu0 0.0
        %1269 = vmatpush1.xpose.msra.mxu0 0.0
        %1270 = vmatprep.subr.mxu0 0.0
        %1271 = vmatpush1.xpose.msra.mxu0 0.0
        %1272 = vmatprep.subr.mxu0 0.0
        %1273 = vmatpush1.xpose.msra.mxu0 0.0
        %1274 = vmatprep.subr.mxu0 0.0
        %1275 = vmatpush1.xpose.msra.mxu0 0.0
        %1276 = vmatprep.subr.mxu0 0.0
        %1277 = vmatpush1.xpose.msra.mxu0 0.0
        %1278 = vmatprep.subr.mxu0 0.0
        %1279 = vmatpush1.xpose.msra.mxu0 0.0
        %1280 = vmatprep.subr.mxu0 0.0
        %1281 = vmatpush1.xpose.msra.mxu0 0.0
        %1282 = vmatprep.subr.mxu0 0.0
        %1283 = vmatpush1.xpose.msra.mxu0 0.0
        %1284 = vmatprep.subr.mxu0 0.0
        %1285 = vmatpush1.xpose.msra.mxu0 0.0
        %1286 = vmatprep.subr.mxu0 0.0
        %1287 = vmatpush1.xpose.msra.mxu0 0.0
        %1288 = vmatprep.subr.mxu0 0.0
        %1289 = vmatpush1.xpose.msra.mxu0 0.0
        %1290 = vmatprep.subr.mxu0 0.0
        %1291 = vmatpush1.xpose.msra.mxu0 0.0
        %1292 = vmatprep.subr.mxu0 0.0
        %1293 = vmatpush1.xpose.msra.mxu0 0.0
        %1294 = vmatprep.subr.mxu0 0.0
        %1295 = vmatpush1.xpose.msra.mxu0 0.0
        %1296 = vmatprep.subr.mxu0 0.0
        %1297 = vmatpush1.xpose.msra.mxu0 0.0
        %1298 = vmatprep.subr.mxu0 0.0
        %1299 = vmatpush1.xpose.msra.mxu0 0.0
        %1300 = vmatprep.subr.mxu0 0.0
        %1301 = vmatpush1.xpose.msra.mxu0 0.0
        %1302 = vmatprep.subr.mxu0 0.0
        %1303 = vmatpush1.xpose.msra.mxu0 0.0
        %1304 = vmatprep.subr.mxu0 0.0
        %1305 = vmatpush1.xpose.msra.mxu0 0.0
        %1306 = vmatprep.subr.mxu0 0.0
        %1307 = vmatpush1.xpose.msra.mxu0 0.0
        %1308 = vmatprep.subr.mxu0 0.0
        %1309 = vmatpush1.xpose.msra.mxu0 0.0
        %1310 = vmatprep.subr.mxu0 0.0
        %1311 = vmatpush1.xpose.msra.mxu0 0.0
        %1312 = vmatprep.subr.mxu0 0.0
        %1313 = vmatpush1.xpose.msra.mxu0 0.0
        %1314 = vmatprep.subr.mxu0 0.0
        %1315 = vmatpush1.xpose.msra.mxu0 0.0
        %1316 = vmatprep.subr.mxu0 0.0
        %1317 = vmatpush1.xpose.msra.mxu0 0.0
        %1318 = vmatprep.subr.mxu0 0.0
        %1319 = vmatpush1.xpose.msra.mxu0 0.0
        %1320 = vmatprep.subr.mxu0 0.0
        %1321 = vmatpush1.xpose.msra.mxu0 0.0
        %1322 = vmatprep.subr.mxu0 0.0
        %1323 = vmatpush1.xpose.msra.mxu0 0.0
        %1324 = vmatprep.subr.mxu0 0.0
        %1325 = vmatpush1.xpose.msra.mxu0 0.0
        %1326 = vmatprep.subr.mxu0 0.0
        %1327 = vmatpush1.xpose.msra.mxu0 0.0
        %1328 = vmatprep.mubr.f32.mxu0 0.0
        %1329 = vmatmul.mubr.f32.gmra.mrb[0].mxu0 %v1259
        %v1330 = vpop.f32.mrb[0].mxu0
        %v1331 = vadd.f32 0.0, %v1330
        %v1332 = vpop.f32.mrb[0].mxu0
        %1333 = vdwg.mxu0
        %v1334 = vsel %vm803, %v1331, -inf
        %1335 = vmax.xlane.f32.xlu0 %v1334
        %v1336 = vpop.xlane.xlu0 %1335
        %v1337 = vsub.f32 %v1331, %v1336
        %v1338 = vmul.f32 %v1337, 1.442695
        %v1339 = vpow.pop %v1338
        %v1340 = vsel %vm803, %v1339, 0.0
        %1341 = vadd.xlane.f32.xlu0 %v1340
        %v1342 = vpop.xlane.xlu0 %1341
        %v1343 = vrcp.pop %v1342
        %v1344 = vmul.f32 %v1339, %v1343
        %v1346 = vsel %vm803, %v1344, 0
        %1348 = vmatprep.subr.mxu0 0.0
        %1349 = vmatpush1.msra.mxu0 %v1150
        %1350 = vmatprep.subr.mxu0 0.0
        %1351 = vmatpush1.msra.mxu0 0.0
        %1352 = vmatprep.subr.mxu0 0.0
        %1353 = vmatpush1.msra.mxu0 0.0
        %1354 = vmatprep.subr.mxu0 0.0
        %1355 = vmatpush1.msra.mxu0 0.0
        %1356 = vmatprep.subr.mxu0 0.0
        %1357 = vmatpush1.msra.mxu0 0.0
        %1358 = vmatprep.subr.mxu0 0.0
        %1359 = vmatpush1.msra.mxu0 0.0
        %1360 = vmatprep.subr.mxu0 0.0
        %1361 = vmatpush1.msra.mxu0 0.0
        %1362 = vmatprep.subr.mxu0 0.0
        %1363 = vmatpush1.msra.mxu0 0.0
        %1364 = vmatprep.subr.mxu0 0.0
        %1365 = vmatpush1.msra.mxu0 0.0
        %1366 = vmatprep.subr.mxu0 0.0
        %1367 = vmatpush1.msra.mxu0 0.0
        %1368 = vmatprep.subr.mxu0 0.0
        %1369 = vmatpush1.msra.mxu0 0.0
        %1370 = vmatprep.subr.mxu0 0.0
        %1371 = vmatpush1.msra.mxu0 0.0
        %1372 = vmatprep.subr.mxu0 0.0
        %1373 = vmatpush1.msra.mxu0 0.0
        %1374 = vmatprep.subr.mxu0 0.0
        %1375 = vmatpush1.msra.mxu0 0.0
        %1376 = vmatprep.subr.mxu0 0.0
        %1377 = vmatpush1.msra.mxu0 0.0
        %1378 = vmatprep.subr.mxu0 0.0
        %1379 = vmatpush1.msra.mxu0 0.0
        %1380 = vmatprep.subr.mxu0 0.0
        %1381 = vmatpush1.msra.mxu0 0.0
        %1382 = vmatprep.subr.mxu0 0.0
        %1383 = vmatpush1.msra.mxu0 0.0
        %1384 = vmatprep.subr.mxu0 0.0
        %1385 = vmatpush1.msra.mxu0 0.0
        %1386 = vmatprep.subr.mxu0 0.0
        %1387 = vmatpush1.msra.mxu0 0.0
        %1388 = vmatprep.subr.mxu0 0.0
        %1389 = vmatpush1.msra.mxu0 0.0
        %1390 = vmatprep.subr.mxu0 0.0
        %1391 = vmatpush1.msra.mxu0 0.0
        %1392 = vmatprep.subr.mxu0 0.0
        %1393 = vmatpush1.msra.mxu0 0.0
        %1394 = vmatprep.subr.mxu0 0.0
        %1395 = vmatpush1.msra.mxu0 0.0
        %1396 = vmatprep.subr.mxu0 0.0
        %1397 = vmatpush1.msra.mxu0 0.0
        %1398 = vmatprep.subr.mxu0 0.0
        %1399 = vmatpush1.msra.mxu0 0.0
        %1400 = vmatprep.subr.mxu0 0.0
        %1401 = vmatpush1.msra.mxu0 0.0
        %1402 = vmatprep.subr.mxu0 0.0
        %1403 = vmatpush1.msra.mxu0 0.0
        %1404 = vmatprep.subr.mxu0 0.0
        %1405 = vmatpush1.msra.mxu0 0.0
        %1406 = vmatprep.subr.mxu0 0.0
        %1407 = vmatpush1.msra.mxu0 0.0
        %1408 = vmatprep.subr.mxu0 0.0
        %1409 = vmatpush1.msra.mxu0 0.0
        %1410 = vmatprep.subr.mxu0 0.0
        %1411 = vmatpush1.msra.mxu0 0.0
        %1412 = vmatprep.mubr.f32.mxu0 0.0
        %1413 = vmatmul.mubr.f32.gmra.mrb[0].mxu0 %v1346
        %v1414 = vpop.f32.mrb[0].mxu0
        %v1415 = vadd.f32 0.0, %v1414
        %v1416 = vpop.f32.mrb[0].mxu0
        %1417 = vdwg.mxu0
        %1418 = vst.msk [vmem:[#allocation2] sm:$0xff] %vm726, %v1415
        %1419 = vrot.lane.b32.xlu0 %v1257, 112
        %v1420 = vpop.permute.xlu0 %1419
        %1421 = vrot.lane.b32.xlu0 %v1150, 112
        %v1422 = vpop.permute.xlu0 %1421
        %v1423 = vsel %vm726, %v1420, 0
        %v1425 = vsel %vm726, %v1422, 0
        %1427 = vmatprep.subr.mxu0 0.0
        %1428 = vmatpush1.xpose.msra.mxu0 %v1425
        %1429 = vmatprep.subr.mxu0 0.0
        %1430 = vmatpush1.xpose.msra.mxu0 0.0
        %1431 = vmatprep.subr.mxu0 0.0
        %1432 = vmatpush1.xpose.msra.mxu0 0.0
        %1433 = vmatprep.subr.mxu0 0.0
        %1434 = vmatpush1.xpose.msra.mxu0 0.0
        %1435 = vmatprep.subr.mxu0 0.0
        %1436 = vmatpush1.xpose.msra.mxu0 0.0
        %1437 = vmatprep.subr.mxu0 0.0
        %1438 = vmatpush1.xpose.msra.mxu0 0.0
        %1439 = vmatprep.subr.mxu0 0.0
        %1440 = vmatpush1.xpose.msra.mxu0 0.0
        %1441 = vmatprep.subr.mxu0 0.0
        %1442 = vmatpush1.xpose.msra.mxu0 0.0
        %1443 = vmatprep.subr.mxu0 0.0
        %1444 = vmatpush1.xpose.msra.mxu0 0.0
        %1445 = vmatprep.subr.mxu0 0.0
        %1446 = vmatpush1.xpose.msra.mxu0 0.0
        %1447 = vmatprep.subr.mxu0 0.0
        %1448 = vmatpush1.xpose.msra.mxu0 0.0
        %1449 = vmatprep.subr.mxu0 0.0
        %1450 = vmatpush1.xpose.msra.mxu0 0.0
        %1451 = vmatprep.subr.mxu0 0.0
        %1452 = vmatpush1.xpose.msra.mxu0 0.0
        %1453 = vmatprep.subr.mxu0 0.0
        %1454 = vmatpush1.xpose.msra.mxu0 0.0
        %1455 = vmatprep.subr.mxu0 0.0
        %1456 = vmatpush1.xpose.msra.mxu0 0.0
        %1457 = vmatprep.subr.mxu0 0.0
        %1458 = vmatpush1.xpose.msra.mxu0 0.0
        %1459 = vmatprep.subr.mxu0 0.0
        %1460 = vmatpush1.xpose.msra.mxu0 0.0
        %1461 = vmatprep.subr.mxu0 0.0
        %1462 = vmatpush1.xpose.msra.mxu0 0.0
        %1463 = vmatprep.subr.mxu0 0.0
        %1464 = vmatpush1.xpose.msra.mxu0 0.0
        %1465 = vmatprep.subr.mxu0 0.0
        %1466 = vmatpush1.xpose.msra.mxu0 0.0
        %1467 = vmatprep.subr.mxu0 0.0
        %1468 = vmatpush1.xpose.msra.mxu0 0.0
        %1469 = vmatprep.subr.mxu0 0.0
        %1470 = vmatpush1.xpose.msra.mxu0 0.0
        %1471 = vmatprep.subr.mxu0 0.0
        %1472 = vmatpush1.xpose.msra.mxu0 0.0
        %1473 = vmatprep.subr.mxu0 0.0
        %1474 = vmatpush1.xpose.msra.mxu0 0.0
        %1475 = vmatprep.subr.mxu0 0.0
        %1476 = vmatpush1.xpose.msra.mxu0 0.0
        %1477 = vmatprep.subr.mxu0 0.0
        %1478 = vmatpush1.xpose.msra.mxu0 0.0
        %1479 = vmatprep.subr.mxu0 0.0
        %1480 = vmatpush1.xpose.msra.mxu0 0.0
        %1481 = vmatprep.subr.mxu0 0.0
        %1482 = vmatpush1.xpose.msra.mxu0 0.0
        %1483 = vmatprep.subr.mxu0 0.0
        %1484 = vmatpush1.xpose.msra.mxu0 0.0
        %1485 = vmatprep.subr.mxu0 0.0
        %1486 = vmatpush1.xpose.msra.mxu0 0.0
        %1487 = vmatprep.subr.mxu0 0.0
        %1488 = vmatpush1.xpose.msra.mxu0 0.0
        %1489 = vmatprep.subr.mxu0 0.0
        %1490 = vmatpush1.xpose.msra.mxu0 0.0
        %1491 = vmatprep.mubr.f32.mxu0 0.0
        %1492 = vmatmul.mubr.f32.gmra.mrb[0].mxu0 %v1423
        %v1493 = vpop.f32.mrb[0].mxu0
        %v1494 = vadd.f32 0.0, %v1493
        %v1495 = vpop.f32.mrb[0].mxu0
        %1496 = vdwg.mxu0
        %v1497 = vsel %vm803, %v1494, -inf
        %1498 = vmax.xlane.f32.xlu0 %v1497
        %v1499 = vpop.xlane.xlu0 %1498
        %v1500 = vsub.f32 %v1494, %v1499
        %v1501 = vmul.f32 %v1500, 1.442695
        %v1502 = vpow.pop %v1501
        %v1503 = vsel %vm803, %v1502, 0.0
        %1504 = vadd.xlane.f32.xlu0 %v1503
        %v1505 = vpop.xlane.xlu0 %1504
        %v1506 = vrcp.pop %v1505
        %v1507 = vmul.f32 %v1502, %v1506
        %v1510 = vsel %vm803, %v1507, 0
        %1512 = vmatprep.subr.mxu0 0.0
        %1513 = vmatpush1.msra.mxu0 %v1422
        %1514 = vmatprep.subr.mxu0 0.0
        %1515 = vmatpush1.msra.mxu0 0.0
        %1516 = vmatprep.subr.mxu0 0.0
        %1517 = vmatpush1.msra.mxu0 0.0
        %1518 = vmatprep.subr.mxu0 0.0
        %1519 = vmatpush1.msra.mxu0 0.0
        %1520 = vmatprep.subr.mxu0 0.0
        %1521 = vmatpush1.msra.mxu0 0.0
        %1522 = vmatprep.subr.mxu0 0.0
        %1523 = vmatpush1.msra.mxu0 0.0
        %1524 = vmatprep.subr.mxu0 0.0
        %1525 = vmatpush1.msra.mxu0 0.0
        %1526 = vmatprep.subr.mxu0 0.0
        %1527 = vmatpush1.msra.mxu0 0.0
        %1528 = vmatprep.subr.mxu0 0.0
        %1529 = vmatpush1.msra.mxu0 0.0
        %1530 = vmatprep.subr.mxu0 0.0
        %1531 = vmatpush1.msra.mxu0 0.0
        %1532 = vmatprep.subr.mxu0 0.0
        %1533 = vmatpush1.msra.mxu0 0.0
        %1534 = vmatprep.subr.mxu0 0.0
        %1535 = vmatpush1.msra.mxu0 0.0
        %1536 = vmatprep.subr.mxu0 0.0
        %1537 = vmatpush1.msra.mxu0 0.0
        %1538 = vmatprep.subr.mxu0 0.0
        %1539 = vmatpush1.msra.mxu0 0.0
        %1540 = vmatprep.subr.mxu0 0.0
        %1541 = vmatpush1.msra.mxu0 0.0
        %1542 = vmatprep.subr.mxu0 0.0
        %1543 = vmatpush1.msra.mxu0 0.0
        %1544 = vmatprep.subr.mxu0 0.0
        %1545 = vmatpush1.msra.mxu0 0.0
        %1546 = vmatprep.subr.mxu0 0.0
        %1547 = vmatpush1.msra.mxu0 0.0
        %1548 = vmatprep.subr.mxu0 0.0
        %1549 = vmatpush1.msra.mxu0 0.0
        %1550 = vmatprep.subr.mxu0 0.0
        %1551 = vmatpush1.msra.mxu0 0.0
        %1552 = vmatprep.subr.mxu0 0.0
        %1553 = vmatpush1.msra.mxu0 0.0
        %1554 = vmatprep.subr.mxu0 0.0
        %1555 = vmatpush1.msra.mxu0 0.0
        %1556 = vmatprep.subr.mxu0 0.0
        %1557 = vmatpush1.msra.mxu0 0.0
        %1558 = vmatprep.subr.mxu0 0.0
        %1559 = vmatpush1.msra.mxu0 0.0
        %1560 = vmatprep.subr.mxu0 0.0
        %1561 = vmatpush1.msra.mxu0 0.0
        %1562 = vmatprep.subr.mxu0 0.0
        %1563 = vmatpush1.msra.mxu0 0.0
        %1564 = vmatprep.subr.mxu0 0.0
        %1565 = vmatpush1.msra.mxu0 0.0
        %1566 = vmatprep.subr.mxu0 0.0
        %1567 = vmatpush1.msra.mxu0 0.0
        %1568 = vmatprep.subr.mxu0 0.0
        %1569 = vmatpush1.msra.mxu0 0.0
        %1570 = vmatprep.subr.mxu0 0.0
        %1571 = vmatpush1.msra.mxu0 0.0
        %1572 = vmatprep.subr.mxu0 0.0
        %1573 = vmatpush1.msra.mxu0 0.0
        %1574 = vmatprep.subr.mxu0 0.0
        %1575 = vmatpush1.msra.mxu0 0.0
        %1576 = vmatprep.mubr.f32.mxu0 0.0
        %1577 = vmatmul.mubr.f32.gmra.mrb[0].mxu0 %v1510
        %v1578 = vpop.f32.mrb[0].mxu0
        %v1579 = vadd.f32 0.0, %v1578
        %v1580 = vpop.f32.mrb[0].mxu0
        %1581 = vdwg.mxu0
        %1583 = vrot.lane.b32.xlu0 %v1579, 16
        %v1584 = vpop.permute.xlu0 %1583
        %1586 = vst.msk [vmem:[#allocation2] sm:$0xff] %vm1062, %v1584
        %v1587 = vld [vmem:[#allocation2] sm:$0xff]
        %v1588 = vld [vmem:[%s8] sm:$0xff]
        %v1589 = vld [vmem:[%s8 + $0x8] sm:$0xff]
        %v1590 = vld [vmem:[%s8 + $0x10] sm:$0xff]
        %v1591 = vld [vmem:[%s8 + $0x18] sm:$0xff]
        %v1592 = vld [vmem:[%s9] sm:$0x1]
        %v1594 = vlaneseq
        %v1595 = vshrl.u32 %v1594, 7
        %v1596 = vsub.s32 0, %v1595
        %v1597 = vrot.slane %v1592, %v1596
        %v1600 = vsel %vm611, %v1587, 0
        %1602 = vmatprep.subr.mxu0 0.0
        %1603 = vmatpush1.msra.mxu0 %v1588
        %1604 = vmatprep.subr.mxu0 0.0
        %1605 = vmatpush1.msra.mxu0 %v1589
        %1606 = vmatprep.subr.mxu0 0.0
        %1607 = vmatpush1.msra.mxu0 %v1590
        %1608 = vmatprep.subr.mxu0 0.0
        %1609 = vmatpush1.msra.mxu0 %v1591
        %1610 = vmatprep.subr.mxu0 0.0
        %1611 = vmatpush1.msra.mxu0 0.0
        %1612 = vmatprep.subr.mxu0 0.0
        %1613 = vmatpush1.msra.mxu0 0.0
        %1614 = vmatprep.subr.mxu0 0.0
        %1615 = vmatpush1.msra.mxu0 0.0
        %1616 = vmatprep.subr.mxu0 0.0
        %1617 = vmatpush1.msra.mxu0 0.0
        %1618 = vmatprep.subr.mxu0 0.0
        %1619 = vmatpush1.msra.mxu0 0.0
        %1620 = vmatprep.subr.mxu0 0.0
        %1621 = vmatpush1.msra.mxu0 0.0
        %1622 = vmatprep.subr.mxu0 0.0
        %1623 = vmatpush1.msra.mxu0 0.0
        %1624 = vmatprep.subr.mxu0 0.0
        %1625 = vmatpush1.msra.mxu0 0.0
        %1626 = vmatprep.subr.mxu0 0.0
        %1627 = vmatpush1.msra.mxu0 0.0
        %1628 = vmatprep.subr.mxu0 0.0
        %1629 = vmatpush1.msra.mxu0 0.0
        %1630 = vmatprep.subr.mxu0 0.0
        %1631 = vmatpush1.msra.mxu0 0.0
        %1632 = vmatprep.subr.mxu0 0.0
        %1633 = vmatpush1.msra.mxu0 0.0
        %1634 = vmatprep.subr.mxu0 0.0
        %1635 = vmatpush1.msra.mxu0 0.0
        %1636 = vmatprep.subr.mxu0 0.0
        %1637 = vmatpush1.msra.mxu0 0.0
        %1638 = vmatprep.subr.mxu0 0.0
        %1639 = vmatpush1.msra.mxu0 0.0
        %1640 = vmatprep.subr.mxu0 0.0
        %1641 = vmatpush1.msra.mxu0 0.0
        %1642 = vmatprep.subr.mxu0 0.0
        %1643 = vmatpush1.msra.mxu0 0.0
        %1644 = vmatprep.subr.mxu0 0.0
        %1645 = vmatpush1.msra.mxu0 0.0
        %1646 = vmatprep.subr.mxu0 0.0
        %1647 = vmatpush1.msra.mxu0 0.0
        %1648 = vmatprep.subr.mxu0 0.0
        %1649 = vmatpush1.msra.mxu0 0.0
        %1650 = vmatprep.subr.mxu0 0.0
        %1651 = vmatpush1.msra.mxu0 0.0
        %1652 = vmatprep.subr.mxu0 0.0
        %1653 = vmatpush1.msra.mxu0 0.0
        %1654 = vmatprep.subr.mxu0 0.0
        %1655 = vmatpush1.msra.mxu0 0.0
        %1656 = vmatprep.subr.mxu0 0.0
        %1657 = vmatpush1.msra.mxu0 0.0
        %1658 = vmatprep.subr.mxu0 0.0
        %1659 = vmatpush1.msra.mxu0 0.0
        %1660 = vmatprep.subr.mxu0 0.0
        %1661 = vmatpush1.msra.mxu0 0.0
        %1662 = vmatprep.subr.mxu0 0.0
        %1663 = vmatpush1.msra.mxu0 0.0
        %1664 = vmatprep.subr.mxu0 0.0
        %1665 = vmatpush1.msra.mxu0 0.0
        %1666 = vmatprep.mubr.f32.mxu0 0.0
        %1667 = vmatmul.mubr.f32.gmra.mrb[0].mxu0 %v1600
        %v1668 = vpop.f32.mrb[0].mxu0
        %v1669 = vadd.f32 %v1597, %v1668
        %v1670 = vpop.f32.mrb[0].mxu0
        %1671 = vdwg.mxu0
        %v1672 = vadd.f32 %v1149, %v1669
        %v1673 = vld [vmem:[%s16] sm:$0x1]
        %v1674 = vld [vmem:[%s17] sm:$0x1]
        %v1675 = vsel %vm611, %v1672, 0.0
        %1676 = vadd.xlane.f32.xlu0 %v1675
        %v1677 = vpop.xlane.xlu0 %1676
        %v1678 = vmul.f32 %v1677, %v615
        %v1679 = vsub.f32 %v1672, %v1678
        %v1680 = vmul.f32 %v1679, %v1679
        %v1681 = vsel %vm611, %v1680, 0.0
        %1682 = vadd.xlane.f32.xlu0 %v1681
        %v1683 = vpop.xlane.xlu0 %1682
        %v1684 = vmul.f32 %v1683, %v615
        %v1685 = vadd.f32 %v1684, 1e-05
        %v1686 = vrsqrt.pop %v1685
        %v1687 = vmul.f32 %v1679, %v1686
        %v1689 = vlaneseq
        %v1690 = vshrl.u32 %v1689, 7
        %v1691 = vsub.s32 0, %v1690
        %v1692 = vrot.slane %v1673, %v1691
        %v1694 = vmul.f32 %v1687, %v1692
        %v1696 = vlaneseq
        %v1697 = vshrl.u32 %v1696, 7
        %v1698 = vsub.s32 0, %v1697
        %v1699 = vrot.slane %v1674, %v1698
        %v1701 = vadd.f32 %v1694, %v1699
        %v1702 = vld [vmem:[%s12] sm:$0xff]
        %v1703 = vld [vmem:[%s12 + $0x8] sm:$0xff]
        %v1704 = vld [vmem:[%s12 + $0x10] sm:$0xff]
        %v1705 = vld [vmem:[%s12 + $0x18] sm:$0xff]
        %v1706 = vld [vmem:[%s13] sm:$0x1]
        %v1708 = vlaneseq
        %v1709 = vshrl.u32 %v1708, 7
        %v1710 = vsub.s32 0, %v1709
        %v1711 = vrot.slane %v1706, %v1710
        %v1714 = vsel %vm611, %v1701, 0
        %1716 = vmatprep.subr.mxu0 0.0
        %1717 = vmatpush1.msra.mxu0 %v1702
        %1718 = vmatprep.subr.mxu0 0.0
        %1719 = vmatpush1.msra.mxu0 %v1703
        %1720 = vmatprep.subr.mxu0 0.0
        %1721 = vmatpush1.msra.mxu0 %v1704
        %1722 = vmatprep.subr.mxu0 0.0
        %1723 = vmatpush1.msra.mxu0 %v1705
        %1724 = vmatprep.subr.mxu0 0.0
        %1725 = vmatpush1.msra.mxu0 0.0
        %1726 = vmatprep.subr.mxu0 0.0
        %1727 = vmatpush1.msra.mxu0 0.0
        %1728 = vmatprep.subr.mxu0 0.0
        %1729 = vmatpush1.msra.mxu0 0.0
        %1730 = vmatprep.subr.mxu0 0.0
        %1731 = vmatpush1.msra.mxu0 0.0
        %1732 = vmatprep.subr.mxu0 0.0
        %1733 = vmatpush1.msra.mxu0 0.0
        %1734 = vmatprep.subr.mxu0 0.0
        %1735 = vmatpush1.msra.mxu0 0.0
        %1736 = vmatprep.subr.mxu0 0.0
        %1737 = vmatpush1.msra.mxu0 0.0
        %1738 = vmatprep.subr.mxu0 0.0
        %1739 = vmatpush1.msra.mxu0 0.0
        %1740 = vmatprep.subr.mxu0 0.0
        %1741 = vmatpush1.msra.mxu0 0.0
        %1742 = vmatprep.subr.mxu0 0.0
        %1743 = vmatpush1.msra.mxu0 0.0
        %1744 = vmatprep.subr.mxu0 0.0
        %1745 = vmatpush1.msra.mxu0 0.0
        %1746 = vmatprep.subr.mxu0 0.0
        %1747 = vmatpush1.msra.mxu0 0.0
        %1748 = vmatprep.subr.mxu0 0.0
        %1749 = vmatpush1.msra.mxu0 0.0
        %1750 = vmatprep.subr.mxu0 0.0
        %1751 = vmatpush1.msra.mxu0 0.0
        %1752 = vmatprep.subr.mxu0 0.0
        %1753 = vmatpush1.msra.mxu0 0.0
        %1754 = vmatprep.subr.mxu0 0.0
        %1755 = vmatpush1.msra.mxu0 0.0
        %1756 = vmatprep.subr.mxu0 0.0
        %1757 = vmatpush1.msra.mxu0 0.0
        %1758 = vmatprep.subr.mxu0 0.0
        %1759 = vmatpush1.msra.mxu0 0.0
        %1760 = vmatprep.subr.mxu0 0.0
        %1761 = vmatpush1.msra.mxu0 0.0
        %1762 = vmatprep.subr.mxu0 0.0
        %1763 = vmatpush1.msra.mxu0 0.0
        %1764 = vmatprep.subr.mxu0 0.0
        %1765 = vmatpush1.msra.mxu0 0.0
        %1766 = vmatprep.subr.mxu0 0.0
        %1767 = vmatpush1.msra.mxu0 0.0
        %1768 = vmatprep.subr.mxu0 0.0
        %1769 = vmatpush1.msra.mxu0 0.0
        %1770 = vmatprep.subr.mxu0 0.0
        %1771 = vmatpush1.msra.mxu0 0.0
        %1772 = vmatprep.subr.mxu0 0.0
        %1773 = vmatpush1.msra.mxu0 0.0
        %1774 = vmatprep.subr.mxu0 0.0
        %1775 = vmatpush1.msra.mxu0 0.0
        %1776 = vmatprep.subr.mxu0 0.0
        %1777 = vmatpush1.msra.mxu0 0.0
        %1778 = vmatprep.subr.mxu0 0.0
        %1779 = vmatpush1.msra.mxu0 0.0
        %1780 = vmatprep.mubr.f32.mxu0 0.0
        %1781 = vmatmul.mubr.f32.gmra.mrb[0].mxu0 %v1714
        %v1782 = vpop.f32.mrb[0].mxu0
        %v1783 = vadd.f32 %v1711, %v1782
        %v1784 = vpop.f32.mrb[0].mxu0
        %1785 = vdwg.mxu0
        %v1786 = vmax.f32 %v1783, 0.0
        %vm1787 = vcmp.ne.f32.partialorder %v1783, %v1783
        %v1788 = vadd.f32 %v1783, 0.0
        %v1789 = vand.u32 2147483647, %v1783
        %v1790 = vsub.f32 0.0, %v1789
        %v1791 = vmul.f32 %v1790, 1.442695
        %v1792 = vpow.pop %v1791
        %v1793 = vadd.f32 %v1792, 1.0
        %v1794 = vlog2.pop %v1793
        %v1795 = vmul.f32 %v1794, 0.6931472
        %v1796 = vmul.f32 -0.5, %v1792
        %v1797 = vadd.f32 %v1796, 1.0
        %v1798 = vmul.f32 %v1797, %v1792
        %v1799 = vand.u32 2147483647, %v1792
        %vm1800 = vcmp.lt.f32.partialorder %v1799, 0.0004427343
        %v1801 = vsel %vm1800, %v1798, %v1795
        %v1802 = vadd.f32 %v1786, %v1801
        %v1803 = vsel %vm1787, %v1788, %v1802
        %v1804 = vtanh.pop %v1803
        %v1805 = vmul.f32 %v1783, %v1804
        %v1806 = vld [vmem:[%s14] sm:$0xff]
        %v1807 = vld [vmem:[%s14 + $0x8] sm:$0xff]
        %v1808 = vld [vmem:[%s14 + $0x10] sm:$0xff]
        %v1809 = vld [vmem:[%s14 + $0x18] sm:$0xff]
        %v1810 = vld [vmem:[%s14 + $0x20] sm:$0xff]
        %v1811 = vld [vmem:[%s14 + $0x28] sm:$0xff]
        %v1812 = vld [vmem:[%s14 + $0x30] sm:$0xff]
        %v1813 = vld [vmem:[%s14 + $0x38] sm:$0xff]
        %v1814 = vld [vmem:[%s15] sm:$0x1]
        %v1816 = vlaneseq
        %v1817 = vshrl.u32 %v1816, 7
        %v1818 = vsub.s32 0, %v1817
        %v1819 = vrot.slane %v1814, %v1818
        %vm1821 = vcmask 523264
        %v1823 = vsel %vm1821, %v1805, 0
        %1825 = vmatprep.subr.mxu0 0.0
        %1826 = vmatpush1.msra.mxu0 %v1806
        %1827 = vmatprep.subr.mxu0 0.0
        %1828 = vmatpush1.msra.mxu0 %v1807
        %1829 = vmatprep.subr.mxu0 0.0
        %1830 = vmatpush1.msra.mxu0 %v1808
        %1831 = vmatprep.subr.mxu0 0.0
        %1832 = vmatpush1.msra.mxu0 %v1809
        %1833 = vmatprep.subr.mxu0 0.0
        %1834 = vmatpush1.msra.mxu0 %v1810
        %1835 = vmatprep.subr.mxu0 0.0
        %1836 = vmatpush1.msra.mxu0 %v1811
        %1837 = vmatprep.subr.mxu0 0.0
        %1838 = vmatpush1.msra.mxu0 %v1812
        %1839 = vmatprep.subr.mxu0 0.0
        %1840 = vmatpush1.msra.mxu0 %v1813
        %1841 = vmatprep.subr.mxu0 0.0
        %1842 = vmatpush1.msra.mxu0 0.0
        %1843 = vmatprep.subr.mxu0 0.0
        %1844 = vmatpush1.msra.mxu0 0.0
        %1845 = vmatprep.subr.mxu0 0.0
        %1846 = vmatpush1.msra.mxu0 0.0
        %1847 = vmatprep.subr.mxu0 0.0
        %1848 = vmatpush1.msra.mxu0 0.0
        %1849 = vmatprep.subr.mxu0 0.0
        %1850 = vmatpush1.msra.mxu0 0.0
        %1851 = vmatprep.subr.mxu0 0.0
        %1852 = vmatpush1.msra.mxu0 0.0
        %1853 = vmatprep.subr.mxu0 0.0
        %1854 = vmatpush1.msra.mxu0 0.0
        %1855 = vmatprep.subr.mxu0 0.0
        %1856 = vmatpush1.msra.mxu0 0.0
        %1857 = vmatprep.subr.mxu0 0.0
        %1858 = vmatpush1.msra.mxu0 0.0
        %1859 = vmatprep.subr.mxu0 0.0
        %1860 = vmatpush1.msra.mxu0 0.0
        %1861 = vmatprep.subr.mxu0 0.0
        %1862 = vmatpush1.msra.mxu0 0.0
        %1863 = vmatprep.subr.mxu0 0.0
        %1864 = vmatpush1.msra.mxu0 0.0
        %1865 = vmatprep.subr.mxu0 0.0
        %1866 = vmatpush1.msra.mxu0 0.0
        %1867 = vmatprep.subr.mxu0 0.0
        %1868 = vmatpush1.msra.mxu0 0.0
        %1869 = vmatprep.subr.mxu0 0.0
        %1870 = vmatpush1.msra.mxu0 0.0
        %1871 = vmatprep.subr.mxu0 0.0
        %1872 = vmatpush1.msra.mxu0 0.0
        %1873 = vmatprep.subr.mxu0 0.0
        %1874 = vmatpush1.msra.mxu0 0.0
        %1875 = vmatprep.subr.mxu0 0.0
        %1876 = vmatpush1.msra.mxu0 0.0
        %1877 = vmatprep.subr.mxu0 0.0
        %1878 = vmatpush1.msra.mxu0 0.0
        %1879 = vmatprep.subr.mxu0 0.0
        %1880 = vmatpush1.msra.mxu0 0.0
        %1881 = vmatprep.subr.mxu0 0.0
        %1882 = vmatpush1.msra.mxu0 0.0
        %1883 = vmatprep.subr.mxu0 0.0
        %1884 = vmatpush1.msra.mxu0 0.0
        %1885 = vmatprep.subr.mxu0 0.0
        %1886 = vmatpush1.msra.mxu0 0.0
        %1887 = vmatprep.subr.mxu0 0.0
        %1888 = vmatpush1.msra.mxu0 0.0
        %1889 = vmatprep.mubr.f32.mxu0 0.0
        %1890 = vmatmul.mubr.f32.gmra.mrb[0].mxu0 %v1823
        %v1891 = vpop.f32.mrb[0].mxu0
        %v1892 = vadd.f32 %v1819, %v1891
        %v1893 = vpop.f32.mrb[0].mxu0
        %1894 = vdwg.mxu0
        %v1895 = vadd.f32 %v1672, %v1892
        %1896 = vst.msk [vmem:[%s603] sm:$0xff] %vm611, %v1895
        %s1897 = sand.u32 %s431, 1
        %s1898 = scalar_lea.sflag [#allocation5], %s1897
        %s1899 = sand.u32 %s431, 1
        %s1900 = smul.addr %s1899, 8
        %s1901 = scalar_lea.vmem [#allocation6], %s1900
        // Predicated region
        $region97: #{decoder_forward.3} parent=91 // pred_check
          %p1902 = pneg %p441
        $region98: #{decoder_forward.3} parent=91 // pred_check_branch
          %1904 = sbr.rel (%p1902) target = $region100
        $region99: #{decoder_forward.3} parent=91 // pred_region
          %s1906 = ssub.s32 128, 128
          %1907 = vsyncadd %s1898, %s1906
          %s1908 = smul.addr %s35, 128
          %s1909 = scalar_lea.hbm %s18, %s1908
          %s1911 = sshll.u32 %s1901, 4
          %s1912 = int_to_ptr.vmem [resolvable:$true] %s1911
          %1914 = dma.vmem_to_hbm [thread:$0]  %s1912, 128, %s1909, %s1898
        $region100: #{decoder_forward.3} parent=91 // pred_fallthru
          _
      $region92: #{decoder_forward.3} parent=5 // pred_fallthru
        _
      %p1915 = scmp.le.s32.totalorder 2, %s30
      // Predicated region
      $region101: #{decoder_forward.3} parent=5 // pred_check
        %p1916 = pneg %p1915
      $region102: #{decoder_forward.3} parent=5 // pred_check_branch
        %1918 = sbr.rel (%p1916) target = $region104
      $region103: #{decoder_forward.3} parent=5 // pred_region
        %s1919 = ssub.s32 %s30, 2
        // Predicated region
        $region105: #{decoder_forward.3} parent=103 // pred_check
          %p1920 = pneg %p447
        $region106: #{decoder_forward.3} parent=103 // pred_check_branch
          %1922 = sbr.rel (%p1920) target = $region108
        $region107: #{decoder_forward.3} parent=103 // pred_region
          %s1923 = sand.u32 %s432, 1
          %s1924 = scalar_lea.sflag [#allocation5], %s1923
          %s1925 = sand.u32 %s432, 1
          %s1926 = smul.addr %s1925, 8
          %s1927 = scalar_lea.vmem [#allocation6], %s1926
          %1928 = dma.done %s1924, 128
        $region108: #{decoder_forward.3} parent=103 // pred_fallthru
          _
      $region104: #{decoder_forward.3} parent=5 // pred_fallthru
        _
    $region6: #{decoder_forward.3} parent=1 // loop_footer
      %s34 = sadd.s32 1, %s30
    $region7: #{decoder_forward.3} parent=1 // loop_footer_branch
      %29 = sbr.rel target = $region3
    $region8: #{decoder_forward.3} parent=1 // loop_exit
      _
    %1929 = vsyncpa [#allocation4], 1
    %s1930 = scalar_lea.sflag [#allocation4], 1
    %1931 = vsyncpa %s1930, 1
    %1932 = vsyncpa [#allocation5], 1
    %s1933 = scalar_lea.sflag [#allocation5], 1
    %1934 = vsyncpa %s1933, 1

</llo_original>
